<compile_context>
chip_gen: v7x
topology: tpu7x:2x2x1
jax: 0.10.0
libtpu: 0.0.40
codegen_flags: <defaults>
</compile_context>

<pallas_src>
import functools
import math

import jax
import jax.numpy as jnp
from jax.experimental import pallas as pl
from jax.experimental.pallas import tpu as pltpu

# ----------------------------------------------------------------------------
# Pallas kernel: a single lane-dense bf16 matmul with f32 accumulation.
# Every conv / fused MixedOp in the network is expressed as one call to this.
# ----------------------------------------------------------------------------

_TM = 256   # rows per grid step (M tile)
_TN = 128   # output lane width multiple (lane-dense stores)


def _mm_kernel(a_ref, b_ref, o_ref):
    o_ref[...] = jnp.dot(a_ref[...], b_ref[...],
                         preferred_element_type=jnp.float32)


def pallas_matmul(a, b):
    """(M, K) @ (K, N) -> (M, N) f32; bf16 MXU inputs, f32 accumulate.

    M is padded to a multiple of _TM, K to a multiple of 16 (bf16 sublane
    packing), N to a multiple of 128 (unmasked lane-dense output stores).
    """
    M, K = a.shape
    K2, N = b.shape
    assert K == K2
    Mp = pl.cdiv(M, _TM) * _TM
    Kp = pl.cdiv(K, 16) * 16
    Np = pl.cdiv(N, _TN) * _TN

    a = a.astype(jnp.bfloat16)
    b = b.astype(jnp.bfloat16)
    if (Mp, Kp) != (M, K):
        a = jnp.pad(a, ((0, Mp - M), (0, Kp - K)))
    if (Kp, Np) != (K, N):
        b = jnp.pad(b, ((0, Kp - K), (0, Np - N)))

    out = pl.pallas_call(
        _mm_kernel,
        out_shape=jax.ShapeDtypeStruct((Mp, Np), jnp.float32),
        grid=(Mp // _TM,),
        in_specs=[
            pl.BlockSpec((_TM, Kp), lambda i: (i, 0)),   # A: tiled over M
            pl.BlockSpec((Kp, Np), lambda i: (0, 0)),    # B: resident weights
        ],
        out_specs=pl.BlockSpec((_TM, Np), lambda i: (i, 0)),
        compiler_params=pltpu.CompilerParams(
            dimension_semantics=("parallel",)),
    )(a, b)
    return out[:M, :N]


# ----------------------------------------------------------------------------
# Conv / pixel-shuffle glue (im2col built in JAX, matmul in Pallas)
# ----------------------------------------------------------------------------

def conv2d(x, w, *, padding, relu=False):
    """x: (B,H,W,Cin) f32, w: (Cout,Cin,kh,kw) PyTorch layout, stride 1, no bias."""
    B, H, W, Cin = x.shape
    Cout, Cin2, kh, kw = w.shape
    assert Cin == Cin2
    if relu:
        x = jnp.maximum(x, 0.0)          # ReLU once, in f32, before im2col
    xp = jnp.pad(x, ((0, 0), (padding, padding), (padding, padding), (0, 0)))
    patches = [xp[:, di:di + H, dj:dj + W, :]
               for di in range(kh) for dj in range(kw)]
    a = jnp.concatenate(patches, axis=-1).reshape(B * H * W, kh * kw * Cin)
    bmat = jnp.transpose(w, (2, 3, 1, 0)).reshape(kh * kw * Cin, Cout)
    y = pallas_matmul(a, bmat)
    return y.reshape(B, H, W, Cout)


def pixel_shuffle(x, r):
    """NHWC equivalent of torch.nn.PixelShuffle(r)."""
    B, H, W, Cr2 = x.shape
    C = Cr2 // (r * r)
    x = x.reshape(B, H, W, C, r, r)
    x = jnp.transpose(x, (0, 1, 4, 2, 5, 3))
    return x.reshape(B, H * r, W * r, C)


# ----------------------------------------------------------------------------
# DARTS cell with fused MixedOp
# ----------------------------------------------------------------------------

PRIMITIVES = ("skip_connect", "conv_3x3", "conv_5x5")


def _edge_index(node_i, state_j):
    # offset_i = sum_{k<i} (k + 2) = i*(i+3)//2
    return node_i * (node_i + 3) // 2 + state_j


def cell_forward(cp, s0, s1, weights, *, n_nodes, multiplier):
    B, H, W = s0.shape[:3]
    C = cp["pre0"].shape[0]
    M = B * H * W

    # ---- fused preprocess: [ReLU+1x1 conv](s0) and (s1) as one block-diag matmul
    C0 = cp["pre0"].shape[1]
    C1 = cp["pre1"].shape[1]
    a_pre = jnp.concatenate([jnp.maximum(s0, 0.0).reshape(M, C0),
                             jnp.maximum(s1, 0.0).reshape(M, C1)], axis=1)
    w_pre = jnp.zeros((C0 + C1, 2 * C), jnp.float32)
    w_pre = w_pre.at[:C0, :C].set(cp["pre0"].reshape(C, C0).T)
    w_pre = w_pre.at[C0:, C:].set(cp["pre1"].reshape(C, C1).T)
    pre = pallas_matmul(a_pre, w_pre)                       # (M, 2C)
    states = [pre[:, :C].reshape(B, H, W, C),
              pre[:, C:].reshape(B, H, W, C)]

    node_acc = [jnp.zeros((B, H, W, C), jnp.float32) for _ in range(n_nodes)]

    # Process source states in dependency order; for each state do ONE matmul
    # covering every downstream edge (weights concatenated along N, MixedOp
    # folded into the conv weights, skip folded via extra raw-x columns).
    for j in range(n_nodes + 1):
        if j >= 2:
            states.append(node_acc[j - 2])   # node j-2 is complete by now
        x = states[j]
        down = list(range(max(j - 1, 0), n_nodes))

        # extended im2col: 25 taps of relu(x) (5x5, pad 2) + raw x for the skip
        xr = jnp.maximum(x, 0.0)
        xp = jnp.pad(xr, ((0, 0), (2, 2), (2, 2), (0, 0)))
        patches = [xp[:, di:di + H, dj:dj + W, :]
                   for di in range(5) for dj in range(5)]
        patches.append(x)                                   # NOT relu'd
        A = jnp.concatenate(patches, axis=-1).reshape(M, 26 * C)

        conv_cols, skip_cols = [], []
        for i in down:
            e = _edge_index(i, j)
            op = cp["ops"][e]
            w3p = jnp.pad(op["c3"], ((0, 0), (0, 0), (1, 1), (1, 1)))  # 3x3 -> 5x5
            wc = weights[e, 1] * w3p + weights[e, 2] * op["c5"]
            conv_cols.append(jnp.transpose(wc, (2, 3, 1, 0)).reshape(25 * C, C))
            skip_cols.append(weights[e, 0] * jnp.eye(C, dtype=jnp.float32))
        Wst = jnp.concatenate([jnp.concatenate(conv_cols, axis=1),
                               jnp.concatenate(skip_cols, axis=1)], axis=0)

        out = pallas_matmul(A, Wst)                          # (M, len(down)*C)
        for d, i in enumerate(down):
            node_acc[i] = node_acc[i] + \
                out[:, d * C:(d + 1) * C].reshape(B, H, W, C)

    return jnp.concatenate(node_acc[n_nodes - multiplier:], axis=-1)


def network_forward(params, x, weights_normal, *, n_nodes, multiplier, scale):
    s0 = s1 = conv2d(x, params["stem"], padding=1)
    for cp in params["cells"]:
        s0, s1 = s1, cell_forward(cp, s0, s1, weights_normal,
                                  n_nodes=n_nodes, multiplier=multiplier)
    up = conv2d(s1, params["ups"], padding=1)
    up = pixel_shuffle(up, scale)
    logits = conv2d(up, params["reducer"], padding=1)
    return logits


# ----------------------------------------------------------------------------
# Deterministic parameter construction (shapes follow the PyTorch __init__)
# ----------------------------------------------------------------------------

def _conv_w(key, cout, cin, k):
    return (1.0 / math.sqrt(cin * k * k)) * jax.random.normal(
        key, (cout, cin, k, k), jnp.float32)


def init_params(key, *, C, n_colors, scale, n_cells, n_nodes, multiplier):
    stem_multiplier = 3
    C_curr = stem_multiplier * C
    keys = iter(jax.random.split(key, 512))
    params = {"stem": _conv_w(next(keys), C_curr, 3, 3)}
    C_pp, C_p, C_curr = C_curr, C_curr, C
    cells = []
    n_edges = sum(2 + i for i in range(n_nodes))
    for _ in range(n_cells):
        cp = {
            "pre0": _conv_w(next(keys), C_curr, C_pp, 1),
            "pre1": _conv_w(next(keys), C_curr, C_p, 1),
            "ops": [],
        }
        for _ in range(n_edges):
            cp["ops"].append({
                "c3": _conv_w(next(keys), C_curr, C_curr, 3),
                "c5": _conv_w(next(keys), C_curr, C_curr, 5),
            })
        cells.append(cp)
        C_out = multiplier * C_curr
        C_pp, C_p = C_p, C_out
    params["cells"] = cells
    params["ups"] = _conv_w(next(keys), C_p * scale * scale, C_p, 3)
    params["reducer"] = _conv_w(next(keys), n_colors, C_p, 3)
    return params


# ----------------------------------------------------------------------------

if __name__ == "__main__":
    C, n_colors, scale = 8, 3, 2
    n_cells, n_nodes, multiplier = 2, 4, 4
    n_edges = sum(2 + i for i in range(n_nodes))         # 14 edges
    n_ops = len(PRIMITIVES)                               # 3 candidate ops

    key = jax.random.PRNGKey(0)
    k_par, k_x, k_alpha = jax.random.split(key, 3)

    params = init_params(k_par, C=C, n_colors=n_colors, scale=scale,
                         n_cells=n_cells, n_nodes=n_nodes, multiplier=multiplier)

    # PyTorch-facing input: NCHW
    x_nchw = jax.random.normal(k_x, (2, 3, 16, 16), jnp.float32)
    alphas = jax.random.normal(k_alpha, (n_edges, n_ops), jnp.float32)
    weights_normal = jax.nn.softmax(alphas, axis=-1)

    x_nhwc = jnp.transpose(x_nchw, (0, 2, 3, 1))

    fwd = jax.jit(functools.partial(network_forward, n_nodes=n_nodes,
                                    multiplier=multiplier, scale=scale))
    logits_nhwc = fwd(params, x_nhwc, weights_normal)
    logits_nchw = jnp.transpose(logits_nhwc, (0, 3, 1, 2))
    jax.block_until_ready(logits_nchw)

    assert logits_nchw.shape == (2, n_colors, 16 * scale, 16 * scale), logits_nchw.shape
    print("KERNEL_OK")
</pallas_src>

<mosaic_0001>
module attributes {stable_mosaic.version = 11 : i64} {
  func.func @_mm_kernel(%arg0: i32, %arg1: memref<256x32xbf16, #tpu.memory_space<vmem>>, %arg2: memref<32x128xbf16, #tpu.memory_space<vmem>>, %arg3: memref<256x128xf32, #tpu.memory_space<vmem>>) attributes {dimension_semantics = [#tpu.dimension_semantics<parallel>], iteration_bounds = array<i64: 2>, scalar_prefetch = 0 : i64, scratch_operands = 0 : i64, tpu.core_type = #tpu.core_type<tc>, window_params = [{transform_indices = @transform_0, window_bounds = array<i64: 256, 32>}, {pipeline_mode = #tpu.pipeline_mode<synchronous>, transform_indices = @transform_1, window_bounds = array<i64: 32, 128>}, {transform_indices = @transform_2, window_bounds = array<i64: 256, 128>}]} {
    %c0 = arith.constant 0 : index
    %c0_0 = arith.constant 0 : index
    %0 = vector.load %arg1[%c0, %c0_0] : memref<256x32xbf16, #tpu.memory_space<vmem>>, vector<256x32xbf16>
    %c0_1 = arith.constant 0 : index
    %c0_2 = arith.constant 0 : index
    %1 = vector.load %arg2[%c0_1, %c0_2] : memref<32x128xbf16, #tpu.memory_space<vmem>>, vector<32x128xbf16>
    %cst = arith.constant dense<0.000000e+00> : vector<256x128xf32>
    %2 = tpu.matmul %0, %1, %cst {dimension_numbers = #tpu.dot_dimension_numbers<[1], [0], [0], [1], [0, 0, 1, 1], [], []>} : vector<256x32xbf16>, vector<32x128xbf16>, vector<256x128xf32> -> vector<256x128xf32>
    %c0_3 = arith.constant 0 : index
    %c0_4 = arith.constant 0 : index
    %3 = vector.load %arg3[%c0_3, %c0_4] : memref<256x128xf32, #tpu.memory_space<vmem>>, vector<256x128xf32>
    tpu.vector_store %arg3[%c0_3, %c0_4], %2 {strides = array<i32>} : memref<256x128xf32, #tpu.memory_space<vmem>>, vector<256x128xf32>,
    return
  }
  func.func @transform_0(%arg0: i32) -> (i32, i32) {
    %c0_i32 = arith.constant 0 : i32
    %c0_i32_0 = arith.constant 0 : i32
    return %arg0, %c0_i32 : i32, i32
  }
  func.func @transform_1(%arg0: i32) -> (i32, i32) {
    %c0_i32 = arith.constant 0 : i32
    %c0_i32_0 = arith.constant 0 : i32
    %c0_i32_1 = arith.constant 0 : i32
    return %c0_i32, %c0_i32_0 : i32, i32
  }
  func.func @transform_2(%arg0: i32) -> (i32, i32) {
    %c0_i32 = arith.constant 0 : i32
    %c0_i32_0 = arith.constant 0 : i32
    return %arg0, %c0_i32 : i32, i32
  }
}

module attributes {stable_mosaic.version = 11 : i64} {
  func.func @_mm_kernel(%arg0: i32, %arg1: memref<256x48xbf16, #tpu.memory_space<vmem>>, %arg2: memref<48x128xbf16, #tpu.memory_space<vmem>>, %arg3: memref<256x128xf32, #tpu.memory_space<vmem>>) attributes {dimension_semantics = [#tpu.dimension_semantics<parallel>], iteration_bounds = array<i64: 2>, scalar_prefetch = 0 : i64, scratch_operands = 0 : i64, tpu.core_type = #tpu.core_type<tc>, window_params = [{transform_indices = @transform_0, window_bounds = array<i64: 256, 48>}, {pipeline_mode = #tpu.pipeline_mode<synchronous>, transform_indices = @transform_1, window_bounds = array<i64: 48, 128>}, {transform_indices = @transform_2, window_bounds = array<i64: 256, 128>}]} {
    %c0 = arith.constant 0 : index
    %c0_0 = arith.constant 0 : index
    %0 = vector.load %arg1[%c0, %c0_0] : memref<256x48xbf16, #tpu.memory_space<vmem>>, vector<256x48xbf16>
    %c0_1 = arith.constant 0 : index
    %c0_2 = arith.constant 0 : index
    %1 = vector.load %arg2[%c0_1, %c0_2] : memref<48x128xbf16, #tpu.memory_space<vmem>>, vector<48x128xbf16>
    %cst = arith.constant dense<0.000000e+00> : vector<256x128xf32>
    %2 = tpu.matmul %0, %1, %cst {dimension_numbers = #tpu.dot_dimension_numbers<[1], [0], [0], [1], [0, 0, 1, 1], [], []>} : vector<256x48xbf16>, vector<48x128xbf16>, vector<256x128xf32> -> vector<256x128xf32>
    %c0_3 = arith.constant 0 : index
    %c0_4 = arith.constant 0 : index
    %3 = vector.load %arg3[%c0_3, %c0_4] : memref<256x128xf32, #tpu.memory_space<vmem>>, vector<256x128xf32>
    tpu.vector_store %arg3[%c0_3, %c0_4], %2 {strides = array<i32>} : memref<256x128xf32, #tpu.memory_space<vmem>>, vector<256x128xf32>,
    return
  }
  func.func @transform_0(%arg0: i32) -> (i32, i32) {
    %c0_i32 = arith.constant 0 : i32
    %c0_i32_0 = arith.constant 0 : i32
    return %arg0, %c0_i32 : i32, i32
  }
  func.func @transform_1(%arg0: i32) -> (i32, i32) {
    %c0_i32 = arith.constant 0 : i32
    %c0_i32_0 = arith.constant 0 : i32
    %c0_i32_1 = arith.constant 0 : i32
    return %c0_i32, %c0_i32_0 : i32, i32
  }
  func.func @transform_2(%arg0: i32) -> (i32, i32) {
    %c0_i32 = arith.constant 0 : i32
    %c0_i32_0 = arith.constant 0 : i32
    return %arg0, %c0_i32 : i32, i32
  }
}

module attributes {stable_mosaic.version = 11 : i64} {
  func.func @_mm_kernel(%arg0: i32, %arg1: memref<256x208xbf16, #tpu.memory_space<vmem>>, %arg2: memref<208x128xbf16, #tpu.memory_space<vmem>>, %arg3: memref<256x128xf32, #tpu.memory_space<vmem>>) attributes {dimension_semantics = [#tpu.dimension_semantics<parallel>], iteration_bounds = array<i64: 2>, scalar_prefetch = 0 : i64, scratch_operands = 0 : i64, tpu.core_type = #tpu.core_type<tc>, window_params = [{transform_indices = @transform_0, window_bounds = array<i64: 256, 208>}, {pipeline_mode = #tpu.pipeline_mode<synchronous>, transform_indices = @transform_1, window_bounds = array<i64: 208, 128>}, {transform_indices = @transform_2, window_bounds = array<i64: 256, 128>}]} {
    %c0 = arith.constant 0 : index
    %c0_0 = arith.constant 0 : index
    %0 = vector.load %arg1[%c0, %c0_0] : memref<256x208xbf16, #tpu.memory_space<vmem>>, vector<256x208xbf16>
    %c0_1 = arith.constant 0 : index
    %c0_2 = arith.constant 0 : index
    %1 = vector.load %arg2[%c0_1, %c0_2] : memref<208x128xbf16, #tpu.memory_space<vmem>>, vector<208x128xbf16>
    %cst = arith.constant dense<0.000000e+00> : vector<256x128xf32>
    %2 = tpu.matmul %0, %1, %cst {dimension_numbers = #tpu.dot_dimension_numbers<[1], [0], [0], [1], [0, 0, 1, 1], [], []>} : vector<256x208xbf16>, vector<208x128xbf16>, vector<256x128xf32> -> vector<256x128xf32>
    %c0_3 = arith.constant 0 : index
    %c0_4 = arith.constant 0 : index
    %3 = vector.load %arg3[%c0_3, %c0_4] : memref<256x128xf32, #tpu.memory_space<vmem>>, vector<256x128xf32>
    tpu.vector_store %arg3[%c0_3, %c0_4], %2 {strides = array<i32>} : memref<256x128xf32, #tpu.memory_space<vmem>>, vector<256x128xf32>,
    return
  }
  func.func @transform_0(%arg0: i32) -> (i32, i32) {
    %c0_i32 = arith.constant 0 : i32
    %c0_i32_0 = arith.constant 0 : i32
    return %arg0, %c0_i32 : i32, i32
  }
  func.func @transform_1(%arg0: i32) -> (i32, i32) {
    %c0_i32 = arith.constant 0 : i32
    %c0_i32_0 = arith.constant 0 : i32
    %c0_i32_1 = arith.constant 0 : i32
    return %c0_i32, %c0_i32_0 : i32, i32
  }
  func.func @transform_2(%arg0: i32) -> (i32, i32) {
    %c0_i32 = arith.constant 0 : i32
    %c0_i32_0 = arith.constant 0 : i32
    return %arg0, %c0_i32 : i32, i32
  }
}

module attributes {stable_mosaic.version = 11 : i64} {
  func.func @_mm_kernel(%arg0: i32, %arg1: memref<256x64xbf16, #tpu.memory_space<vmem>>, %arg2: memref<64x128xbf16, #tpu.memory_space<vmem>>, %arg3: memref<256x128xf32, #tpu.memory_space<vmem>>) attributes {dimension_semantics = [#tpu.dimension_semantics<parallel>], iteration_bounds = array<i64: 2>, scalar_prefetch = 0 : i64, scratch_operands = 0 : i64, tpu.core_type = #tpu.core_type<tc>, window_params = [{transform_indices = @transform_0, window_bounds = array<i64: 256, 64>}, {pipeline_mode = #tpu.pipeline_mode<synchronous>, transform_indices = @transform_1, window_bounds = array<i64: 64, 128>}, {transform_indices = @transform_2, window_bounds = array<i64: 256, 128>}]} {
    %c0 = arith.constant 0 : index
    %c0_0 = arith.constant 0 : index
    %0 = vector.load %arg1[%c0, %c0_0] : memref<256x64xbf16, #tpu.memory_space<vmem>>, vector<256x64xbf16>
    %c0_1 = arith.constant 0 : index
    %c0_2 = arith.constant 0 : index
    %1 = vector.load %arg2[%c0_1, %c0_2] : memref<64x128xbf16, #tpu.memory_space<vmem>>, vector<64x128xbf16>
    %cst = arith.constant dense<0.000000e+00> : vector<256x128xf32>
    %2 = tpu.matmul %0, %1, %cst {dimension_numbers = #tpu.dot_dimension_numbers<[1], [0], [0], [1], [0, 0, 1, 1], [], []>} : vector<256x64xbf16>, vector<64x128xbf16>, vector<256x128xf32> -> vector<256x128xf32>
    %c0_3 = arith.constant 0 : index
    %c0_4 = arith.constant 0 : index
    %3 = vector.load %arg3[%c0_3, %c0_4] : memref<256x128xf32, #tpu.memory_space<vmem>>, vector<256x128xf32>
    tpu.vector_store %arg3[%c0_3, %c0_4], %2 {strides = array<i32>} : memref<256x128xf32, #tpu.memory_space<vmem>>, vector<256x128xf32>,
    return
  }
  func.func @transform_0(%arg0: i32) -> (i32, i32) {
    %c0_i32 = arith.constant 0 : i32
    %c0_i32_0 = arith.constant 0 : i32
    return %arg0, %c0_i32 : i32, i32
  }
  func.func @transform_1(%arg0: i32) -> (i32, i32) {
    %c0_i32 = arith.constant 0 : i32
    %c0_i32_0 = arith.constant 0 : i32
    %c0_i32_1 = arith.constant 0 : i32
    return %c0_i32, %c0_i32_0 : i32, i32
  }
  func.func @transform_2(%arg0: i32) -> (i32, i32) {
    %c0_i32 = arith.constant 0 : i32
    %c0_i32_0 = arith.constant 0 : i32
    return %arg0, %c0_i32 : i32, i32
  }
}

module attributes {stable_mosaic.version = 11 : i64} {
  func.func @_mm_kernel(%arg0: i32, %arg1: memref<256x288xbf16, #tpu.memory_space<vmem>>, %arg2: memref<288x128xbf16, #tpu.memory_space<vmem>>, %arg3: memref<256x128xf32, #tpu.memory_space<vmem>>) attributes {dimension_semantics = [#tpu.dimension_semantics<parallel>], iteration_bounds = array<i64: 2>, scalar_prefetch = 0 : i64, scratch_operands = 0 : i64, tpu.core_type = #tpu.core_type<tc>, window_params = [{transform_indices = @transform_0, window_bounds = array<i64: 256, 288>}, {pipeline_mode = #tpu.pipeline_mode<synchronous>, transform_indices = @transform_1, window_bounds = array<i64: 288, 128>}, {transform_indices = @transform_2, window_bounds = array<i64: 256, 128>}]} {
    %c0 = arith.constant 0 : index
    %c0_0 = arith.constant 0 : index
    %0 = vector.load %arg1[%c0, %c0_0] : memref<256x288xbf16, #tpu.memory_space<vmem>>, vector<256x288xbf16>
    %c0_1 = arith.constant 0 : index
    %c0_2 = arith.constant 0 : index
    %1 = vector.load %arg2[%c0_1, %c0_2] : memref<288x128xbf16, #tpu.memory_space<vmem>>, vector<288x128xbf16>
    %cst = arith.constant dense<0.000000e+00> : vector<256x128xf32>
    %2 = tpu.matmul %0, %1, %cst {dimension_numbers = #tpu.dot_dimension_numbers<[1], [0], [0], [1], [0, 0, 1, 1], [], []>} : vector<256x288xbf16>, vector<288x128xbf16>, vector<256x128xf32> -> vector<256x128xf32>
    %c0_3 = arith.constant 0 : index
    %c0_4 = arith.constant 0 : index
    %3 = vector.load %arg3[%c0_3, %c0_4] : memref<256x128xf32, #tpu.memory_space<vmem>>, vector<256x128xf32>
    tpu.vector_store %arg3[%c0_3, %c0_4], %2 {strides = array<i32>} : memref<256x128xf32, #tpu.memory_space<vmem>>, vector<256x128xf32>,
    return
  }
  func.func @transform_0(%arg0: i32) -> (i32, i32) {
    %c0_i32 = arith.constant 0 : i32
    %c0_i32_0 = arith.constant 0 : i32
    return %arg0, %c0_i32 : i32, i32
  }
  func.func @transform_1(%arg0: i32) -> (i32, i32) {
    %c0_i32 = arith.constant 0 : i32
    %c0_i32_0 = arith.constant 0 : i32
    %c0_i32_1 = arith.constant 0 : i32
    return %c0_i32, %c0_i32_0 : i32, i32
  }
  func.func @transform_2(%arg0: i32) -> (i32, i32) {
    %c0_i32 = arith.constant 0 : i32
    %c0_i32_0 = arith.constant 0 : i32
    return %arg0, %c0_i32 : i32, i32
  }
}

module attributes {stable_mosaic.version = 11 : i64} {
  func.func @_mm_kernel(%arg0: i32, %arg1: memref<256x288xbf16, #tpu.memory_space<vmem>>, %arg2: memref<288x128xbf16, #tpu.memory_space<vmem>>, %arg3: memref<256x128xf32, #tpu.memory_space<vmem>>) attributes {dimension_semantics = [#tpu.dimension_semantics<parallel>], iteration_bounds = array<i64: 8>, scalar_prefetch = 0 : i64, scratch_operands = 0 : i64, tpu.core_type = #tpu.core_type<tc>, window_params = [{transform_indices = @transform_0, window_bounds = array<i64: 256, 288>}, {pipeline_mode = #tpu.pipeline_mode<synchronous>, transform_indices = @transform_1, window_bounds = array<i64: 288, 128>}, {transform_indices = @transform_2, window_bounds = array<i64: 256, 128>}]} {
    %c0 = arith.constant 0 : index
    %c0_0 = arith.constant 0 : index
    %0 = vector.load %arg1[%c0, %c0_0] : memref<256x288xbf16, #tpu.memory_space<vmem>>, vector<256x288xbf16>
    %c0_1 = arith.constant 0 : index
    %c0_2 = arith.constant 0 : index
    %1 = vector.load %arg2[%c0_1, %c0_2] : memref<288x128xbf16, #tpu.memory_space<vmem>>, vector<288x128xbf16>
    %cst = arith.constant dense<0.000000e+00> : vector<256x128xf32>
    %2 = tpu.matmul %0, %1, %cst {dimension_numbers = #tpu.dot_dimension_numbers<[1], [0], [0], [1], [0, 0, 1, 1], [], []>} : vector<256x288xbf16>, vector<288x128xbf16>, vector<256x128xf32> -> vector<256x128xf32>
    %c0_3 = arith.constant 0 : index
    %c0_4 = arith.constant 0 : index
    %3 = vector.load %arg3[%c0_3, %c0_4] : memref<256x128xf32, #tpu.memory_space<vmem>>, vector<256x128xf32>
    tpu.vector_store %arg3[%c0_3, %c0_4], %2 {strides = array<i32>} : memref<256x128xf32, #tpu.memory_space<vmem>>, vector<256x128xf32>,
    return
  }
  func.func @transform_0(%arg0: i32) -> (i32, i32) {
    %c0_i32 = arith.constant 0 : i32
    %c0_i32_0 = arith.constant 0 : i32
    return %arg0, %c0_i32 : i32, i32
  }
  func.func @transform_1(%arg0: i32) -> (i32, i32) {
    %c0_i32 = arith.constant 0 : i32
    %c0_i32_0 = arith.constant 0 : i32
    %c0_i32_1 = arith.constant 0 : i32
    return %c0_i32, %c0_i32_0 : i32, i32
  }
  func.func @transform_2(%arg0: i32) -> (i32, i32) {
    %c0_i32 = arith.constant 0 : i32
    %c0_i32_0 = arith.constant 0 : i32
    return %arg0, %c0_i32 : i32, i32
  }
}

</mosaic_0001>

<llo_original>
// kernel: network_forward.16
$region0: #{network_forward.16}
  #allocation0 [shape = 'u32[]', space=smem, size = 0x4, offset = 0x4, fixed_abs, tag = 'smem constant byte address 0x4 - core index']
  #allocation1 [shape = 'u32[144,128]{1,0:T(1,128)}', space=vmem, size = 0x12000, scoped, tag = 'internal scratch']
  %s0 = inlined_call_operand.vmem [shape: bf16[512,48], index: 0, kind: input, shape index: {}]
  %s1 = inlined_call_operand.vmem [shape: bf16[48,128], index: 1, kind: input, shape index: {}]
  %s2 = inlined_call_operand.vmem [shape: f32[512,128], index: 2, kind: output, shape index: {}]
  %s3 = sld [smem:[#allocation0]]
  $region41: #{network_forward.16} parent=0
    _
  %s5 = ssub.s32 1, %s3
  %s6 = scalar_select 0, %s5, %s3
  loop: start=0, step=1, limit=4
  $region2: #{network_forward.16} parent=0 // loop_pre_header
    _
  $region3: #{network_forward.16} parent=0 // loop_header
    %s8 = sphi 0, %s12
    %p9 = scmp.ge.s32.totalorder %s8, 4
    %s18 = sphi 0, %s20
    %s21 = sphi 0, %s18
    %s22 = sphi 0, %s21
    %s38 = sphi 0, %s22
    %s42 = sphi 0, %s42
    %s44 = sphi 0, %s42
    %s45 = sphi 0, %s44
    %s59 = sphi 0, %s45
    %s65 = sphi 0, %s67
    %s68 = sphi 0, %s65
    %s69 = sphi 0, %s68
    %s85 = sphi 0, %s69
  $region4: #{network_forward.16} parent=0 // loop_header_branch
    %11 = sbr.rel (%p9) target = $region8
  $region5: #{network_forward.16} parent=0 // loop_body
    %s13 = ssub.s32 %s8, 1
    %s14 = ssub.s32 %s8, 2
    %s15 = sadd.s32 %s8, 1
    %s16 = ssub.s32 %s8, %s15
    %p17 = scmp.eq.s32.totalorder %s16, 0
    %s19 = sadd.s32 %s18, 1
    %s20 = scalar_select %p17, %s18, %s19
    %p23 = pneg %p17
    %p24 = scmp.eq.s32.totalorder %s8, 1
    %p25 = por %p23, %p24
    %p26 = scmp.ne.s32.totalorder %s18, %s21
    %p27 = scmp.eq.s32.totalorder %s8, 0
    %p28 = por %p26, %p27
    %p29 = scmp.ne.s32.totalorder %s18, %s21
    %p30 = scmp.eq.s32.totalorder %s13, 1
    %p31 = por %p29, %p30
    %p32 = scmp.ne.s32.totalorder %s21, %s22
    %p33 = scmp.eq.s32.totalorder %s13, 0
    %p34 = por %p32, %p33
    %p35 = scmp.ne.s32.totalorder %s21, %s22
    %p36 = scmp.eq.s32.totalorder %s14, 1
    %p37 = por %p35, %p36
    %p39 = scmp.ne.s32.totalorder %s22, %s38
    %p40 = scmp.eq.s32.totalorder %s14, 0
    %p41 = por %p39, %p40
    %s43 = sadd.s32 %s42, 1
    %p46 = scmp.eq.s32.totalorder %s8, 1
    %p47 = scmp.ne.s32.totalorder %s42, %s44
    %p48 = scmp.eq.s32.totalorder %s8, 0
    %p49 = por %p47, %p48
    %p50 = scmp.ne.s32.totalorder %s42, %s44
    %p51 = scmp.eq.s32.totalorder %s13, 1
    %p52 = por %p50, %p51
    %p53 = scmp.ne.s32.totalorder %s44, %s45
    %p54 = scmp.eq.s32.totalorder %s13, 0
    %p55 = por %p53, %p54
    %p56 = scmp.ne.s32.totalorder %s44, %s45
    %p57 = scmp.eq.s32.totalorder %s14, 1
    %p58 = por %p56, %p57
    %p60 = scmp.ne.s32.totalorder %s45, %s59
    %p61 = scmp.eq.s32.totalorder %s14, 0
    %p62 = por %p60, %p61
    %s63 = ssub.s32 %s8, %s15
    %p64 = scmp.eq.s32.totalorder %s63, 0
    %s66 = sadd.s32 %s65, 1
    %s67 = scalar_select %p64, %s65, %s66
    %p70 = pneg %p64
    %p71 = scmp.eq.s32.totalorder %s8, 1
    %p72 = por %p70, %p71
    %p73 = scmp.ne.s32.totalorder %s65, %s68
    %p74 = scmp.eq.s32.totalorder %s8, 0
    %p75 = por %p73, %p74
    %p76 = scmp.ne.s32.totalorder %s65, %s68
    %p77 = scmp.eq.s32.totalorder %s13, 1
    %p78 = por %p76, %p77
    %p79 = scmp.ne.s32.totalorder %s68, %s69
    %p80 = scmp.eq.s32.totalorder %s13, 0
    %p81 = por %p79, %p80
    %p82 = scmp.ne.s32.totalorder %s68, %s69
    %p83 = scmp.eq.s32.totalorder %s14, 1
    %p84 = por %p82, %p83
    %p86 = scmp.ne.s32.totalorder %s69, %s85
    %p87 = scmp.eq.s32.totalorder %s14, 0
    %p88 = por %p86, %p87
    %p89 = scmp.le.s32.totalorder 1, %s8
    %p90 = scmp.lt.s32.totalorder %s8, 3
    %p91 = pnand %p89, %p90
    %p92 = pneg %p91
    // Predicated region
    $region9: #{network_forward.16} parent=5 // pred_check
      _
    $region10: #{network_forward.16} parent=5 // pred_check_branch
      %94 = sbr.rel (%p91) target = $region12
    $region11: #{network_forward.16} parent=5 // pred_region
      %s95 = ssub.s32 %s8, 1
      // Predicated region
      $region13: #{network_forward.16} parent=11 // pred_check
        %p96 = pneg %p55
      $region14: #{network_forward.16} parent=11 // pred_check_branch
        %98 = sbr.rel (%p96) target = $region16
      $region15: #{network_forward.16} parent=11 // pred_region
        _
      $region16: #{network_forward.16} parent=11 // pred_fallthru
        _
    $region12: #{network_forward.16} parent=5 // pred_fallthru
      _
    %p99 = scmp.lt.s32.totalorder %s8, 2
    // Predicated region
    $region17: #{network_forward.16} parent=5 // pred_check
      %p100 = pneg %p99
    $region18: #{network_forward.16} parent=5 // pred_check_branch
      %102 = sbr.rel (%p100) target = $region20
    $region19: #{network_forward.16} parent=5 // pred_region
      // Predicated region
      $region21: #{network_forward.16} parent=19 // pred_check
        %p103 = pneg %p28
      $region22: #{network_forward.16} parent=19 // pred_check_branch
        %105 = sbr.rel (%p103) target = $region24
      $region23: #{network_forward.16} parent=19 // pred_region
        %s106 = smul.u32 32, %s8
        %p107 = scmp.lt.s32.totalorder %s106, 63
        %s108 = scalar_select %p107, %s106, 63
        %s109 = smul.addr %s108, 4
        %s110 = scalar_lea.vmem %s0, %s109
        %s111 = smul.u32 32, %s8
      $region24: #{network_forward.16} parent=19 // pred_fallthru
        _
    $region20: #{network_forward.16} parent=5 // pred_fallthru
      _
    %p112 = scmp.le.s32.totalorder 1, %s8
    %p113 = scmp.lt.s32.totalorder %s8, 3
    %p114 = pnand %p112, %p113
    %p115 = pneg %p114
    // Predicated region
    $region25: #{network_forward.16} parent=5 // pred_check
      _
    $region26: #{network_forward.16} parent=5 // pred_check_branch
      %117 = sbr.rel (%p114) target = $region28
    $region27: #{network_forward.16} parent=5 // pred_region
      %s118 = ssub.s32 %s8, 1
      %s119 = smul.u32 32, %s13
      %p120 = scmp.lt.s32.totalorder %s119, 63
      %s121 = scalar_select %p120, %s119, 63
      %s122 = smul.addr %s121, 4
      %s123 = scalar_lea.vmem %s0, %s122
      %p124 = pneg %p34
      %p125 = pneg %p31
      %p126 = pneg %p55
      %p127 = pneg %p52
      %p128 = pneg %p81
      %p129 = pneg %p78
      %s130 = smul.u32 32, %s13
      %p131 = scmp.lt.s32.totalorder %s130, 63
      %s132 = scalar_select %p131, %s130, 63
      %s133 = smul.addr %s132, 8
      %s134 = scalar_lea.vmem %s2, %s133
      %s135 = smul.u32 32, %s13
      %p136 = scmp.lt.s32.totalorder %s135, 63
      %s137 = scalar_select %p136, %s135, 63
      %s138 = smul.addr %s137, 4
      %s139 = scalar_lea.vmem %s0, %s138
      %s140 = smul.u32 32, %s13
      %s141 = smul.u32 32, %s13
      %p142 = scmp.lt.s32.totalorder %s141, 63
      %s143 = scalar_select %p142, %s141, 63
      %s144 = smul.addr %s143, 8
      %s145 = scalar_lea.vmem %s2, %s144
      %s146 = smul.u32 32, %s13
      %v148 = vld [vmem:[%s139] sm:$0xf]
      %v149 = vld [vmem:[%s139 + $0x4] sm:$0xf]
      %v150 = vld [vmem:[%s139 + $0x8] sm:$0xf]
      %v151 = vld [vmem:[%s139 + $0xc] sm:$0xf]
      %v152 = vld [vmem:[%s139 + $0x10] sm:$0xf]
      %v153 = vld [vmem:[%s139 + $0x14] sm:$0xf]
      %v154 = vld [vmem:[%s139 + $0x18] sm:$0xf]
      %v155 = vld [vmem:[%s139 + $0x1c] sm:$0xf]
      %v156 = vld [vmem:[%s139 + $0x20] sm:$0xf]
      %v157 = vld [vmem:[%s139 + $0x24] sm:$0xf]
      %v158 = vld [vmem:[%s139 + $0x28] sm:$0xf]
      %v159 = vld [vmem:[%s139 + $0x2c] sm:$0xf]
      %v160 = vld [vmem:[%s139 + $0x30] sm:$0xf]
      %v161 = vld [vmem:[%s139 + $0x34] sm:$0xf]
      %v162 = vld [vmem:[%s139 + $0x38] sm:$0xf]
      %v163 = vld [vmem:[%s139 + $0x3c] sm:$0xf]
      %v164 = vld [vmem:[%s139 + $0x40] sm:$0xf]
      %v165 = vld [vmem:[%s139 + $0x44] sm:$0xf]
      %v166 = vld [vmem:[%s139 + $0x48] sm:$0xf]
      %v167 = vld [vmem:[%s139 + $0x4c] sm:$0xf]
      %v168 = vld [vmem:[%s139 + $0x50] sm:$0xf]
      %v169 = vld [vmem:[%s139 + $0x54] sm:$0xf]
      %v170 = vld [vmem:[%s139 + $0x58] sm:$0xf]
      %v171 = vld [vmem:[%s139 + $0x5c] sm:$0xf]
      %v172 = vld [vmem:[%s139 + $0x60] sm:$0xf]
      %v173 = vld [vmem:[%s139 + $0x64] sm:$0xf]
      %v174 = vld [vmem:[%s139 + $0x68] sm:$0xf]
      %v175 = vld [vmem:[%s139 + $0x6c] sm:$0xf]
      %v176 = vld [vmem:[%s139 + $0x70] sm:$0xf]
      %v177 = vld [vmem:[%s139 + $0x74] sm:$0xf]
      %v178 = vld [vmem:[%s139 + $0x78] sm:$0xf]
      %v179 = vld [vmem:[%s139 + $0x7c] sm:$0xf]
      %v180 = vld [vmem:[%s1] sm:$0xf]
      %v181 = vld [vmem:[%s1 + $0x4] sm:$0xf]
      %v182 = vld [vmem:[%s1 + $0x8] sm:$0xf]
      %v183 = vld [vmem:[%s1 + $0xc] sm:$0xf]
      %v184 = vld [vmem:[%s1 + $0x10] sm:$0xf]
      %v185 = vld [vmem:[%s1 + $0x14] sm:$0xf]
      %v218 = vunpack.c.l.b16 %v148
      %v219 = vunpack.c.l.b16 %v149
      %v220 = vunpack.c.l.b16 %v150
      %v221 = vunpack.c.l.b16 %v151
      %v222 = vunpack.c.l.b16 %v152
      %v223 = vunpack.c.l.b16 %v153
      %v224 = vunpack.c.l.b16 %v154
      %v225 = vunpack.c.l.b16 %v155
      %v226 = vunpack.c.l.b16 %v156
      %v227 = vunpack.c.l.b16 %v157
      %v228 = vunpack.c.l.b16 %v158
      %v229 = vunpack.c.l.b16 %v159
      %v230 = vunpack.c.l.b16 %v160
      %v231 = vunpack.c.l.b16 %v161
      %v232 = vunpack.c.l.b16 %v162
      %v233 = vunpack.c.l.b16 %v163
      %v234 = vunpack.c.l.b16 %v164
      %v235 = vunpack.c.l.b16 %v165
      %v236 = vunpack.c.l.b16 %v166
      %v237 = vunpack.c.l.b16 %v167
      %v238 = vunpack.c.l.b16 %v168
      %v239 = vunpack.c.l.b16 %v169
      %v240 = vunpack.c.l.b16 %v170
      %v241 = vunpack.c.l.b16 %v171
      %v242 = vunpack.c.l.b16 %v172
      %v243 = vunpack.c.l.b16 %v173
      %v244 = vunpack.c.l.b16 %v174
      %v245 = vunpack.c.l.b16 %v175
      %v246 = vunpack.c.l.b16 %v176
      %v247 = vunpack.c.l.b16 %v177
      %v248 = vunpack.c.l.b16 %v178
      %v249 = vunpack.c.l.b16 %v179
      %v250 = vpack.c.b16 %v219, %v218
      %v251 = vpack.c.b16 %v221, %v220
      %v252 = vpack.c.b16 %v223, %v222
      %v253 = vpack.c.b16 %v225, %v224
      %v254 = vpack.c.b16 %v227, %v226
      %v255 = vpack.c.b16 %v229, %v228
      %v256 = vpack.c.b16 %v231, %v230
      %v257 = vpack.c.b16 %v233, %v232
      %v258 = vpack.c.b16 %v235, %v234
      %v259 = vpack.c.b16 %v237, %v236
      %v260 = vpack.c.b16 %v239, %v238
      %v261 = vpack.c.b16 %v241, %v240
      %v262 = vpack.c.b16 %v243, %v242
      %v263 = vpack.c.b16 %v245, %v244
      %v264 = vpack.c.b16 %v247, %v246
      %v265 = vpack.c.b16 %v249, %v248
      %v272 = vunpack.c.l.b16 %v180
      %v273 = vunpack.c.l.b16 %v181
      %v274 = vunpack.c.l.b16 %v182
      %v275 = vunpack.c.l.b16 %v183
      %v276 = vunpack.c.l.b16 %v184
      %v277 = vunpack.c.l.b16 %v185
      %v278 = vpack.c.b16 %v273, %v272
      %v279 = vpack.c.b16 %v275, %v274
      %v280 = vpack.c.b16 %v277, %v276
      %vm284 = vcmask 392192
      %v286 = vsel %vm284, %v250, 0
      %v289 = vsel %vm284, %v251, 0
      %v292 = vsel %vm284, %v252, 0
      %v295 = vsel %vm284, %v253, 0
      %v298 = vsel %vm284, %v254, 0
      %v301 = vsel %vm284, %v255, 0
      %v304 = vsel %vm284, %v256, 0
      %v307 = vsel %vm284, %v257, 0
      %v310 = vsel %vm284, %v258, 0
      %v313 = vsel %vm284, %v259, 0
      %v316 = vsel %vm284, %v260, 0
      %v319 = vsel %vm284, %v261, 0
      %v322 = vsel %vm284, %v262, 0
      %v325 = vsel %vm284, %v263, 0
      %v328 = vsel %vm284, %v264, 0
      %v331 = vsel %vm284, %v265, 0
      %333 = vmatprep.subr.bf16.mxu0 0
      %334 = vmatpush1.bf16.msra.mxu0 %v278
      %335 = vmatprep.subr.bf16.mxu0 0
      %336 = vmatpush1.bf16.msra.mxu0 %v279
      %337 = vmatprep.subr.bf16.mxu0 0
      %338 = vmatpush1.bf16.msra.mxu0 %v280
      %339 = vmatprep.subr.bf16.mxu0 0
      %340 = vmatpush1.bf16.msra.mxu0 0
      %341 = vmatprep.subr.bf16.mxu0 0
      %342 = vmatpush1.bf16.msra.mxu0 0
      %343 = vmatprep.subr.bf16.mxu0 0
      %344 = vmatpush1.bf16.msra.mxu0 0
      %345 = vmatprep.subr.bf16.mxu0 0
      %346 = vmatpush1.bf16.msra.mxu0 0
      %347 = vmatprep.subr.bf16.mxu0 0
      %348 = vmatpush1.bf16.msra.mxu0 0
      %349 = vmatprep.subr.bf16.mxu0 0
      %350 = vmatpush1.bf16.msra.mxu0 0
      %351 = vmatprep.subr.bf16.mxu0 0
      %352 = vmatpush1.bf16.msra.mxu0 0
      %353 = vmatprep.subr.bf16.mxu0 0
      %354 = vmatpush1.bf16.msra.mxu0 0
      %355 = vmatprep.subr.bf16.mxu0 0
      %356 = vmatpush1.bf16.msra.mxu0 0
      %357 = vmatprep.subr.bf16.mxu0 0
      %358 = vmatpush1.bf16.msra.mxu0 0
      %359 = vmatprep.subr.bf16.mxu0 0
      %360 = vmatpush1.bf16.msra.mxu0 0
      %361 = vmatprep.subr.bf16.mxu0 0
      %362 = vmatpush1.bf16.msra.mxu0 0
      %363 = vmatprep.subr.bf16.mxu0 0
      %364 = vmatpush1.bf16.msra.mxu0 0
      %365 = vmatprep.mubr.bf16.mxu0 0
      %366 = vmatmul.mubr.bf16.gmra.mrb[0].mxu0 %v286
      %v367 = vpop.f32.mrb[0].mxu0
      %v368 = vadd.f32 0.0, %v367
      %v369 = vpop.f32.mrb[0].mxu0
      %v370 = vpop.f32.mrb[0].mxu0
      %v371 = vadd.f32 0.0, %v370
      %v372 = vpop.f32.mrb[0].mxu0
      %373 = vmatprep.mubr.bf16.mxu0 0
      %374 = vmatmul.mubr.bf16.gmra.mrb[0].mxu0 %v289
      %v375 = vpop.f32.mrb[0].mxu0
      %v376 = vadd.f32 0.0, %v375
      %v377 = vpop.f32.mrb[0].mxu0
      %v378 = vpop.f32.mrb[0].mxu0
      %v379 = vadd.f32 0.0, %v378
      %v380 = vpop.f32.mrb[0].mxu0
      %381 = vmatprep.mubr.bf16.mxu0 0
      %382 = vmatmul.mubr.bf16.gmra.mrb[0].mxu0 %v292
      %v383 = vpop.f32.mrb[0].mxu0
      %v384 = vadd.f32 0.0, %v383
      %v385 = vpop.f32.mrb[0].mxu0
      %v386 = vpop.f32.mrb[0].mxu0
      %v387 = vadd.f32 0.0, %v386
      %v388 = vpop.f32.mrb[0].mxu0
      %389 = vmatprep.mubr.bf16.mxu0 0
      %390 = vmatmul.mubr.bf16.gmra.mrb[0].mxu0 %v295
      %v391 = vpop.f32.mrb[0].mxu0
      %v392 = vadd.f32 0.0, %v391
      %v393 = vpop.f32.mrb[0].mxu0
      %v394 = vpop.f32.mrb[0].mxu0
      %v395 = vadd.f32 0.0, %v394
      %v396 = vpop.f32.mrb[0].mxu0
      %397 = vmatprep.mubr.bf16.mxu0 0
      %398 = vmatmul.mubr.bf16.gmra.mrb[0].mxu0 %v298
      %v399 = vpop.f32.mrb[0].mxu0
      %v400 = vadd.f32 0.0, %v399
      %v401 = vpop.f32.mrb[0].mxu0
      %v402 = vpop.f32.mrb[0].mxu0
      %v403 = vadd.f32 0.0, %v402
      %v404 = vpop.f32.mrb[0].mxu0
      %405 = vmatprep.mubr.bf16.mxu0 0
      %406 = vmatmul.mubr.bf16.gmra.mrb[0].mxu0 %v301
      %v407 = vpop.f32.mrb[0].mxu0
      %v408 = vadd.f32 0.0, %v407
      %v409 = vpop.f32.mrb[0].mxu0
      %v410 = vpop.f32.mrb[0].mxu0
      %v411 = vadd.f32 0.0, %v410
      %v412 = vpop.f32.mrb[0].mxu0
      %413 = vmatprep.mubr.bf16.mxu0 0
      %414 = vmatmul.mubr.bf16.gmra.mrb[0].mxu0 %v304
      %v415 = vpop.f32.mrb[0].mxu0
      %v416 = vadd.f32 0.0, %v415
      %v417 = vpop.f32.mrb[0].mxu0
      %v418 = vpop.f32.mrb[0].mxu0
      %v419 = vadd.f32 0.0, %v418
      %v420 = vpop.f32.mrb[0].mxu0
      %421 = vmatprep.mubr.bf16.mxu0 0
      %422 = vmatmul.mubr.bf16.gmra.mrb[0].mxu0 %v307
      %v423 = vpop.f32.mrb[0].mxu0
      %v424 = vadd.f32 0.0, %v423
      %v425 = vpop.f32.mrb[0].mxu0
      %v426 = vpop.f32.mrb[0].mxu0
      %v427 = vadd.f32 0.0, %v426
      %v428 = vpop.f32.mrb[0].mxu0
      %429 = vmatprep.mubr.bf16.mxu0 0
      %430 = vmatmul.mubr.bf16.gmra.mrb[0].mxu0 %v310
      %v431 = vpop.f32.mrb[0].mxu0
      %v432 = vadd.f32 0.0, %v431
      %v433 = vpop.f32.mrb[0].mxu0
      %v434 = vpop.f32.mrb[0].mxu0
      %v435 = vadd.f32 0.0, %v434
      %v436 = vpop.f32.mrb[0].mxu0
      %437 = vmatprep.mubr.bf16.mxu0 0
      %438 = vmatmul.mubr.bf16.gmra.mrb[0].mxu0 %v313
      %v439 = vpop.f32.mrb[0].mxu0
      %v440 = vadd.f32 0.0, %v439
      %v441 = vpop.f32.mrb[0].mxu0
      %v442 = vpop.f32.mrb[0].mxu0
      %v443 = vadd.f32 0.0, %v442
      %v444 = vpop.f32.mrb[0].mxu0
      %445 = vmatprep.mubr.bf16.mxu0 0
      %446 = vmatmul.mubr.bf16.gmra.mrb[0].mxu0 %v316
      %v447 = vpop.f32.mrb[0].mxu0
      %v448 = vadd.f32 0.0, %v447
      %v449 = vpop.f32.mrb[0].mxu0
      %v450 = vpop.f32.mrb[0].mxu0
      %v451 = vadd.f32 0.0, %v450
      %v452 = vpop.f32.mrb[0].mxu0
      %453 = vmatprep.mubr.bf16.mxu0 0
      %454 = vmatmul.mubr.bf16.gmra.mrb[0].mxu0 %v319
      %v455 = vpop.f32.mrb[0].mxu0
      %v456 = vadd.f32 0.0, %v455
      %v457 = vpop.f32.mrb[0].mxu0
      %v458 = vpop.f32.mrb[0].mxu0
      %v459 = vadd.f32 0.0, %v458
      %v460 = vpop.f32.mrb[0].mxu0
      %461 = vmatprep.mubr.bf16.mxu0 0
      %462 = vmatmul.mubr.bf16.gmra.mrb[0].mxu0 %v322
      %v463 = vpop.f32.mrb[0].mxu0
      %v464 = vadd.f32 0.0, %v463
      %v465 = vpop.f32.mrb[0].mxu0
      %v466 = vpop.f32.mrb[0].mxu0
      %v467 = vadd.f32 0.0, %v466
      %v468 = vpop.f32.mrb[0].mxu0
      %469 = vmatprep.mubr.bf16.mxu0 0
      %470 = vmatmul.mubr.bf16.gmra.mrb[0].mxu0 %v325
      %v471 = vpop.f32.mrb[0].mxu0
      %v472 = vadd.f32 0.0, %v471
      %v473 = vpop.f32.mrb[0].mxu0
      %v474 = vpop.f32.mrb[0].mxu0
      %v475 = vadd.f32 0.0, %v474
      %v476 = vpop.f32.mrb[0].mxu0
      %477 = vmatprep.mubr.bf16.mxu0 0
      %478 = vmatmul.mubr.bf16.gmra.mrb[0].mxu0 %v328
      %v479 = vpop.f32.mrb[0].mxu0
      %v480 = vadd.f32 0.0, %v479
      %v481 = vpop.f32.mrb[0].mxu0
      %v482 = vpop.f32.mrb[0].mxu0
      %v483 = vadd.f32 0.0, %v482
      %v484 = vpop.f32.mrb[0].mxu0
      %485 = vmatprep.mubr.bf16.mxu0 0
      %486 = vmatmul.mubr.bf16.gmra.mrb[0].mxu0 %v331
      %v487 = vpop.f32.mrb[0].mxu0
      %v488 = vadd.f32 0.0, %v487
      %v489 = vpop.f32.mrb[0].mxu0
      %v490 = vpop.f32.mrb[0].mxu0
      %v491 = vadd.f32 0.0, %v490
      %v492 = vpop.f32.mrb[0].mxu0
      %493 = vdwg.mxu0
      %494 = vst [vmem:[%s145] sm:$0xff] %v368
      %495 = vst [vmem:[%s145 + $0x8] sm:$0xff] %v371
      %496 = vst [vmem:[%s145 + $0x10] sm:$0xff] %v376
      %497 = vst [vmem:[%s145 + $0x18] sm:$0xff] %v379
      %498 = vst [vmem:[%s145 + $0x20] sm:$0xff] %v384
      %499 = vst [vmem:[%s145 + $0x28] sm:$0xff] %v387
      %500 = vst [vmem:[%s145 + $0x30] sm:$0xff] %v392
      %501 = vst [vmem:[%s145 + $0x38] sm:$0xff] %v395
      %502 = vst [vmem:[%s145 + $0x40] sm:$0xff] %v400
      %503 = vst [vmem:[%s145 + $0x48] sm:$0xff] %v403
      %504 = vst [vmem:[%s145 + $0x50] sm:$0xff] %v408
      %505 = vst [vmem:[%s145 + $0x58] sm:$0xff] %v411
      %506 = vst [vmem:[%s145 + $0x60] sm:$0xff] %v416
      %507 = vst [vmem:[%s145 + $0x68] sm:$0xff] %v419
      %508 = vst [vmem:[%s145 + $0x70] sm:$0xff] %v424
      %509 = vst [vmem:[%s145 + $0x78] sm:$0xff] %v427
      %510 = vst [vmem:[%s145 + $0x80] sm:$0xff] %v432
      %511 = vst [vmem:[%s145 + $0x88] sm:$0xff] %v435
      %512 = vst [vmem:[%s145 + $0x90] sm:$0xff] %v440
      %513 = vst [vmem:[%s145 + $0x98] sm:$0xff] %v443
      %514 = vst [vmem:[%s145 + $0xa0] sm:$0xff] %v448
      %515 = vst [vmem:[%s145 + $0xa8] sm:$0xff] %v451
      %516 = vst [vmem:[%s145 + $0xb0] sm:$0xff] %v456
      %517 = vst [vmem:[%s145 + $0xb8] sm:$0xff] %v459
      %518 = vst [vmem:[%s145 + $0xc0] sm:$0xff] %v464
      %519 = vst [vmem:[%s145 + $0xc8] sm:$0xff] %v467
      %520 = vst [vmem:[%s145 + $0xd0] sm:$0xff] %v472
      %521 = vst [vmem:[%s145 + $0xd8] sm:$0xff] %v475
      %522 = vst [vmem:[%s145 + $0xe0] sm:$0xff] %v480
      %523 = vst [vmem:[%s145 + $0xe8] sm:$0xff] %v483
      %524 = vst [vmem:[%s145 + $0xf0] sm:$0xff] %v488
      %525 = vst [vmem:[%s145 + $0xf8] sm:$0xff] %v491
      %s526 = smul.u32 32, %s13
      %p527 = scmp.lt.s32.totalorder %s526, 63
      %s528 = scalar_select %p527, %s526, 63
      %s529 = smul.addr %s528, 8
      %s530 = scalar_lea.vmem %s2, %s529
      // Predicated region
      $region29: #{network_forward.16} parent=27 // pred_check
        %p531 = pneg %p78
      $region30: #{network_forward.16} parent=27 // pred_check_branch
        %533 = sbr.rel (%p531) target = $region32
      $region31: #{network_forward.16} parent=27 // pred_region
        %s534 = smul.u32 32, %s13
      $region32: #{network_forward.16} parent=27 // pred_fallthru
        _
    $region28: #{network_forward.16} parent=5 // pred_fallthru
      _
    %p535 = scmp.le.s32.totalorder 2, %s8
    // Predicated region
    $region33: #{network_forward.16} parent=5 // pred_check
      %p536 = pneg %p535
    $region34: #{network_forward.16} parent=5 // pred_check_branch
      %538 = sbr.rel (%p536) target = $region36
    $region35: #{network_forward.16} parent=5 // pred_region
      %s539 = ssub.s32 %s8, 2
      // Predicated region
      $region37: #{network_forward.16} parent=35 // pred_check
        %p540 = pneg %p84
      $region38: #{network_forward.16} parent=35 // pred_check_branch
        %542 = sbr.rel (%p540) target = $region40
      $region39: #{network_forward.16} parent=35 // pred_region
        %s543 = smul.u32 32, %s14
        %p544 = scmp.lt.s32.totalorder %s543, 63
        %s545 = scalar_select %p544, %s543, 63
        %s546 = smul.addr %s545, 8
        %s547 = scalar_lea.vmem %s2, %s546
      $region40: #{network_forward.16} parent=35 // pred_fallthru
        _
    $region36: #{network_forward.16} parent=5 // pred_fallthru
      _
  $region6: #{network_forward.16} parent=0 // loop_footer
    %s12 = sadd.s32 1, %s8
  $region7: #{network_forward.16} parent=0 // loop_footer_branch
    %7 = sbr.rel target = $region3
  $region8: #{network_forward.16} parent=0 // loop_exit
    _

// kernel: network_forward.15
$region0: #{network_forward.15}
  #allocation0 [shape = 'u32[]', space=smem, size = 0x4, offset = 0x4, fixed_abs, tag = 'smem constant byte address 0x4 - core index']
  #allocation1 [shape = 'u32[144,128]{1,0:T(1,128)}', space=vmem, size = 0x12000, scoped, tag = 'internal scratch']
  %s0 = inlined_call_operand.vmem [shape: bf16[512,32], index: 0, kind: input, shape index: {}]
  %s1 = inlined_call_operand.vmem [shape: bf16[32,128], index: 1, kind: input, shape index: {}]
  %s2 = inlined_call_operand.vmem [shape: f32[512,128], index: 2, kind: output, shape index: {}]
  %s3 = sld [smem:[#allocation0]]
  $region41: #{network_forward.15} parent=0
    _
  %s5 = ssub.s32 1, %s3
  %s6 = scalar_select 0, %s5, %s3
  loop: start=0, step=1, limit=4
  $region2: #{network_forward.15} parent=0 // loop_pre_header
    _
  $region3: #{network_forward.15} parent=0 // loop_header
    %s8 = sphi 0, %s12
    %p9 = scmp.ge.s32.totalorder %s8, 4
    %s18 = sphi 0, %s20
    %s21 = sphi 0, %s18
    %s22 = sphi 0, %s21
    %s38 = sphi 0, %s22
    %s42 = sphi 0, %s42
    %s44 = sphi 0, %s42
    %s45 = sphi 0, %s44
    %s59 = sphi 0, %s45
    %s65 = sphi 0, %s67
    %s68 = sphi 0, %s65
    %s69 = sphi 0, %s68
    %s85 = sphi 0, %s69
  $region4: #{network_forward.15} parent=0 // loop_header_branch
    %11 = sbr.rel (%p9) target = $region8
  $region5: #{network_forward.15} parent=0 // loop_body
    %s13 = ssub.s32 %s8, 1
    %s14 = ssub.s32 %s8, 2
    %s15 = sadd.s32 %s8, 1
    %s16 = ssub.s32 %s8, %s15
    %p17 = scmp.eq.s32.totalorder %s16, 0
    %s19 = sadd.s32 %s18, 1
    %s20 = scalar_select %p17, %s18, %s19
    %p23 = pneg %p17
    %p24 = scmp.eq.s32.totalorder %s8, 1
    %p25 = por %p23, %p24
    %p26 = scmp.ne.s32.totalorder %s18, %s21
    %p27 = scmp.eq.s32.totalorder %s8, 0
    %p28 = por %p26, %p27
    %p29 = scmp.ne.s32.totalorder %s18, %s21
    %p30 = scmp.eq.s32.totalorder %s13, 1
    %p31 = por %p29, %p30
    %p32 = scmp.ne.s32.totalorder %s21, %s22
    %p33 = scmp.eq.s32.totalorder %s13, 0
    %p34 = por %p32, %p33
    %p35 = scmp.ne.s32.totalorder %s21, %s22
    %p36 = scmp.eq.s32.totalorder %s14, 1
    %p37 = por %p35, %p36
    %p39 = scmp.ne.s32.totalorder %s22, %s38
    %p40 = scmp.eq.s32.totalorder %s14, 0
    %p41 = por %p39, %p40
    %s43 = sadd.s32 %s42, 1
    %p46 = scmp.eq.s32.totalorder %s8, 1
    %p47 = scmp.ne.s32.totalorder %s42, %s44
    %p48 = scmp.eq.s32.totalorder %s8, 0
    %p49 = por %p47, %p48
    %p50 = scmp.ne.s32.totalorder %s42, %s44
    %p51 = scmp.eq.s32.totalorder %s13, 1
    %p52 = por %p50, %p51
    %p53 = scmp.ne.s32.totalorder %s44, %s45
    %p54 = scmp.eq.s32.totalorder %s13, 0
    %p55 = por %p53, %p54
    %p56 = scmp.ne.s32.totalorder %s44, %s45
    %p57 = scmp.eq.s32.totalorder %s14, 1
    %p58 = por %p56, %p57
    %p60 = scmp.ne.s32.totalorder %s45, %s59
    %p61 = scmp.eq.s32.totalorder %s14, 0
    %p62 = por %p60, %p61
    %s63 = ssub.s32 %s8, %s15
    %p64 = scmp.eq.s32.totalorder %s63, 0
    %s66 = sadd.s32 %s65, 1
    %s67 = scalar_select %p64, %s65, %s66
    %p70 = pneg %p64
    %p71 = scmp.eq.s32.totalorder %s8, 1
    %p72 = por %p70, %p71
    %p73 = scmp.ne.s32.totalorder %s65, %s68
    %p74 = scmp.eq.s32.totalorder %s8, 0
    %p75 = por %p73, %p74
    %p76 = scmp.ne.s32.totalorder %s65, %s68
    %p77 = scmp.eq.s32.totalorder %s13, 1
    %p78 = por %p76, %p77
    %p79 = scmp.ne.s32.totalorder %s68, %s69
    %p80 = scmp.eq.s32.totalorder %s13, 0
    %p81 = por %p79, %p80
    %p82 = scmp.ne.s32.totalorder %s68, %s69
    %p83 = scmp.eq.s32.totalorder %s14, 1
    %p84 = por %p82, %p83
    %p86 = scmp.ne.s32.totalorder %s69, %s85
    %p87 = scmp.eq.s32.totalorder %s14, 0
    %p88 = por %p86, %p87
    %p89 = scmp.le.s32.totalorder 1, %s8
    %p90 = scmp.lt.s32.totalorder %s8, 3
    %p91 = pnand %p89, %p90
    %p92 = pneg %p91
    // Predicated region
    $region9: #{network_forward.15} parent=5 // pred_check
      _
    $region10: #{network_forward.15} parent=5 // pred_check_branch
      %94 = sbr.rel (%p91) target = $region12
    $region11: #{network_forward.15} parent=5 // pred_region
      %s95 = ssub.s32 %s8, 1
      // Predicated region
      $region13: #{network_forward.15} parent=11 // pred_check
        %p96 = pneg %p55
      $region14: #{network_forward.15} parent=11 // pred_check_branch
        %98 = sbr.rel (%p96) target = $region16
      $region15: #{network_forward.15} parent=11 // pred_region
        _
      $region16: #{network_forward.15} parent=11 // pred_fallthru
        _
    $region12: #{network_forward.15} parent=5 // pred_fallthru
      _
    %p99 = scmp.lt.s32.totalorder %s8, 2
    // Predicated region
    $region17: #{network_forward.15} parent=5 // pred_check
      %p100 = pneg %p99
    $region18: #{network_forward.15} parent=5 // pred_check_branch
      %102 = sbr.rel (%p100) target = $region20
    $region19: #{network_forward.15} parent=5 // pred_region
      // Predicated region
      $region21: #{network_forward.15} parent=19 // pred_check
        %p103 = pneg %p28
      $region22: #{network_forward.15} parent=19 // pred_check_branch
        %105 = sbr.rel (%p103) target = $region24
      $region23: #{network_forward.15} parent=19 // pred_region
        %s106 = smul.u32 32, %s8
        %p107 = scmp.lt.s32.totalorder %s106, 63
        %s108 = scalar_select %p107, %s106, 63
        %s109 = smul.addr %s108, 4
        %s110 = scalar_lea.vmem %s0, %s109
        %s111 = smul.u32 32, %s8
      $region24: #{network_forward.15} parent=19 // pred_fallthru
        _
    $region20: #{network_forward.15} parent=5 // pred_fallthru
      _
    %p112 = scmp.le.s32.totalorder 1, %s8
    %p113 = scmp.lt.s32.totalorder %s8, 3
    %p114 = pnand %p112, %p113
    %p115 = pneg %p114
    // Predicated region
    $region25: #{network_forward.15} parent=5 // pred_check
      _
    $region26: #{network_forward.15} parent=5 // pred_check_branch
      %117 = sbr.rel (%p114) target = $region28
    $region27: #{network_forward.15} parent=5 // pred_region
      %s118 = ssub.s32 %s8, 1
      %s119 = smul.u32 32, %s13
      %p120 = scmp.lt.s32.totalorder %s119, 63
      %s121 = scalar_select %p120, %s119, 63
      %s122 = smul.addr %s121, 4
      %s123 = scalar_lea.vmem %s0, %s122
      %p124 = pneg %p34
      %p125 = pneg %p31
      %p126 = pneg %p55
      %p127 = pneg %p52
      %p128 = pneg %p81
      %p129 = pneg %p78
      %s130 = smul.u32 32, %s13
      %p131 = scmp.lt.s32.totalorder %s130, 63
      %s132 = scalar_select %p131, %s130, 63
      %s133 = smul.addr %s132, 8
      %s134 = scalar_lea.vmem %s2, %s133
      %s135 = smul.u32 32, %s13
      %p136 = scmp.lt.s32.totalorder %s135, 63
      %s137 = scalar_select %p136, %s135, 63
      %s138 = smul.addr %s137, 4
      %s139 = scalar_lea.vmem %s0, %s138
      %s140 = smul.u32 32, %s13
      %s141 = smul.u32 32, %s13
      %p142 = scmp.lt.s32.totalorder %s141, 63
      %s143 = scalar_select %p142, %s141, 63
      %s144 = smul.addr %s143, 8
      %s145 = scalar_lea.vmem %s2, %s144
      %s146 = smul.u32 32, %s13
      %v148 = vld [vmem:[%s139] sm:$0xf]
      %v149 = vld [vmem:[%s139 + $0x4] sm:$0xf]
      %v150 = vld [vmem:[%s139 + $0x8] sm:$0xf]
      %v151 = vld [vmem:[%s139 + $0xc] sm:$0xf]
      %v152 = vld [vmem:[%s139 + $0x10] sm:$0xf]
      %v153 = vld [vmem:[%s139 + $0x14] sm:$0xf]
      %v154 = vld [vmem:[%s139 + $0x18] sm:$0xf]
      %v155 = vld [vmem:[%s139 + $0x1c] sm:$0xf]
      %v156 = vld [vmem:[%s139 + $0x20] sm:$0xf]
      %v157 = vld [vmem:[%s139 + $0x24] sm:$0xf]
      %v158 = vld [vmem:[%s139 + $0x28] sm:$0xf]
      %v159 = vld [vmem:[%s139 + $0x2c] sm:$0xf]
      %v160 = vld [vmem:[%s139 + $0x30] sm:$0xf]
      %v161 = vld [vmem:[%s139 + $0x34] sm:$0xf]
      %v162 = vld [vmem:[%s139 + $0x38] sm:$0xf]
      %v163 = vld [vmem:[%s139 + $0x3c] sm:$0xf]
      %v164 = vld [vmem:[%s139 + $0x40] sm:$0xf]
      %v165 = vld [vmem:[%s139 + $0x44] sm:$0xf]
      %v166 = vld [vmem:[%s139 + $0x48] sm:$0xf]
      %v167 = vld [vmem:[%s139 + $0x4c] sm:$0xf]
      %v168 = vld [vmem:[%s139 + $0x50] sm:$0xf]
      %v169 = vld [vmem:[%s139 + $0x54] sm:$0xf]
      %v170 = vld [vmem:[%s139 + $0x58] sm:$0xf]
      %v171 = vld [vmem:[%s139 + $0x5c] sm:$0xf]
      %v172 = vld [vmem:[%s139 + $0x60] sm:$0xf]
      %v173 = vld [vmem:[%s139 + $0x64] sm:$0xf]
      %v174 = vld [vmem:[%s139 + $0x68] sm:$0xf]
      %v175 = vld [vmem:[%s139 + $0x6c] sm:$0xf]
      %v176 = vld [vmem:[%s139 + $0x70] sm:$0xf]
      %v177 = vld [vmem:[%s139 + $0x74] sm:$0xf]
      %v178 = vld [vmem:[%s139 + $0x78] sm:$0xf]
      %v179 = vld [vmem:[%s139 + $0x7c] sm:$0xf]
      %v180 = vld [vmem:[%s1] sm:$0xf]
      %v181 = vld [vmem:[%s1 + $0x4] sm:$0xf]
      %v182 = vld [vmem:[%s1 + $0x8] sm:$0xf]
      %v183 = vld [vmem:[%s1 + $0xc] sm:$0xf]
      %v216 = vunpack.c.l.b16 %v148
      %v217 = vunpack.c.l.b16 %v149
      %v218 = vunpack.c.l.b16 %v150
      %v219 = vunpack.c.l.b16 %v151
      %v220 = vunpack.c.l.b16 %v152
      %v221 = vunpack.c.l.b16 %v153
      %v222 = vunpack.c.l.b16 %v154
      %v223 = vunpack.c.l.b16 %v155
      %v224 = vunpack.c.l.b16 %v156
      %v225 = vunpack.c.l.b16 %v157
      %v226 = vunpack.c.l.b16 %v158
      %v227 = vunpack.c.l.b16 %v159
      %v228 = vunpack.c.l.b16 %v160
      %v229 = vunpack.c.l.b16 %v161
      %v230 = vunpack.c.l.b16 %v162
      %v231 = vunpack.c.l.b16 %v163
      %v232 = vunpack.c.l.b16 %v164
      %v233 = vunpack.c.l.b16 %v165
      %v234 = vunpack.c.l.b16 %v166
      %v235 = vunpack.c.l.b16 %v167
      %v236 = vunpack.c.l.b16 %v168
      %v237 = vunpack.c.l.b16 %v169
      %v238 = vunpack.c.l.b16 %v170
      %v239 = vunpack.c.l.b16 %v171
      %v240 = vunpack.c.l.b16 %v172
      %v241 = vunpack.c.l.b16 %v173
      %v242 = vunpack.c.l.b16 %v174
      %v243 = vunpack.c.l.b16 %v175
      %v244 = vunpack.c.l.b16 %v176
      %v245 = vunpack.c.l.b16 %v177
      %v246 = vunpack.c.l.b16 %v178
      %v247 = vunpack.c.l.b16 %v179
      %v248 = vpack.c.b16 %v217, %v216
      %v249 = vpack.c.b16 %v219, %v218
      %v250 = vpack.c.b16 %v221, %v220
      %v251 = vpack.c.b16 %v223, %v222
      %v252 = vpack.c.b16 %v225, %v224
      %v253 = vpack.c.b16 %v227, %v226
      %v254 = vpack.c.b16 %v229, %v228
      %v255 = vpack.c.b16 %v231, %v230
      %v256 = vpack.c.b16 %v233, %v232
      %v257 = vpack.c.b16 %v235, %v234
      %v258 = vpack.c.b16 %v237, %v236
      %v259 = vpack.c.b16 %v239, %v238
      %v260 = vpack.c.b16 %v241, %v240
      %v261 = vpack.c.b16 %v243, %v242
      %v262 = vpack.c.b16 %v245, %v244
      %v263 = vpack.c.b16 %v247, %v246
      %v268 = vunpack.c.l.b16 %v180
      %v269 = vunpack.c.l.b16 %v181
      %v270 = vunpack.c.l.b16 %v182
      %v271 = vunpack.c.l.b16 %v183
      %v272 = vpack.c.b16 %v269, %v268
      %v273 = vpack.c.b16 %v271, %v270
      %vm276 = vcmask 261120
      %v278 = vsel %vm276, %v248, 0
      %v281 = vsel %vm276, %v249, 0
      %v284 = vsel %vm276, %v250, 0
      %v287 = vsel %vm276, %v251, 0
      %v290 = vsel %vm276, %v252, 0
      %v293 = vsel %vm276, %v253, 0
      %v296 = vsel %vm276, %v254, 0
      %v299 = vsel %vm276, %v255, 0
      %v302 = vsel %vm276, %v256, 0
      %v305 = vsel %vm276, %v257, 0
      %v308 = vsel %vm276, %v258, 0
      %v311 = vsel %vm276, %v259, 0
      %v314 = vsel %vm276, %v260, 0
      %v317 = vsel %vm276, %v261, 0
      %v320 = vsel %vm276, %v262, 0
      %v323 = vsel %vm276, %v263, 0
      %325 = vmatprep.subr.bf16.mxu0 0
      %326 = vmatpush1.bf16.msra.mxu0 %v272
      %327 = vmatprep.subr.bf16.mxu0 0
      %328 = vmatpush1.bf16.msra.mxu0 %v273
      %329 = vmatprep.subr.bf16.mxu0 0
      %330 = vmatpush1.bf16.msra.mxu0 0
      %331 = vmatprep.subr.bf16.mxu0 0
      %332 = vmatpush1.bf16.msra.mxu0 0
      %333 = vmatprep.subr.bf16.mxu0 0
      %334 = vmatpush1.bf16.msra.mxu0 0
      %335 = vmatprep.subr.bf16.mxu0 0
      %336 = vmatpush1.bf16.msra.mxu0 0
      %337 = vmatprep.subr.bf16.mxu0 0
      %338 = vmatpush1.bf16.msra.mxu0 0
      %339 = vmatprep.subr.bf16.mxu0 0
      %340 = vmatpush1.bf16.msra.mxu0 0
      %341 = vmatprep.subr.bf16.mxu0 0
      %342 = vmatpush1.bf16.msra.mxu0 0
      %343 = vmatprep.subr.bf16.mxu0 0
      %344 = vmatpush1.bf16.msra.mxu0 0
      %345 = vmatprep.subr.bf16.mxu0 0
      %346 = vmatpush1.bf16.msra.mxu0 0
      %347 = vmatprep.subr.bf16.mxu0 0
      %348 = vmatpush1.bf16.msra.mxu0 0
      %349 = vmatprep.subr.bf16.mxu0 0
      %350 = vmatpush1.bf16.msra.mxu0 0
      %351 = vmatprep.subr.bf16.mxu0 0
      %352 = vmatpush1.bf16.msra.mxu0 0
      %353 = vmatprep.subr.bf16.mxu0 0
      %354 = vmatpush1.bf16.msra.mxu0 0
      %355 = vmatprep.subr.bf16.mxu0 0
      %356 = vmatpush1.bf16.msra.mxu0 0
      %357 = vmatprep.mubr.bf16.mxu0 0
      %358 = vmatmul.mubr.bf16.gmra.mrb[0].mxu0 %v278
      %v359 = vpop.f32.mrb[0].mxu0
      %v360 = vadd.f32 0.0, %v359
      %v361 = vpop.f32.mrb[0].mxu0
      %v362 = vpop.f32.mrb[0].mxu0
      %v363 = vadd.f32 0.0, %v362
      %v364 = vpop.f32.mrb[0].mxu0
      %365 = vmatprep.mubr.bf16.mxu0 0
      %366 = vmatmul.mubr.bf16.gmra.mrb[0].mxu0 %v281
      %v367 = vpop.f32.mrb[0].mxu0
      %v368 = vadd.f32 0.0, %v367
      %v369 = vpop.f32.mrb[0].mxu0
      %v370 = vpop.f32.mrb[0].mxu0
      %v371 = vadd.f32 0.0, %v370
      %v372 = vpop.f32.mrb[0].mxu0
      %373 = vmatprep.mubr.bf16.mxu0 0
      %374 = vmatmul.mubr.bf16.gmra.mrb[0].mxu0 %v284
      %v375 = vpop.f32.mrb[0].mxu0
      %v376 = vadd.f32 0.0, %v375
      %v377 = vpop.f32.mrb[0].mxu0
      %v378 = vpop.f32.mrb[0].mxu0
      %v379 = vadd.f32 0.0, %v378
      %v380 = vpop.f32.mrb[0].mxu0
      %381 = vmatprep.mubr.bf16.mxu0 0
      %382 = vmatmul.mubr.bf16.gmra.mrb[0].mxu0 %v287
      %v383 = vpop.f32.mrb[0].mxu0
      %v384 = vadd.f32 0.0, %v383
      %v385 = vpop.f32.mrb[0].mxu0
      %v386 = vpop.f32.mrb[0].mxu0
      %v387 = vadd.f32 0.0, %v386
      %v388 = vpop.f32.mrb[0].mxu0
      %389 = vmatprep.mubr.bf16.mxu0 0
      %390 = vmatmul.mubr.bf16.gmra.mrb[0].mxu0 %v290
      %v391 = vpop.f32.mrb[0].mxu0
      %v392 = vadd.f32 0.0, %v391
      %v393 = vpop.f32.mrb[0].mxu0
      %v394 = vpop.f32.mrb[0].mxu0
      %v395 = vadd.f32 0.0, %v394
      %v396 = vpop.f32.mrb[0].mxu0
      %397 = vmatprep.mubr.bf16.mxu0 0
      %398 = vmatmul.mubr.bf16.gmra.mrb[0].mxu0 %v293
      %v399 = vpop.f32.mrb[0].mxu0
      %v400 = vadd.f32 0.0, %v399
      %v401 = vpop.f32.mrb[0].mxu0
      %v402 = vpop.f32.mrb[0].mxu0
      %v403 = vadd.f32 0.0, %v402
      %v404 = vpop.f32.mrb[0].mxu0
      %405 = vmatprep.mubr.bf16.mxu0 0
      %406 = vmatmul.mubr.bf16.gmra.mrb[0].mxu0 %v296
      %v407 = vpop.f32.mrb[0].mxu0
      %v408 = vadd.f32 0.0, %v407
      %v409 = vpop.f32.mrb[0].mxu0
      %v410 = vpop.f32.mrb[0].mxu0
      %v411 = vadd.f32 0.0, %v410
      %v412 = vpop.f32.mrb[0].mxu0
      %413 = vmatprep.mubr.bf16.mxu0 0
      %414 = vmatmul.mubr.bf16.gmra.mrb[0].mxu0 %v299
      %v415 = vpop.f32.mrb[0].mxu0
      %v416 = vadd.f32 0.0, %v415
      %v417 = vpop.f32.mrb[0].mxu0
      %v418 = vpop.f32.mrb[0].mxu0
      %v419 = vadd.f32 0.0, %v418
      %v420 = vpop.f32.mrb[0].mxu0
      %421 = vmatprep.mubr.bf16.mxu0 0
      %422 = vmatmul.mubr.bf16.gmra.mrb[0].mxu0 %v302
      %v423 = vpop.f32.mrb[0].mxu0
      %v424 = vadd.f32 0.0, %v423
      %v425 = vpop.f32.mrb[0].mxu0
      %v426 = vpop.f32.mrb[0].mxu0
      %v427 = vadd.f32 0.0, %v426
      %v428 = vpop.f32.mrb[0].mxu0
      %429 = vmatprep.mubr.bf16.mxu0 0
      %430 = vmatmul.mubr.bf16.gmra.mrb[0].mxu0 %v305
      %v431 = vpop.f32.mrb[0].mxu0
      %v432 = vadd.f32 0.0, %v431
      %v433 = vpop.f32.mrb[0].mxu0
      %v434 = vpop.f32.mrb[0].mxu0
      %v435 = vadd.f32 0.0, %v434
      %v436 = vpop.f32.mrb[0].mxu0
      %437 = vmatprep.mubr.bf16.mxu0 0
      %438 = vmatmul.mubr.bf16.gmra.mrb[0].mxu0 %v308
      %v439 = vpop.f32.mrb[0].mxu0
      %v440 = vadd.f32 0.0, %v439
      %v441 = vpop.f32.mrb[0].mxu0
      %v442 = vpop.f32.mrb[0].mxu0
      %v443 = vadd.f32 0.0, %v442
      %v444 = vpop.f32.mrb[0].mxu0
      %445 = vmatprep.mubr.bf16.mxu0 0
      %446 = vmatmul.mubr.bf16.gmra.mrb[0].mxu0 %v311
      %v447 = vpop.f32.mrb[0].mxu0
      %v448 = vadd.f32 0.0, %v447
      %v449 = vpop.f32.mrb[0].mxu0
      %v450 = vpop.f32.mrb[0].mxu0
      %v451 = vadd.f32 0.0, %v450
      %v452 = vpop.f32.mrb[0].mxu0
      %453 = vmatprep.mubr.bf16.mxu0 0
      %454 = vmatmul.mubr.bf16.gmra.mrb[0].mxu0 %v314
      %v455 = vpop.f32.mrb[0].mxu0
      %v456 = vadd.f32 0.0, %v455
      %v457 = vpop.f32.mrb[0].mxu0
      %v458 = vpop.f32.mrb[0].mxu0
      %v459 = vadd.f32 0.0, %v458
      %v460 = vpop.f32.mrb[0].mxu0
      %461 = vmatprep.mubr.bf16.mxu0 0
      %462 = vmatmul.mubr.bf16.gmra.mrb[0].mxu0 %v317
      %v463 = vpop.f32.mrb[0].mxu0
      %v464 = vadd.f32 0.0, %v463
      %v465 = vpop.f32.mrb[0].mxu0
      %v466 = vpop.f32.mrb[0].mxu0
      %v467 = vadd.f32 0.0, %v466
      %v468 = vpop.f32.mrb[0].mxu0
      %469 = vmatprep.mubr.bf16.mxu0 0
      %470 = vmatmul.mubr.bf16.gmra.mrb[0].mxu0 %v320
      %v471 = vpop.f32.mrb[0].mxu0
      %v472 = vadd.f32 0.0, %v471
      %v473 = vpop.f32.mrb[0].mxu0
      %v474 = vpop.f32.mrb[0].mxu0
      %v475 = vadd.f32 0.0, %v474
      %v476 = vpop.f32.mrb[0].mxu0
      %477 = vmatprep.mubr.bf16.mxu0 0
      %478 = vmatmul.mubr.bf16.gmra.mrb[0].mxu0 %v323
      %v479 = vpop.f32.mrb[0].mxu0
      %v480 = vadd.f32 0.0, %v479
      %v481 = vpop.f32.mrb[0].mxu0
      %v482 = vpop.f32.mrb[0].mxu0
      %v483 = vadd.f32 0.0, %v482
      %v484 = vpop.f32.mrb[0].mxu0
      %485 = vdwg.mxu0
      %486 = vst [vmem:[%s145] sm:$0xff] %v360
      %487 = vst [vmem:[%s145 + $0x8] sm:$0xff] %v363
      %488 = vst [vmem:[%s145 + $0x10] sm:$0xff] %v368
      %489 = vst [vmem:[%s145 + $0x18] sm:$0xff] %v371
      %490 = vst [vmem:[%s145 + $0x20] sm:$0xff] %v376
      %491 = vst [vmem:[%s145 + $0x28] sm:$0xff] %v379
      %492 = vst [vmem:[%s145 + $0x30] sm:$0xff] %v384
      %493 = vst [vmem:[%s145 + $0x38] sm:$0xff] %v387
      %494 = vst [vmem:[%s145 + $0x40] sm:$0xff] %v392
      %495 = vst [vmem:[%s145 + $0x48] sm:$0xff] %v395
      %496 = vst [vmem:[%s145 + $0x50] sm:$0xff] %v400
      %497 = vst [vmem:[%s145 + $0x58] sm:$0xff] %v403
      %498 = vst [vmem:[%s145 + $0x60] sm:$0xff] %v408
      %499 = vst [vmem:[%s145 + $0x68] sm:$0xff] %v411
      %500 = vst [vmem:[%s145 + $0x70] sm:$0xff] %v416
      %501 = vst [vmem:[%s145 + $0x78] sm:$0xff] %v419
      %502 = vst [vmem:[%s145 + $0x80] sm:$0xff] %v424
      %503 = vst [vmem:[%s145 + $0x88] sm:$0xff] %v427
      %504 = vst [vmem:[%s145 + $0x90] sm:$0xff] %v432
      %505 = vst [vmem:[%s145 + $0x98] sm:$0xff] %v435
      %506 = vst [vmem:[%s145 + $0xa0] sm:$0xff] %v440
      %507 = vst [vmem:[%s145 + $0xa8] sm:$0xff] %v443
      %508 = vst [vmem:[%s145 + $0xb0] sm:$0xff] %v448
      %509 = vst [vmem:[%s145 + $0xb8] sm:$0xff] %v451
      %510 = vst [vmem:[%s145 + $0xc0] sm:$0xff] %v456
      %511 = vst [vmem:[%s145 + $0xc8] sm:$0xff] %v459
      %512 = vst [vmem:[%s145 + $0xd0] sm:$0xff] %v464
      %513 = vst [vmem:[%s145 + $0xd8] sm:$0xff] %v467
      %514 = vst [vmem:[%s145 + $0xe0] sm:$0xff] %v472
      %515 = vst [vmem:[%s145 + $0xe8] sm:$0xff] %v475
      %516 = vst [vmem:[%s145 + $0xf0] sm:$0xff] %v480
      %517 = vst [vmem:[%s145 + $0xf8] sm:$0xff] %v483
      %s518 = smul.u32 32, %s13
      %p519 = scmp.lt.s32.totalorder %s518, 63
      %s520 = scalar_select %p519, %s518, 63
      %s521 = smul.addr %s520, 8
      %s522 = scalar_lea.vmem %s2, %s521
      // Predicated region
      $region29: #{network_forward.15} parent=27 // pred_check
        %p523 = pneg %p78
      $region30: #{network_forward.15} parent=27 // pred_check_branch
        %525 = sbr.rel (%p523) target = $region32
      $region31: #{network_forward.15} parent=27 // pred_region
        %s526 = smul.u32 32, %s13
      $region32: #{network_forward.15} parent=27 // pred_fallthru
        _
    $region28: #{network_forward.15} parent=5 // pred_fallthru
      _
    %p527 = scmp.le.s32.totalorder 2, %s8
    // Predicated region
    $region33: #{network_forward.15} parent=5 // pred_check
      %p528 = pneg %p527
    $region34: #{network_forward.15} parent=5 // pred_check_branch
      %530 = sbr.rel (%p528) target = $region36
    $region35: #{network_forward.15} parent=5 // pred_region
      %s531 = ssub.s32 %s8, 2
      // Predicated region
      $region37: #{network_forward.15} parent=35 // pred_check
        %p532 = pneg %p84
      $region38: #{network_forward.15} parent=35 // pred_check_branch
        %534 = sbr.rel (%p532) target = $region40
      $region39: #{network_forward.15} parent=35 // pred_region
        %s535 = smul.u32 32, %s14
        %p536 = scmp.lt.s32.totalorder %s535, 63
        %s537 = scalar_select %p536, %s535, 63
        %s538 = smul.addr %s537, 8
        %s539 = scalar_lea.vmem %s2, %s538
      $region40: #{network_forward.15} parent=35 // pred_fallthru
        _
    $region36: #{network_forward.15} parent=5 // pred_fallthru
      _
  $region6: #{network_forward.15} parent=0 // loop_footer
    %s12 = sadd.s32 1, %s8
  $region7: #{network_forward.15} parent=0 // loop_footer_branch
    %7 = sbr.rel target = $region3
  $region8: #{network_forward.15} parent=0 // loop_exit
    _

// kernel: network_forward.17
$region0: #{network_forward.17}
  #allocation0 [shape = 'u32[]', space=smem, size = 0x4, offset = 0x4, fixed_abs, tag = 'smem constant byte address 0x4 - core index']
  #allocation1 [shape = 'u32[144,128]{1,0:T(1,128)}', space=vmem, size = 0x12000, scoped, tag = 'internal scratch']
  %s0 = inlined_call_operand.vmem [shape: bf16[512,208], index: 0, kind: input, shape index: {}]
  %s1 = inlined_call_operand.vmem [shape: bf16[208,128], index: 1, kind: input, shape index: {}]
  %s2 = inlined_call_operand.vmem [shape: f32[512,128], index: 2, kind: output, shape index: {}]
  %s3 = sld [smem:[#allocation0]]
  $region41: #{network_forward.17} parent=0
    _
  %s5 = ssub.s32 1, %s3
  %s6 = scalar_select 0, %s5, %s3
  loop: start=0, step=1, limit=4
  $region2: #{network_forward.17} parent=0 // loop_pre_header
    _
  $region3: #{network_forward.17} parent=0 // loop_header
    %s8 = sphi 0, %s12
    %p9 = scmp.ge.s32.totalorder %s8, 4
    %s18 = sphi 0, %s20
    %s21 = sphi 0, %s18
    %s22 = sphi 0, %s21
    %s38 = sphi 0, %s22
    %s42 = sphi 0, %s42
    %s44 = sphi 0, %s42
    %s45 = sphi 0, %s44
    %s59 = sphi 0, %s45
    %s65 = sphi 0, %s67
    %s68 = sphi 0, %s65
    %s69 = sphi 0, %s68
    %s85 = sphi 0, %s69
  $region4: #{network_forward.17} parent=0 // loop_header_branch
    %11 = sbr.rel (%p9) target = $region8
  $region5: #{network_forward.17} parent=0 // loop_body
    %s13 = ssub.s32 %s8, 1
    %s14 = ssub.s32 %s8, 2
    %s15 = sadd.s32 %s8, 1
    %s16 = ssub.s32 %s8, %s15
    %p17 = scmp.eq.s32.totalorder %s16, 0
    %s19 = sadd.s32 %s18, 1
    %s20 = scalar_select %p17, %s18, %s19
    %p23 = pneg %p17
    %p24 = scmp.eq.s32.totalorder %s8, 1
    %p25 = por %p23, %p24
    %p26 = scmp.ne.s32.totalorder %s18, %s21
    %p27 = scmp.eq.s32.totalorder %s8, 0
    %p28 = por %p26, %p27
    %p29 = scmp.ne.s32.totalorder %s18, %s21
    %p30 = scmp.eq.s32.totalorder %s13, 1
    %p31 = por %p29, %p30
    %p32 = scmp.ne.s32.totalorder %s21, %s22
    %p33 = scmp.eq.s32.totalorder %s13, 0
    %p34 = por %p32, %p33
    %p35 = scmp.ne.s32.totalorder %s21, %s22
    %p36 = scmp.eq.s32.totalorder %s14, 1
    %p37 = por %p35, %p36
    %p39 = scmp.ne.s32.totalorder %s22, %s38
    %p40 = scmp.eq.s32.totalorder %s14, 0
    %p41 = por %p39, %p40
    %s43 = sadd.s32 %s42, 1
    %p46 = scmp.eq.s32.totalorder %s8, 1
    %p47 = scmp.ne.s32.totalorder %s42, %s44
    %p48 = scmp.eq.s32.totalorder %s8, 0
    %p49 = por %p47, %p48
    %p50 = scmp.ne.s32.totalorder %s42, %s44
    %p51 = scmp.eq.s32.totalorder %s13, 1
    %p52 = por %p50, %p51
    %p53 = scmp.ne.s32.totalorder %s44, %s45
    %p54 = scmp.eq.s32.totalorder %s13, 0
    %p55 = por %p53, %p54
    %p56 = scmp.ne.s32.totalorder %s44, %s45
    %p57 = scmp.eq.s32.totalorder %s14, 1
    %p58 = por %p56, %p57
    %p60 = scmp.ne.s32.totalorder %s45, %s59
    %p61 = scmp.eq.s32.totalorder %s14, 0
    %p62 = por %p60, %p61
    %s63 = ssub.s32 %s8, %s15
    %p64 = scmp.eq.s32.totalorder %s63, 0
    %s66 = sadd.s32 %s65, 1
    %s67 = scalar_select %p64, %s65, %s66
    %p70 = pneg %p64
    %p71 = scmp.eq.s32.totalorder %s8, 1
    %p72 = por %p70, %p71
    %p73 = scmp.ne.s32.totalorder %s65, %s68
    %p74 = scmp.eq.s32.totalorder %s8, 0
    %p75 = por %p73, %p74
    %p76 = scmp.ne.s32.totalorder %s65, %s68
    %p77 = scmp.eq.s32.totalorder %s13, 1
    %p78 = por %p76, %p77
    %p79 = scmp.ne.s32.totalorder %s68, %s69
    %p80 = scmp.eq.s32.totalorder %s13, 0
    %p81 = por %p79, %p80
    %p82 = scmp.ne.s32.totalorder %s68, %s69
    %p83 = scmp.eq.s32.totalorder %s14, 1
    %p84 = por %p82, %p83
    %p86 = scmp.ne.s32.totalorder %s69, %s85
    %p87 = scmp.eq.s32.totalorder %s14, 0
    %p88 = por %p86, %p87
    %p89 = scmp.le.s32.totalorder 1, %s8
    %p90 = scmp.lt.s32.totalorder %s8, 3
    %p91 = pnand %p89, %p90
    %p92 = pneg %p91
    // Predicated region
    $region9: #{network_forward.17} parent=5 // pred_check
      _
    $region10: #{network_forward.17} parent=5 // pred_check_branch
      %94 = sbr.rel (%p91) target = $region12
    $region11: #{network_forward.17} parent=5 // pred_region
      %s95 = ssub.s32 %s8, 1
      // Predicated region
      $region13: #{network_forward.17} parent=11 // pred_check
        %p96 = pneg %p55
      $region14: #{network_forward.17} parent=11 // pred_check_branch
        %98 = sbr.rel (%p96) target = $region16
      $region15: #{network_forward.17} parent=11 // pred_region
        _
      $region16: #{network_forward.17} parent=11 // pred_fallthru
        _
    $region12: #{network_forward.17} parent=5 // pred_fallthru
      _
    %p99 = scmp.lt.s32.totalorder %s8, 2
    // Predicated region
    $region17: #{network_forward.17} parent=5 // pred_check
      %p100 = pneg %p99
    $region18: #{network_forward.17} parent=5 // pred_check_branch
      %102 = sbr.rel (%p100) target = $region20
    $region19: #{network_forward.17} parent=5 // pred_region
      // Predicated region
      $region21: #{network_forward.17} parent=19 // pred_check
        %p103 = pneg %p28
      $region22: #{network_forward.17} parent=19 // pred_check_branch
        %105 = sbr.rel (%p103) target = $region24
      $region23: #{network_forward.17} parent=19 // pred_region
        %s106 = smul.u32 32, %s8
        %p107 = scmp.lt.s32.totalorder %s106, 63
        %s108 = scalar_select %p107, %s106, 63
        %s109 = smul.addr %s108, 2
        %s110 = smul.addr %s109, 4
        %s111 = scalar_lea.vmem %s0, %s110
        %s112 = smul.u32 32, %s8
      $region24: #{network_forward.17} parent=19 // pred_fallthru
        _
    $region20: #{network_forward.17} parent=5 // pred_fallthru
      _
    %p113 = scmp.le.s32.totalorder 1, %s8
    %p114 = scmp.lt.s32.totalorder %s8, 3
    %p115 = pnand %p113, %p114
    %p116 = pneg %p115
    // Predicated region
    $region25: #{network_forward.17} parent=5 // pred_check
      _
    $region26: #{network_forward.17} parent=5 // pred_check_branch
      %118 = sbr.rel (%p115) target = $region28
    $region27: #{network_forward.17} parent=5 // pred_region
      %s119 = ssub.s32 %s8, 1
      %s120 = smul.u32 32, %s13
      %p121 = scmp.lt.s32.totalorder %s120, 63
      %s122 = scalar_select %p121, %s120, 63
      %s123 = smul.addr %s122, 2
      %s124 = smul.addr %s123, 4
      %s125 = scalar_lea.vmem %s0, %s124
      %p126 = pneg %p34
      %p127 = pneg %p31
      %p128 = pneg %p55
      %p129 = pneg %p52
      %p130 = pneg %p81
      %p131 = pneg %p78
      %s132 = smul.u32 32, %s13
      %p133 = scmp.lt.s32.totalorder %s132, 63
      %s134 = scalar_select %p133, %s132, 63
      %s135 = smul.addr %s134, 8
      %s136 = scalar_lea.vmem %s2, %s135
      %s137 = smul.u32 32, %s13
      %p138 = scmp.lt.s32.totalorder %s137, 63
      %s139 = scalar_select %p138, %s137, 63
      %s140 = smul.addr %s139, 2
      %s141 = smul.addr %s140, 4
      %s142 = scalar_lea.vmem %s0, %s141
      %s143 = smul.u32 32, %s13
      %s144 = smul.u32 32, %s13
      %p145 = scmp.lt.s32.totalorder %s144, 63
      %s146 = scalar_select %p145, %s144, 63
      %s147 = smul.addr %s146, 8
      %s148 = scalar_lea.vmem %s2, %s147
      %s149 = smul.u32 32, %s13
      %v151 = vld [vmem:[%s142] sm:$0xff]
      %v152 = vld [vmem:[%s142 + $0x8] sm:$0xff]
      %v153 = vld [vmem:[%s142 + $0x10] sm:$0xff]
      %v154 = vld [vmem:[%s142 + $0x18] sm:$0xff]
      %v155 = vld [vmem:[%s142 + $0x20] sm:$0xff]
      %v156 = vld [vmem:[%s142 + $0x28] sm:$0xff]
      %v157 = vld [vmem:[%s142 + $0x30] sm:$0xff]
      %v158 = vld [vmem:[%s142 + $0x38] sm:$0xff]
      %v159 = vld [vmem:[%s142 + $0x40] sm:$0xff]
      %v160 = vld [vmem:[%s142 + $0x48] sm:$0xff]
      %v161 = vld [vmem:[%s142 + $0x50] sm:$0xff]
      %v162 = vld [vmem:[%s142 + $0x58] sm:$0xff]
      %v163 = vld [vmem:[%s142 + $0x60] sm:$0xff]
      %v164 = vld [vmem:[%s142 + $0x68] sm:$0xff]
      %v165 = vld [vmem:[%s142 + $0x70] sm:$0xff]
      %v166 = vld [vmem:[%s142 + $0x78] sm:$0xff]
      %v167 = vld [vmem:[%s142 + $0x80] sm:$0xff]
      %v168 = vld [vmem:[%s142 + $0x88] sm:$0xff]
      %v169 = vld [vmem:[%s142 + $0x90] sm:$0xff]
      %v170 = vld [vmem:[%s142 + $0x98] sm:$0xff]
      %v171 = vld [vmem:[%s142 + $0xa0] sm:$0xff]
      %v172 = vld [vmem:[%s142 + $0xa8] sm:$0xff]
      %v173 = vld [vmem:[%s142 + $0xb0] sm:$0xff]
      %v174 = vld [vmem:[%s142 + $0xb8] sm:$0xff]
      %v175 = vld [vmem:[%s142 + $0xc0] sm:$0xff]
      %v176 = vld [vmem:[%s142 + $0xc8] sm:$0xff]
      %v177 = vld [vmem:[%s142 + $0xd0] sm:$0xff]
      %v178 = vld [vmem:[%s142 + $0xd8] sm:$0xff]
      %v179 = vld [vmem:[%s142 + $0xe0] sm:$0xff]
      %v180 = vld [vmem:[%s142 + $0xe8] sm:$0xff]
      %v181 = vld [vmem:[%s142 + $0xf0] sm:$0xff]
      %v182 = vld [vmem:[%s142 + $0xf8] sm:$0xff]
      %v183 = vld [vmem:[%s1] sm:$0xf]
      %v184 = vld [vmem:[%s1 + $0x4] sm:$0xf]
      %v185 = vld [vmem:[%s1 + $0x8] sm:$0xf]
      %v186 = vld [vmem:[%s1 + $0xc] sm:$0xf]
      %v187 = vld [vmem:[%s1 + $0x10] sm:$0xf]
      %v188 = vld [vmem:[%s1 + $0x14] sm:$0xf]
      %v189 = vld [vmem:[%s1 + $0x18] sm:$0xf]
      %v190 = vld [vmem:[%s1 + $0x1c] sm:$0xf]
      %v191 = vld [vmem:[%s1 + $0x20] sm:$0xf]
      %v192 = vld [vmem:[%s1 + $0x24] sm:$0xf]
      %v193 = vld [vmem:[%s1 + $0x28] sm:$0xf]
      %v194 = vld [vmem:[%s1 + $0x2c] sm:$0xf]
      %v195 = vld [vmem:[%s1 + $0x30] sm:$0xf]
      %v196 = vld [vmem:[%s1 + $0x34] sm:$0xf]
      %v197 = vld [vmem:[%s1 + $0x38] sm:$0xf]
      %v198 = vld [vmem:[%s1 + $0x3c] sm:$0xf]
      %v199 = vld [vmem:[%s1 + $0x40] sm:$0xf]
      %v200 = vld [vmem:[%s1 + $0x44] sm:$0xf]
      %v201 = vld [vmem:[%s1 + $0x48] sm:$0xf]
      %v202 = vld [vmem:[%s1 + $0x4c] sm:$0xf]
      %v203 = vld [vmem:[%s1 + $0x50] sm:$0xf]
      %v204 = vld [vmem:[%s1 + $0x54] sm:$0xf]
      %v205 = vld [vmem:[%s1 + $0x58] sm:$0xf]
      %v206 = vld [vmem:[%s1 + $0x5c] sm:$0xf]
      %v207 = vld [vmem:[%s1 + $0x60] sm:$0xf]
      %v208 = vld [vmem:[%s1 + $0x64] sm:$0xf]
      %v241 = vunpack.c.l.b16 %v151
      %v242 = vunpack.c.h.b16 %v151
      %v243 = vunpack.c.l.b16 %v152
      %v244 = vunpack.c.h.b16 %v152
      %v245 = vunpack.c.l.b16 %v153
      %v246 = vunpack.c.h.b16 %v153
      %v247 = vunpack.c.l.b16 %v154
      %v248 = vunpack.c.h.b16 %v154
      %v249 = vunpack.c.l.b16 %v155
      %v250 = vunpack.c.h.b16 %v155
      %v251 = vunpack.c.l.b16 %v156
      %v252 = vunpack.c.h.b16 %v156
      %v253 = vunpack.c.l.b16 %v157
      %v254 = vunpack.c.h.b16 %v157
      %v255 = vunpack.c.l.b16 %v158
      %v256 = vunpack.c.h.b16 %v158
      %v257 = vunpack.c.l.b16 %v159
      %v258 = vunpack.c.h.b16 %v159
      %v259 = vunpack.c.l.b16 %v160
      %v260 = vunpack.c.h.b16 %v160
      %v261 = vunpack.c.l.b16 %v161
      %v262 = vunpack.c.h.b16 %v161
      %v263 = vunpack.c.l.b16 %v162
      %v264 = vunpack.c.h.b16 %v162
      %v265 = vunpack.c.l.b16 %v163
      %v266 = vunpack.c.h.b16 %v163
      %v267 = vunpack.c.l.b16 %v164
      %v268 = vunpack.c.h.b16 %v164
      %v269 = vunpack.c.l.b16 %v165
      %v270 = vunpack.c.h.b16 %v165
      %v271 = vunpack.c.l.b16 %v166
      %v272 = vunpack.c.h.b16 %v166
      %v273 = vunpack.c.l.b16 %v167
      %v274 = vunpack.c.h.b16 %v167
      %v275 = vunpack.c.l.b16 %v168
      %v276 = vunpack.c.h.b16 %v168
      %v277 = vunpack.c.l.b16 %v169
      %v278 = vunpack.c.h.b16 %v169
      %v279 = vunpack.c.l.b16 %v170
      %v280 = vunpack.c.h.b16 %v170
      %v281 = vunpack.c.l.b16 %v171
      %v282 = vunpack.c.h.b16 %v171
      %v283 = vunpack.c.l.b16 %v172
      %v284 = vunpack.c.h.b16 %v172
      %v285 = vunpack.c.l.b16 %v173
      %v286 = vunpack.c.h.b16 %v173
      %v287 = vunpack.c.l.b16 %v174
      %v288 = vunpack.c.h.b16 %v174
      %v289 = vunpack.c.l.b16 %v175
      %v290 = vunpack.c.h.b16 %v175
      %v291 = vunpack.c.l.b16 %v176
      %v292 = vunpack.c.h.b16 %v176
      %v293 = vunpack.c.l.b16 %v177
      %v294 = vunpack.c.h.b16 %v177
      %v295 = vunpack.c.l.b16 %v178
      %v296 = vunpack.c.h.b16 %v178
      %v297 = vunpack.c.l.b16 %v179
      %v298 = vunpack.c.h.b16 %v179
      %v299 = vunpack.c.l.b16 %v180
      %v300 = vunpack.c.h.b16 %v180
      %v301 = vunpack.c.l.b16 %v181
      %v302 = vunpack.c.h.b16 %v181
      %v303 = vunpack.c.l.b16 %v182
      %v304 = vunpack.c.h.b16 %v182
      %v305 = vpack.c.b16 %v243, %v241
      %v306 = vpack.c.b16 %v244, %v242
      %v307 = vpack.c.b16 %v247, %v245
      %v308 = vpack.c.b16 %v248, %v246
      %v309 = vpack.c.b16 %v251, %v249
      %v310 = vpack.c.b16 %v252, %v250
      %v311 = vpack.c.b16 %v255, %v253
      %v312 = vpack.c.b16 %v256, %v254
      %v313 = vpack.c.b16 %v259, %v257
      %v314 = vpack.c.b16 %v260, %v258
      %v315 = vpack.c.b16 %v263, %v261
      %v316 = vpack.c.b16 %v264, %v262
      %v317 = vpack.c.b16 %v267, %v265
      %v318 = vpack.c.b16 %v268, %v266
      %v319 = vpack.c.b16 %v271, %v269
      %v320 = vpack.c.b16 %v272, %v270
      %v321 = vpack.c.b16 %v275, %v273
      %v322 = vpack.c.b16 %v276, %v274
      %v323 = vpack.c.b16 %v279, %v277
      %v324 = vpack.c.b16 %v280, %v278
      %v325 = vpack.c.b16 %v283, %v281
      %v326 = vpack.c.b16 %v284, %v282
      %v327 = vpack.c.b16 %v287, %v285
      %v328 = vpack.c.b16 %v288, %v286
      %v329 = vpack.c.b16 %v291, %v289
      %v330 = vpack.c.b16 %v292, %v290
      %v331 = vpack.c.b16 %v295, %v293
      %v332 = vpack.c.b16 %v296, %v294
      %v333 = vpack.c.b16 %v299, %v297
      %v334 = vpack.c.b16 %v300, %v298
      %v335 = vpack.c.b16 %v303, %v301
      %v336 = vpack.c.b16 %v304, %v302
      %v379 = vunpack.c.l.b16 %v183
      %v380 = vunpack.c.l.b16 %v184
      %v381 = vunpack.c.l.b16 %v185
      %v382 = vunpack.c.l.b16 %v186
      %v383 = vunpack.c.l.b16 %v187
      %v384 = vunpack.c.l.b16 %v188
      %v385 = vunpack.c.l.b16 %v189
      %v386 = vunpack.c.l.b16 %v190
      %v387 = vunpack.c.l.b16 %v191
      %v388 = vunpack.c.l.b16 %v192
      %v389 = vunpack.c.l.b16 %v193
      %v390 = vunpack.c.l.b16 %v194
      %v391 = vunpack.c.l.b16 %v195
      %v392 = vunpack.c.l.b16 %v196
      %v393 = vunpack.c.l.b16 %v197
      %v394 = vunpack.c.l.b16 %v198
      %v395 = vunpack.c.l.b16 %v199
      %v396 = vunpack.c.l.b16 %v200
      %v397 = vunpack.c.l.b16 %v201
      %v398 = vunpack.c.l.b16 %v202
      %v399 = vunpack.c.l.b16 %v203
      %v400 = vunpack.c.l.b16 %v204
      %v401 = vunpack.c.l.b16 %v205
      %v402 = vunpack.c.l.b16 %v206
      %v403 = vunpack.c.l.b16 %v207
      %v404 = vunpack.c.l.b16 %v208
      %v405 = vpack.c.b16 %v380, %v379
      %v406 = vpack.c.b16 %v382, %v381
      %v407 = vpack.c.b16 %v384, %v383
      %v408 = vpack.c.b16 %v386, %v385
      %v409 = vpack.c.b16 %v388, %v387
      %v410 = vpack.c.b16 %v390, %v389
      %v411 = vpack.c.b16 %v392, %v391
      %v412 = vpack.c.b16 %v394, %v393
      %v413 = vpack.c.b16 %v396, %v395
      %v414 = vpack.c.b16 %v398, %v397
      %v415 = vpack.c.b16 %v400, %v399
      %v416 = vpack.c.b16 %v402, %v401
      %v417 = vpack.c.b16 %v404, %v403
      %vm431 = vcmask 654336
      %v433 = vsel %vm431, %v306, 0
      %v436 = vsel %vm431, %v308, 0
      %v439 = vsel %vm431, %v310, 0
      %v442 = vsel %vm431, %v312, 0
      %v445 = vsel %vm431, %v314, 0
      %v448 = vsel %vm431, %v316, 0
      %v451 = vsel %vm431, %v318, 0
      %v454 = vsel %vm431, %v320, 0
      %v457 = vsel %vm431, %v322, 0
      %v460 = vsel %vm431, %v324, 0
      %v463 = vsel %vm431, %v326, 0
      %v466 = vsel %vm431, %v328, 0
      %v469 = vsel %vm431, %v330, 0
      %v472 = vsel %vm431, %v332, 0
      %v475 = vsel %vm431, %v334, 0
      %v478 = vsel %vm431, %v336, 0
      %480 = vmatprep.subr.bf16.mxu0 0
      %481 = vmatpush1.bf16.msra.mxu0 %v405
      %482 = vmatprep.subr.bf16.mxu0 0
      %483 = vmatpush1.bf16.msra.mxu0 %v406
      %484 = vmatprep.subr.bf16.mxu0 0
      %485 = vmatpush1.bf16.msra.mxu0 %v407
      %486 = vmatprep.subr.bf16.mxu0 0
      %487 = vmatpush1.bf16.msra.mxu0 %v408
      %488 = vmatprep.subr.bf16.mxu0 0
      %489 = vmatpush1.bf16.msra.mxu0 %v409
      %490 = vmatprep.subr.bf16.mxu0 0
      %491 = vmatpush1.bf16.msra.mxu0 %v410
      %492 = vmatprep.subr.bf16.mxu0 0
      %493 = vmatpush1.bf16.msra.mxu0 %v411
      %494 = vmatprep.subr.bf16.mxu0 0
      %495 = vmatpush1.bf16.msra.mxu0 %v412
      %496 = vmatprep.subr.bf16.mxu0 0
      %497 = vmatpush1.bf16.msra.mxu0 %v413
      %498 = vmatprep.subr.bf16.mxu0 0
      %499 = vmatpush1.bf16.msra.mxu0 %v414
      %500 = vmatprep.subr.bf16.mxu0 0
      %501 = vmatpush1.bf16.msra.mxu0 %v415
      %502 = vmatprep.subr.bf16.mxu0 0
      %503 = vmatpush1.bf16.msra.mxu0 %v416
      %504 = vmatprep.subr.bf16.mxu0 0
      %505 = vmatpush1.bf16.msra.mxu0 %v417
      %506 = vmatprep.subr.bf16.mxu0 0
      %507 = vmatpush1.bf16.msra.mxu0 0
      %508 = vmatprep.subr.bf16.mxu0 0
      %509 = vmatpush1.bf16.msra.mxu0 0
      %510 = vmatprep.subr.bf16.mxu0 0
      %511 = vmatpush1.bf16.msra.mxu0 0
      %512 = vmatprep.mubr.bf16.mxu0 %v433
      %513 = vmatmul.mubr.bf16.gmra.mrb[0].mxu0 %v305
      %v514 = vpop.f32.mrb[0].mxu0
      %v515 = vadd.f32 0.0, %v514
      %v516 = vpop.f32.mrb[0].mxu0
      %v517 = vpop.f32.mrb[0].mxu0
      %v518 = vadd.f32 0.0, %v517
      %v519 = vpop.f32.mrb[0].mxu0
      %520 = vmatprep.mubr.bf16.mxu0 %v436
      %521 = vmatmul.mubr.bf16.gmra.mrb[0].mxu0 %v307
      %v522 = vpop.f32.mrb[0].mxu0
      %v523 = vadd.f32 0.0, %v522
      %v524 = vpop.f32.mrb[0].mxu0
      %v525 = vpop.f32.mrb[0].mxu0
      %v526 = vadd.f32 0.0, %v525
      %v527 = vpop.f32.mrb[0].mxu0
      %528 = vmatprep.mubr.bf16.mxu0 %v439
      %529 = vmatmul.mubr.bf16.gmra.mrb[0].mxu0 %v309
      %v530 = vpop.f32.mrb[0].mxu0
      %v531 = vadd.f32 0.0, %v530
      %v532 = vpop.f32.mrb[0].mxu0
      %v533 = vpop.f32.mrb[0].mxu0
      %v534 = vadd.f32 0.0, %v533
      %v535 = vpop.f32.mrb[0].mxu0
      %536 = vmatprep.mubr.bf16.mxu0 %v442
      %537 = vmatmul.mubr.bf16.gmra.mrb[0].mxu0 %v311
      %v538 = vpop.f32.mrb[0].mxu0
      %v539 = vadd.f32 0.0, %v538
      %v540 = vpop.f32.mrb[0].mxu0
      %v541 = vpop.f32.mrb[0].mxu0
      %v542 = vadd.f32 0.0, %v541
      %v543 = vpop.f32.mrb[0].mxu0
      %544 = vmatprep.mubr.bf16.mxu0 %v445
      %545 = vmatmul.mubr.bf16.gmra.mrb[0].mxu0 %v313
      %v546 = vpop.f32.mrb[0].mxu0
      %v547 = vadd.f32 0.0, %v546
      %v548 = vpop.f32.mrb[0].mxu0
      %v549 = vpop.f32.mrb[0].mxu0
      %v550 = vadd.f32 0.0, %v549
      %v551 = vpop.f32.mrb[0].mxu0
      %552 = vmatprep.mubr.bf16.mxu0 %v448
      %553 = vmatmul.mubr.bf16.gmra.mrb[0].mxu0 %v315
      %v554 = vpop.f32.mrb[0].mxu0
      %v555 = vadd.f32 0.0, %v554
      %v556 = vpop.f32.mrb[0].mxu0
      %v557 = vpop.f32.mrb[0].mxu0
      %v558 = vadd.f32 0.0, %v557
      %v559 = vpop.f32.mrb[0].mxu0
      %560 = vmatprep.mubr.bf16.mxu0 %v451
      %561 = vmatmul.mubr.bf16.gmra.mrb[0].mxu0 %v317
      %v562 = vpop.f32.mrb[0].mxu0
      %v563 = vadd.f32 0.0, %v562
      %v564 = vpop.f32.mrb[0].mxu0
      %v565 = vpop.f32.mrb[0].mxu0
      %v566 = vadd.f32 0.0, %v565
      %v567 = vpop.f32.mrb[0].mxu0
      %568 = vmatprep.mubr.bf16.mxu0 %v454
      %569 = vmatmul.mubr.bf16.gmra.mrb[0].mxu0 %v319
      %v570 = vpop.f32.mrb[0].mxu0
      %v571 = vadd.f32 0.0, %v570
      %v572 = vpop.f32.mrb[0].mxu0
      %v573 = vpop.f32.mrb[0].mxu0
      %v574 = vadd.f32 0.0, %v573
      %v575 = vpop.f32.mrb[0].mxu0
      %576 = vmatprep.mubr.bf16.mxu0 %v457
      %577 = vmatmul.mubr.bf16.gmra.mrb[0].mxu0 %v321
      %v578 = vpop.f32.mrb[0].mxu0
      %v579 = vadd.f32 0.0, %v578
      %v580 = vpop.f32.mrb[0].mxu0
      %v581 = vpop.f32.mrb[0].mxu0
      %v582 = vadd.f32 0.0, %v581
      %v583 = vpop.f32.mrb[0].mxu0
      %584 = vmatprep.mubr.bf16.mxu0 %v460
      %585 = vmatmul.mubr.bf16.gmra.mrb[0].mxu0 %v323
      %v586 = vpop.f32.mrb[0].mxu0
      %v587 = vadd.f32 0.0, %v586
      %v588 = vpop.f32.mrb[0].mxu0
      %v589 = vpop.f32.mrb[0].mxu0
      %v590 = vadd.f32 0.0, %v589
      %v591 = vpop.f32.mrb[0].mxu0
      %592 = vmatprep.mubr.bf16.mxu0 %v463
      %593 = vmatmul.mubr.bf16.gmra.mrb[0].mxu0 %v325
      %v594 = vpop.f32.mrb[0].mxu0
      %v595 = vadd.f32 0.0, %v594
      %v596 = vpop.f32.mrb[0].mxu0
      %v597 = vpop.f32.mrb[0].mxu0
      %v598 = vadd.f32 0.0, %v597
      %v599 = vpop.f32.mrb[0].mxu0
      %600 = vmatprep.mubr.bf16.mxu0 %v466
      %601 = vmatmul.mubr.bf16.gmra.mrb[0].mxu0 %v327
      %v602 = vpop.f32.mrb[0].mxu0
      %v603 = vadd.f32 0.0, %v602
      %v604 = vpop.f32.mrb[0].mxu0
      %v605 = vpop.f32.mrb[0].mxu0
      %v606 = vadd.f32 0.0, %v605
      %v607 = vpop.f32.mrb[0].mxu0
      %608 = vmatprep.mubr.bf16.mxu0 %v469
      %609 = vmatmul.mubr.bf16.gmra.mrb[0].mxu0 %v329
      %v610 = vpop.f32.mrb[0].mxu0
      %v611 = vadd.f32 0.0, %v610
      %v612 = vpop.f32.mrb[0].mxu0
      %v613 = vpop.f32.mrb[0].mxu0
      %v614 = vadd.f32 0.0, %v613
      %v615 = vpop.f32.mrb[0].mxu0
      %616 = vmatprep.mubr.bf16.mxu0 %v472
      %617 = vmatmul.mubr.bf16.gmra.mrb[0].mxu0 %v331
      %v618 = vpop.f32.mrb[0].mxu0
      %v619 = vadd.f32 0.0, %v618
      %v620 = vpop.f32.mrb[0].mxu0
      %v621 = vpop.f32.mrb[0].mxu0
      %v622 = vadd.f32 0.0, %v621
      %v623 = vpop.f32.mrb[0].mxu0
      %624 = vmatprep.mubr.bf16.mxu0 %v475
      %625 = vmatmul.mubr.bf16.gmra.mrb[0].mxu0 %v333
      %v626 = vpop.f32.mrb[0].mxu0
      %v627 = vadd.f32 0.0, %v626
      %v628 = vpop.f32.mrb[0].mxu0
      %v629 = vpop.f32.mrb[0].mxu0
      %v630 = vadd.f32 0.0, %v629
      %v631 = vpop.f32.mrb[0].mxu0
      %632 = vmatprep.mubr.bf16.mxu0 %v478
      %633 = vmatmul.mubr.bf16.gmra.mrb[0].mxu0 %v335
      %v634 = vpop.f32.mrb[0].mxu0
      %v635 = vadd.f32 0.0, %v634
      %v636 = vpop.f32.mrb[0].mxu0
      %v637 = vpop.f32.mrb[0].mxu0
      %v638 = vadd.f32 0.0, %v637
      %v639 = vpop.f32.mrb[0].mxu0
      %640 = vdwg.mxu0
      %641 = vst [vmem:[%s148] sm:$0xff] %v515
      %642 = vst [vmem:[%s148 + $0x8] sm:$0xff] %v518
      %643 = vst [vmem:[%s148 + $0x10] sm:$0xff] %v523
      %644 = vst [vmem:[%s148 + $0x18] sm:$0xff] %v526
      %645 = vst [vmem:[%s148 + $0x20] sm:$0xff] %v531
      %646 = vst [vmem:[%s148 + $0x28] sm:$0xff] %v534
      %647 = vst [vmem:[%s148 + $0x30] sm:$0xff] %v539
      %648 = vst [vmem:[%s148 + $0x38] sm:$0xff] %v542
      %649 = vst [vmem:[%s148 + $0x40] sm:$0xff] %v547
      %650 = vst [vmem:[%s148 + $0x48] sm:$0xff] %v550
      %651 = vst [vmem:[%s148 + $0x50] sm:$0xff] %v555
      %652 = vst [vmem:[%s148 + $0x58] sm:$0xff] %v558
      %653 = vst [vmem:[%s148 + $0x60] sm:$0xff] %v563
      %654 = vst [vmem:[%s148 + $0x68] sm:$0xff] %v566
      %655 = vst [vmem:[%s148 + $0x70] sm:$0xff] %v571
      %656 = vst [vmem:[%s148 + $0x78] sm:$0xff] %v574
      %657 = vst [vmem:[%s148 + $0x80] sm:$0xff] %v579
      %658 = vst [vmem:[%s148 + $0x88] sm:$0xff] %v582
      %659 = vst [vmem:[%s148 + $0x90] sm:$0xff] %v587
      %660 = vst [vmem:[%s148 + $0x98] sm:$0xff] %v590
      %661 = vst [vmem:[%s148 + $0xa0] sm:$0xff] %v595
      %662 = vst [vmem:[%s148 + $0xa8] sm:$0xff] %v598
      %663 = vst [vmem:[%s148 + $0xb0] sm:$0xff] %v603
      %664 = vst [vmem:[%s148 + $0xb8] sm:$0xff] %v606
      %665 = vst [vmem:[%s148 + $0xc0] sm:$0xff] %v611
      %666 = vst [vmem:[%s148 + $0xc8] sm:$0xff] %v614
      %667 = vst [vmem:[%s148 + $0xd0] sm:$0xff] %v619
      %668 = vst [vmem:[%s148 + $0xd8] sm:$0xff] %v622
      %669 = vst [vmem:[%s148 + $0xe0] sm:$0xff] %v627
      %670 = vst [vmem:[%s148 + $0xe8] sm:$0xff] %v630
      %671 = vst [vmem:[%s148 + $0xf0] sm:$0xff] %v635
      %672 = vst [vmem:[%s148 + $0xf8] sm:$0xff] %v638
      %s673 = smul.u32 32, %s13
      %p674 = scmp.lt.s32.totalorder %s673, 63
      %s675 = scalar_select %p674, %s673, 63
      %s676 = smul.addr %s675, 8
      %s677 = scalar_lea.vmem %s2, %s676
      // Predicated region
      $region29: #{network_forward.17} parent=27 // pred_check
        %p678 = pneg %p78
      $region30: #{network_forward.17} parent=27 // pred_check_branch
        %680 = sbr.rel (%p678) target = $region32
      $region31: #{network_forward.17} parent=27 // pred_region
        %s681 = smul.u32 32, %s13
      $region32: #{network_forward.17} parent=27 // pred_fallthru
        _
    $region28: #{network_forward.17} parent=5 // pred_fallthru
      _
    %p682 = scmp.le.s32.totalorder 2, %s8
    // Predicated region
    $region33: #{network_forward.17} parent=5 // pred_check
      %p683 = pneg %p682
    $region34: #{network_forward.17} parent=5 // pred_check_branch
      %685 = sbr.rel (%p683) target = $region36
    $region35: #{network_forward.17} parent=5 // pred_region
      %s686 = ssub.s32 %s8, 2
      // Predicated region
      $region37: #{network_forward.17} parent=35 // pred_check
        %p687 = pneg %p84
      $region38: #{network_forward.17} parent=35 // pred_check_branch
        %689 = sbr.rel (%p687) target = $region40
      $region39: #{network_forward.17} parent=35 // pred_region
        %s690 = smul.u32 32, %s14
        %p691 = scmp.lt.s32.totalorder %s690, 63
        %s692 = scalar_select %p691, %s690, 63
        %s693 = smul.addr %s692, 8
        %s694 = scalar_lea.vmem %s2, %s693
      $region40: #{network_forward.17} parent=35 // pred_fallthru
        _
    $region36: #{network_forward.17} parent=5 // pred_fallthru
      _
  $region6: #{network_forward.17} parent=0 // loop_footer
    %s12 = sadd.s32 1, %s8
  $region7: #{network_forward.17} parent=0 // loop_footer_branch
    %7 = sbr.rel target = $region3
  $region8: #{network_forward.17} parent=0 // loop_exit
    _

// kernel: network_forward.22
$region0: #{network_forward.22}
  #allocation0 [shape = 'u32[]', space=smem, size = 0x4, offset = 0x4, fixed_abs, tag = 'smem constant byte address 0x4 - core index']
  #allocation1 [shape = 'u32[144,128]{1,0:T(1,128)}', space=vmem, size = 0x12000, scoped, tag = 'internal scratch']
  %s0 = inlined_call_operand.vmem [shape: bf16[512,64], index: 0, kind: input, shape index: {}]
  %s1 = inlined_call_operand.vmem [shape: bf16[64,128], index: 1, kind: input, shape index: {}]
  %s2 = inlined_call_operand.vmem [shape: f32[512,128], index: 2, kind: output, shape index: {}]
  %s3 = sld [smem:[#allocation0]]
  $region41: #{network_forward.22} parent=0
    _
  %s5 = ssub.s32 1, %s3
  %s6 = scalar_select 0, %s5, %s3
  loop: start=0, step=1, limit=4
  $region2: #{network_forward.22} parent=0 // loop_pre_header
    _
  $region3: #{network_forward.22} parent=0 // loop_header
    %s8 = sphi 0, %s12
    %p9 = scmp.ge.s32.totalorder %s8, 4
    %s18 = sphi 0, %s20
    %s21 = sphi 0, %s18
    %s22 = sphi 0, %s21
    %s38 = sphi 0, %s22
    %s42 = sphi 0, %s42
    %s44 = sphi 0, %s42
    %s45 = sphi 0, %s44
    %s59 = sphi 0, %s45
    %s65 = sphi 0, %s67
    %s68 = sphi 0, %s65
    %s69 = sphi 0, %s68
    %s85 = sphi 0, %s69
  $region4: #{network_forward.22} parent=0 // loop_header_branch
    %11 = sbr.rel (%p9) target = $region8
  $region5: #{network_forward.22} parent=0 // loop_body
    %s13 = ssub.s32 %s8, 1
    %s14 = ssub.s32 %s8, 2
    %s15 = sadd.s32 %s8, 1
    %s16 = ssub.s32 %s8, %s15
    %p17 = scmp.eq.s32.totalorder %s16, 0
    %s19 = sadd.s32 %s18, 1
    %s20 = scalar_select %p17, %s18, %s19
    %p23 = pneg %p17
    %p24 = scmp.eq.s32.totalorder %s8, 1
    %p25 = por %p23, %p24
    %p26 = scmp.ne.s32.totalorder %s18, %s21
    %p27 = scmp.eq.s32.totalorder %s8, 0
    %p28 = por %p26, %p27
    %p29 = scmp.ne.s32.totalorder %s18, %s21
    %p30 = scmp.eq.s32.totalorder %s13, 1
    %p31 = por %p29, %p30
    %p32 = scmp.ne.s32.totalorder %s21, %s22
    %p33 = scmp.eq.s32.totalorder %s13, 0
    %p34 = por %p32, %p33
    %p35 = scmp.ne.s32.totalorder %s21, %s22
    %p36 = scmp.eq.s32.totalorder %s14, 1
    %p37 = por %p35, %p36
    %p39 = scmp.ne.s32.totalorder %s22, %s38
    %p40 = scmp.eq.s32.totalorder %s14, 0
    %p41 = por %p39, %p40
    %s43 = sadd.s32 %s42, 1
    %p46 = scmp.eq.s32.totalorder %s8, 1
    %p47 = scmp.ne.s32.totalorder %s42, %s44
    %p48 = scmp.eq.s32.totalorder %s8, 0
    %p49 = por %p47, %p48
    %p50 = scmp.ne.s32.totalorder %s42, %s44
    %p51 = scmp.eq.s32.totalorder %s13, 1
    %p52 = por %p50, %p51
    %p53 = scmp.ne.s32.totalorder %s44, %s45
    %p54 = scmp.eq.s32.totalorder %s13, 0
    %p55 = por %p53, %p54
    %p56 = scmp.ne.s32.totalorder %s44, %s45
    %p57 = scmp.eq.s32.totalorder %s14, 1
    %p58 = por %p56, %p57
    %p60 = scmp.ne.s32.totalorder %s45, %s59
    %p61 = scmp.eq.s32.totalorder %s14, 0
    %p62 = por %p60, %p61
    %s63 = ssub.s32 %s8, %s15
    %p64 = scmp.eq.s32.totalorder %s63, 0
    %s66 = sadd.s32 %s65, 1
    %s67 = scalar_select %p64, %s65, %s66
    %p70 = pneg %p64
    %p71 = scmp.eq.s32.totalorder %s8, 1
    %p72 = por %p70, %p71
    %p73 = scmp.ne.s32.totalorder %s65, %s68
    %p74 = scmp.eq.s32.totalorder %s8, 0
    %p75 = por %p73, %p74
    %p76 = scmp.ne.s32.totalorder %s65, %s68
    %p77 = scmp.eq.s32.totalorder %s13, 1
    %p78 = por %p76, %p77
    %p79 = scmp.ne.s32.totalorder %s68, %s69
    %p80 = scmp.eq.s32.totalorder %s13, 0
    %p81 = por %p79, %p80
    %p82 = scmp.ne.s32.totalorder %s68, %s69
    %p83 = scmp.eq.s32.totalorder %s14, 1
    %p84 = por %p82, %p83
    %p86 = scmp.ne.s32.totalorder %s69, %s85
    %p87 = scmp.eq.s32.totalorder %s14, 0
    %p88 = por %p86, %p87
    %p89 = scmp.le.s32.totalorder 1, %s8
    %p90 = scmp.lt.s32.totalorder %s8, 3
    %p91 = pnand %p89, %p90
    %p92 = pneg %p91
    // Predicated region
    $region9: #{network_forward.22} parent=5 // pred_check
      _
    $region10: #{network_forward.22} parent=5 // pred_check_branch
      %94 = sbr.rel (%p91) target = $region12
    $region11: #{network_forward.22} parent=5 // pred_region
      %s95 = ssub.s32 %s8, 1
      // Predicated region
      $region13: #{network_forward.22} parent=11 // pred_check
        %p96 = pneg %p55
      $region14: #{network_forward.22} parent=11 // pred_check_branch
        %98 = sbr.rel (%p96) target = $region16
      $region15: #{network_forward.22} parent=11 // pred_region
        _
      $region16: #{network_forward.22} parent=11 // pred_fallthru
        _
    $region12: #{network_forward.22} parent=5 // pred_fallthru
      _
    %p99 = scmp.lt.s32.totalorder %s8, 2
    // Predicated region
    $region17: #{network_forward.22} parent=5 // pred_check
      %p100 = pneg %p99
    $region18: #{network_forward.22} parent=5 // pred_check_branch
      %102 = sbr.rel (%p100) target = $region20
    $region19: #{network_forward.22} parent=5 // pred_region
      // Predicated region
      $region21: #{network_forward.22} parent=19 // pred_check
        %p103 = pneg %p28
      $region22: #{network_forward.22} parent=19 // pred_check_branch
        %105 = sbr.rel (%p103) target = $region24
      $region23: #{network_forward.22} parent=19 // pred_region
        %s106 = smul.u32 32, %s8
        %p107 = scmp.lt.s32.totalorder %s106, 63
        %s108 = scalar_select %p107, %s106, 63
        %s109 = smul.addr %s108, 4
        %s110 = scalar_lea.vmem %s0, %s109
        %s111 = smul.u32 32, %s8
      $region24: #{network_forward.22} parent=19 // pred_fallthru
        _
    $region20: #{network_forward.22} parent=5 // pred_fallthru
      _
    %p112 = scmp.le.s32.totalorder 1, %s8
    %p113 = scmp.lt.s32.totalorder %s8, 3
    %p114 = pnand %p112, %p113
    %p115 = pneg %p114
    // Predicated region
    $region25: #{network_forward.22} parent=5 // pred_check
      _
    $region26: #{network_forward.22} parent=5 // pred_check_branch
      %117 = sbr.rel (%p114) target = $region28
    $region27: #{network_forward.22} parent=5 // pred_region
      %s118 = ssub.s32 %s8, 1
      %s119 = smul.u32 32, %s13
      %p120 = scmp.lt.s32.totalorder %s119, 63
      %s121 = scalar_select %p120, %s119, 63
      %s122 = smul.addr %s121, 4
      %s123 = scalar_lea.vmem %s0, %s122
      %p124 = pneg %p34
      %p125 = pneg %p31
      %p126 = pneg %p55
      %p127 = pneg %p52
      %p128 = pneg %p81
      %p129 = pneg %p78
      %s130 = smul.u32 32, %s13
      %p131 = scmp.lt.s32.totalorder %s130, 63
      %s132 = scalar_select %p131, %s130, 63
      %s133 = smul.addr %s132, 8
      %s134 = scalar_lea.vmem %s2, %s133
      %s135 = smul.u32 32, %s13
      %p136 = scmp.lt.s32.totalorder %s135, 63
      %s137 = scalar_select %p136, %s135, 63
      %s138 = smul.addr %s137, 4
      %s139 = scalar_lea.vmem %s0, %s138
      %s140 = smul.u32 32, %s13
      %s141 = smul.u32 32, %s13
      %p142 = scmp.lt.s32.totalorder %s141, 63
      %s143 = scalar_select %p142, %s141, 63
      %s144 = smul.addr %s143, 8
      %s145 = scalar_lea.vmem %s2, %s144
      %s146 = smul.u32 32, %s13
      %v148 = vld [vmem:[%s139] sm:$0xf]
      %v149 = vld [vmem:[%s139 + $0x4] sm:$0xf]
      %v150 = vld [vmem:[%s139 + $0x8] sm:$0xf]
      %v151 = vld [vmem:[%s139 + $0xc] sm:$0xf]
      %v152 = vld [vmem:[%s139 + $0x10] sm:$0xf]
      %v153 = vld [vmem:[%s139 + $0x14] sm:$0xf]
      %v154 = vld [vmem:[%s139 + $0x18] sm:$0xf]
      %v155 = vld [vmem:[%s139 + $0x1c] sm:$0xf]
      %v156 = vld [vmem:[%s139 + $0x20] sm:$0xf]
      %v157 = vld [vmem:[%s139 + $0x24] sm:$0xf]
      %v158 = vld [vmem:[%s139 + $0x28] sm:$0xf]
      %v159 = vld [vmem:[%s139 + $0x2c] sm:$0xf]
      %v160 = vld [vmem:[%s139 + $0x30] sm:$0xf]
      %v161 = vld [vmem:[%s139 + $0x34] sm:$0xf]
      %v162 = vld [vmem:[%s139 + $0x38] sm:$0xf]
      %v163 = vld [vmem:[%s139 + $0x3c] sm:$0xf]
      %v164 = vld [vmem:[%s139 + $0x40] sm:$0xf]
      %v165 = vld [vmem:[%s139 + $0x44] sm:$0xf]
      %v166 = vld [vmem:[%s139 + $0x48] sm:$0xf]
      %v167 = vld [vmem:[%s139 + $0x4c] sm:$0xf]
      %v168 = vld [vmem:[%s139 + $0x50] sm:$0xf]
      %v169 = vld [vmem:[%s139 + $0x54] sm:$0xf]
      %v170 = vld [vmem:[%s139 + $0x58] sm:$0xf]
      %v171 = vld [vmem:[%s139 + $0x5c] sm:$0xf]
      %v172 = vld [vmem:[%s139 + $0x60] sm:$0xf]
      %v173 = vld [vmem:[%s139 + $0x64] sm:$0xf]
      %v174 = vld [vmem:[%s139 + $0x68] sm:$0xf]
      %v175 = vld [vmem:[%s139 + $0x6c] sm:$0xf]
      %v176 = vld [vmem:[%s139 + $0x70] sm:$0xf]
      %v177 = vld [vmem:[%s139 + $0x74] sm:$0xf]
      %v178 = vld [vmem:[%s139 + $0x78] sm:$0xf]
      %v179 = vld [vmem:[%s139 + $0x7c] sm:$0xf]
      %v180 = vld [vmem:[%s1] sm:$0xf]
      %v181 = vld [vmem:[%s1 + $0x4] sm:$0xf]
      %v182 = vld [vmem:[%s1 + $0x8] sm:$0xf]
      %v183 = vld [vmem:[%s1 + $0xc] sm:$0xf]
      %v184 = vld [vmem:[%s1 + $0x10] sm:$0xf]
      %v185 = vld [vmem:[%s1 + $0x14] sm:$0xf]
      %v186 = vld [vmem:[%s1 + $0x18] sm:$0xf]
      %v187 = vld [vmem:[%s1 + $0x1c] sm:$0xf]
      %v220 = vunpack.c.l.b16 %v148
      %v221 = vunpack.c.l.b16 %v149
      %v222 = vunpack.c.l.b16 %v150
      %v223 = vunpack.c.l.b16 %v151
      %v224 = vunpack.c.l.b16 %v152
      %v225 = vunpack.c.l.b16 %v153
      %v226 = vunpack.c.l.b16 %v154
      %v227 = vunpack.c.l.b16 %v155
      %v228 = vunpack.c.l.b16 %v156
      %v229 = vunpack.c.l.b16 %v157
      %v230 = vunpack.c.l.b16 %v158
      %v231 = vunpack.c.l.b16 %v159
      %v232 = vunpack.c.l.b16 %v160
      %v233 = vunpack.c.l.b16 %v161
      %v234 = vunpack.c.l.b16 %v162
      %v235 = vunpack.c.l.b16 %v163
      %v236 = vunpack.c.l.b16 %v164
      %v237 = vunpack.c.l.b16 %v165
      %v238 = vunpack.c.l.b16 %v166
      %v239 = vunpack.c.l.b16 %v167
      %v240 = vunpack.c.l.b16 %v168
      %v241 = vunpack.c.l.b16 %v169
      %v242 = vunpack.c.l.b16 %v170
      %v243 = vunpack.c.l.b16 %v171
      %v244 = vunpack.c.l.b16 %v172
      %v245 = vunpack.c.l.b16 %v173
      %v246 = vunpack.c.l.b16 %v174
      %v247 = vunpack.c.l.b16 %v175
      %v248 = vunpack.c.l.b16 %v176
      %v249 = vunpack.c.l.b16 %v177
      %v250 = vunpack.c.l.b16 %v178
      %v251 = vunpack.c.l.b16 %v179
      %v252 = vpack.c.b16 %v221, %v220
      %v253 = vpack.c.b16 %v223, %v222
      %v254 = vpack.c.b16 %v225, %v224
      %v255 = vpack.c.b16 %v227, %v226
      %v256 = vpack.c.b16 %v229, %v228
      %v257 = vpack.c.b16 %v231, %v230
      %v258 = vpack.c.b16 %v233, %v232
      %v259 = vpack.c.b16 %v235, %v234
      %v260 = vpack.c.b16 %v237, %v236
      %v261 = vpack.c.b16 %v239, %v238
      %v262 = vpack.c.b16 %v241, %v240
      %v263 = vpack.c.b16 %v243, %v242
      %v264 = vpack.c.b16 %v245, %v244
      %v265 = vpack.c.b16 %v247, %v246
      %v266 = vpack.c.b16 %v249, %v248
      %v267 = vpack.c.b16 %v251, %v250
      %v276 = vunpack.c.l.b16 %v180
      %v277 = vunpack.c.l.b16 %v181
      %v278 = vunpack.c.l.b16 %v182
      %v279 = vunpack.c.l.b16 %v183
      %v280 = vunpack.c.l.b16 %v184
      %v281 = vunpack.c.l.b16 %v185
      %v282 = vunpack.c.l.b16 %v186
      %v283 = vunpack.c.l.b16 %v187
      %v284 = vpack.c.b16 %v277, %v276
      %v285 = vpack.c.b16 %v279, %v278
      %v286 = vpack.c.b16 %v281, %v280
      %v287 = vpack.c.b16 %v283, %v282
      %vm292 = vcmask 523264
      %v294 = vsel %vm292, %v252, 0
      %v297 = vsel %vm292, %v253, 0
      %v300 = vsel %vm292, %v254, 0
      %v303 = vsel %vm292, %v255, 0
      %v306 = vsel %vm292, %v256, 0
      %v309 = vsel %vm292, %v257, 0
      %v312 = vsel %vm292, %v258, 0
      %v315 = vsel %vm292, %v259, 0
      %v318 = vsel %vm292, %v260, 0
      %v321 = vsel %vm292, %v261, 0
      %v324 = vsel %vm292, %v262, 0
      %v327 = vsel %vm292, %v263, 0
      %v330 = vsel %vm292, %v264, 0
      %v333 = vsel %vm292, %v265, 0
      %v336 = vsel %vm292, %v266, 0
      %v339 = vsel %vm292, %v267, 0
      %341 = vmatprep.subr.bf16.mxu0 0
      %342 = vmatpush1.bf16.msra.mxu0 %v284
      %343 = vmatprep.subr.bf16.mxu0 0
      %344 = vmatpush1.bf16.msra.mxu0 %v285
      %345 = vmatprep.subr.bf16.mxu0 0
      %346 = vmatpush1.bf16.msra.mxu0 %v286
      %347 = vmatprep.subr.bf16.mxu0 0
      %348 = vmatpush1.bf16.msra.mxu0 %v287
      %349 = vmatprep.subr.bf16.mxu0 0
      %350 = vmatpush1.bf16.msra.mxu0 0
      %351 = vmatprep.subr.bf16.mxu0 0
      %352 = vmatpush1.bf16.msra.mxu0 0
      %353 = vmatprep.subr.bf16.mxu0 0
      %354 = vmatpush1.bf16.msra.mxu0 0
      %355 = vmatprep.subr.bf16.mxu0 0
      %356 = vmatpush1.bf16.msra.mxu0 0
      %357 = vmatprep.subr.bf16.mxu0 0
      %358 = vmatpush1.bf16.msra.mxu0 0
      %359 = vmatprep.subr.bf16.mxu0 0
      %360 = vmatpush1.bf16.msra.mxu0 0
      %361 = vmatprep.subr.bf16.mxu0 0
      %362 = vmatpush1.bf16.msra.mxu0 0
      %363 = vmatprep.subr.bf16.mxu0 0
      %364 = vmatpush1.bf16.msra.mxu0 0
      %365 = vmatprep.subr.bf16.mxu0 0
      %366 = vmatpush1.bf16.msra.mxu0 0
      %367 = vmatprep.subr.bf16.mxu0 0
      %368 = vmatpush1.bf16.msra.mxu0 0
      %369 = vmatprep.subr.bf16.mxu0 0
      %370 = vmatpush1.bf16.msra.mxu0 0
      %371 = vmatprep.subr.bf16.mxu0 0
      %372 = vmatpush1.bf16.msra.mxu0 0
      %373 = vmatprep.mubr.bf16.mxu0 0
      %374 = vmatmul.mubr.bf16.gmra.mrb[0].mxu0 %v294
      %v375 = vpop.f32.mrb[0].mxu0
      %v376 = vadd.f32 0.0, %v375
      %v377 = vpop.f32.mrb[0].mxu0
      %v378 = vpop.f32.mrb[0].mxu0
      %v379 = vadd.f32 0.0, %v378
      %v380 = vpop.f32.mrb[0].mxu0
      %381 = vmatprep.mubr.bf16.mxu0 0
      %382 = vmatmul.mubr.bf16.gmra.mrb[0].mxu0 %v297
      %v383 = vpop.f32.mrb[0].mxu0
      %v384 = vadd.f32 0.0, %v383
      %v385 = vpop.f32.mrb[0].mxu0
      %v386 = vpop.f32.mrb[0].mxu0
      %v387 = vadd.f32 0.0, %v386
      %v388 = vpop.f32.mrb[0].mxu0
      %389 = vmatprep.mubr.bf16.mxu0 0
      %390 = vmatmul.mubr.bf16.gmra.mrb[0].mxu0 %v300
      %v391 = vpop.f32.mrb[0].mxu0
      %v392 = vadd.f32 0.0, %v391
      %v393 = vpop.f32.mrb[0].mxu0
      %v394 = vpop.f32.mrb[0].mxu0
      %v395 = vadd.f32 0.0, %v394
      %v396 = vpop.f32.mrb[0].mxu0
      %397 = vmatprep.mubr.bf16.mxu0 0
      %398 = vmatmul.mubr.bf16.gmra.mrb[0].mxu0 %v303
      %v399 = vpop.f32.mrb[0].mxu0
      %v400 = vadd.f32 0.0, %v399
      %v401 = vpop.f32.mrb[0].mxu0
      %v402 = vpop.f32.mrb[0].mxu0
      %v403 = vadd.f32 0.0, %v402
      %v404 = vpop.f32.mrb[0].mxu0
      %405 = vmatprep.mubr.bf16.mxu0 0
      %406 = vmatmul.mubr.bf16.gmra.mrb[0].mxu0 %v306
      %v407 = vpop.f32.mrb[0].mxu0
      %v408 = vadd.f32 0.0, %v407
      %v409 = vpop.f32.mrb[0].mxu0
      %v410 = vpop.f32.mrb[0].mxu0
      %v411 = vadd.f32 0.0, %v410
      %v412 = vpop.f32.mrb[0].mxu0
      %413 = vmatprep.mubr.bf16.mxu0 0
      %414 = vmatmul.mubr.bf16.gmra.mrb[0].mxu0 %v309
      %v415 = vpop.f32.mrb[0].mxu0
      %v416 = vadd.f32 0.0, %v415
      %v417 = vpop.f32.mrb[0].mxu0
      %v418 = vpop.f32.mrb[0].mxu0
      %v419 = vadd.f32 0.0, %v418
      %v420 = vpop.f32.mrb[0].mxu0
      %421 = vmatprep.mubr.bf16.mxu0 0
      %422 = vmatmul.mubr.bf16.gmra.mrb[0].mxu0 %v312
      %v423 = vpop.f32.mrb[0].mxu0
      %v424 = vadd.f32 0.0, %v423
      %v425 = vpop.f32.mrb[0].mxu0
      %v426 = vpop.f32.mrb[0].mxu0
      %v427 = vadd.f32 0.0, %v426
      %v428 = vpop.f32.mrb[0].mxu0
      %429 = vmatprep.mubr.bf16.mxu0 0
      %430 = vmatmul.mubr.bf16.gmra.mrb[0].mxu0 %v315
      %v431 = vpop.f32.mrb[0].mxu0
      %v432 = vadd.f32 0.0, %v431
      %v433 = vpop.f32.mrb[0].mxu0
      %v434 = vpop.f32.mrb[0].mxu0
      %v435 = vadd.f32 0.0, %v434
      %v436 = vpop.f32.mrb[0].mxu0
      %437 = vmatprep.mubr.bf16.mxu0 0
      %438 = vmatmul.mubr.bf16.gmra.mrb[0].mxu0 %v318
      %v439 = vpop.f32.mrb[0].mxu0
      %v440 = vadd.f32 0.0, %v439
      %v441 = vpop.f32.mrb[0].mxu0
      %v442 = vpop.f32.mrb[0].mxu0
      %v443 = vadd.f32 0.0, %v442
      %v444 = vpop.f32.mrb[0].mxu0
      %445 = vmatprep.mubr.bf16.mxu0 0
      %446 = vmatmul.mubr.bf16.gmra.mrb[0].mxu0 %v321
      %v447 = vpop.f32.mrb[0].mxu0
      %v448 = vadd.f32 0.0, %v447
      %v449 = vpop.f32.mrb[0].mxu0
      %v450 = vpop.f32.mrb[0].mxu0
      %v451 = vadd.f32 0.0, %v450
      %v452 = vpop.f32.mrb[0].mxu0
      %453 = vmatprep.mubr.bf16.mxu0 0
      %454 = vmatmul.mubr.bf16.gmra.mrb[0].mxu0 %v324
      %v455 = vpop.f32.mrb[0].mxu0
      %v456 = vadd.f32 0.0, %v455
      %v457 = vpop.f32.mrb[0].mxu0
      %v458 = vpop.f32.mrb[0].mxu0
      %v459 = vadd.f32 0.0, %v458
      %v460 = vpop.f32.mrb[0].mxu0
      %461 = vmatprep.mubr.bf16.mxu0 0
      %462 = vmatmul.mubr.bf16.gmra.mrb[0].mxu0 %v327
      %v463 = vpop.f32.mrb[0].mxu0
      %v464 = vadd.f32 0.0, %v463
      %v465 = vpop.f32.mrb[0].mxu0
      %v466 = vpop.f32.mrb[0].mxu0
      %v467 = vadd.f32 0.0, %v466
      %v468 = vpop.f32.mrb[0].mxu0
      %469 = vmatprep.mubr.bf16.mxu0 0
      %470 = vmatmul.mubr.bf16.gmra.mrb[0].mxu0 %v330
      %v471 = vpop.f32.mrb[0].mxu0
      %v472 = vadd.f32 0.0, %v471
      %v473 = vpop.f32.mrb[0].mxu0
      %v474 = vpop.f32.mrb[0].mxu0
      %v475 = vadd.f32 0.0, %v474
      %v476 = vpop.f32.mrb[0].mxu0
      %477 = vmatprep.mubr.bf16.mxu0 0
      %478 = vmatmul.mubr.bf16.gmra.mrb[0].mxu0 %v333
      %v479 = vpop.f32.mrb[0].mxu0
      %v480 = vadd.f32 0.0, %v479
      %v481 = vpop.f32.mrb[0].mxu0
      %v482 = vpop.f32.mrb[0].mxu0
      %v483 = vadd.f32 0.0, %v482
      %v484 = vpop.f32.mrb[0].mxu0
      %485 = vmatprep.mubr.bf16.mxu0 0
      %486 = vmatmul.mubr.bf16.gmra.mrb[0].mxu0 %v336
      %v487 = vpop.f32.mrb[0].mxu0
      %v488 = vadd.f32 0.0, %v487
      %v489 = vpop.f32.mrb[0].mxu0
      %v490 = vpop.f32.mrb[0].mxu0
      %v491 = vadd.f32 0.0, %v490
      %v492 = vpop.f32.mrb[0].mxu0
      %493 = vmatprep.mubr.bf16.mxu0 0
      %494 = vmatmul.mubr.bf16.gmra.mrb[0].mxu0 %v339
      %v495 = vpop.f32.mrb[0].mxu0
      %v496 = vadd.f32 0.0, %v495
      %v497 = vpop.f32.mrb[0].mxu0
      %v498 = vpop.f32.mrb[0].mxu0
      %v499 = vadd.f32 0.0, %v498
      %v500 = vpop.f32.mrb[0].mxu0
      %501 = vdwg.mxu0
      %502 = vst [vmem:[%s145] sm:$0xff] %v376
      %503 = vst [vmem:[%s145 + $0x8] sm:$0xff] %v379
      %504 = vst [vmem:[%s145 + $0x10] sm:$0xff] %v384
      %505 = vst [vmem:[%s145 + $0x18] sm:$0xff] %v387
      %506 = vst [vmem:[%s145 + $0x20] sm:$0xff] %v392
      %507 = vst [vmem:[%s145 + $0x28] sm:$0xff] %v395
      %508 = vst [vmem:[%s145 + $0x30] sm:$0xff] %v400
      %509 = vst [vmem:[%s145 + $0x38] sm:$0xff] %v403
      %510 = vst [vmem:[%s145 + $0x40] sm:$0xff] %v408
      %511 = vst [vmem:[%s145 + $0x48] sm:$0xff] %v411
      %512 = vst [vmem:[%s145 + $0x50] sm:$0xff] %v416
      %513 = vst [vmem:[%s145 + $0x58] sm:$0xff] %v419
      %514 = vst [vmem:[%s145 + $0x60] sm:$0xff] %v424
      %515 = vst [vmem:[%s145 + $0x68] sm:$0xff] %v427
      %516 = vst [vmem:[%s145 + $0x70] sm:$0xff] %v432
      %517 = vst [vmem:[%s145 + $0x78] sm:$0xff] %v435
      %518 = vst [vmem:[%s145 + $0x80] sm:$0xff] %v440
      %519 = vst [vmem:[%s145 + $0x88] sm:$0xff] %v443
      %520 = vst [vmem:[%s145 + $0x90] sm:$0xff] %v448
      %521 = vst [vmem:[%s145 + $0x98] sm:$0xff] %v451
      %522 = vst [vmem:[%s145 + $0xa0] sm:$0xff] %v456
      %523 = vst [vmem:[%s145 + $0xa8] sm:$0xff] %v459
      %524 = vst [vmem:[%s145 + $0xb0] sm:$0xff] %v464
      %525 = vst [vmem:[%s145 + $0xb8] sm:$0xff] %v467
      %526 = vst [vmem:[%s145 + $0xc0] sm:$0xff] %v472
      %527 = vst [vmem:[%s145 + $0xc8] sm:$0xff] %v475
      %528 = vst [vmem:[%s145 + $0xd0] sm:$0xff] %v480
      %529 = vst [vmem:[%s145 + $0xd8] sm:$0xff] %v483
      %530 = vst [vmem:[%s145 + $0xe0] sm:$0xff] %v488
      %531 = vst [vmem:[%s145 + $0xe8] sm:$0xff] %v491
      %532 = vst [vmem:[%s145 + $0xf0] sm:$0xff] %v496
      %533 = vst [vmem:[%s145 + $0xf8] sm:$0xff] %v499
      %s534 = smul.u32 32, %s13
      %p535 = scmp.lt.s32.totalorder %s534, 63
      %s536 = scalar_select %p535, %s534, 63
      %s537 = smul.addr %s536, 8
      %s538 = scalar_lea.vmem %s2, %s537
      // Predicated region
      $region29: #{network_forward.22} parent=27 // pred_check
        %p539 = pneg %p78
      $region30: #{network_forward.22} parent=27 // pred_check_branch
        %541 = sbr.rel (%p539) target = $region32
      $region31: #{network_forward.22} parent=27 // pred_region
        %s542 = smul.u32 32, %s13
      $region32: #{network_forward.22} parent=27 // pred_fallthru
        _
    $region28: #{network_forward.22} parent=5 // pred_fallthru
      _
    %p543 = scmp.le.s32.totalorder 2, %s8
    // Predicated region
    $region33: #{network_forward.22} parent=5 // pred_check
      %p544 = pneg %p543
    $region34: #{network_forward.22} parent=5 // pred_check_branch
      %546 = sbr.rel (%p544) target = $region36
    $region35: #{network_forward.22} parent=5 // pred_region
      %s547 = ssub.s32 %s8, 2
      // Predicated region
      $region37: #{network_forward.22} parent=35 // pred_check
        %p548 = pneg %p84
      $region38: #{network_forward.22} parent=35 // pred_check_branch
        %550 = sbr.rel (%p548) target = $region40
      $region39: #{network_forward.22} parent=35 // pred_region
        %s551 = smul.u32 32, %s14
        %p552 = scmp.lt.s32.totalorder %s551, 63
        %s553 = scalar_select %p552, %s551, 63
        %s554 = smul.addr %s553, 8
        %s555 = scalar_lea.vmem %s2, %s554
      $region40: #{network_forward.22} parent=35 // pred_fallthru
        _
    $region36: #{network_forward.22} parent=5 // pred_fallthru
      _
  $region6: #{network_forward.22} parent=0 // loop_footer
    %s12 = sadd.s32 1, %s8
  $region7: #{network_forward.22} parent=0 // loop_footer_branch
    %7 = sbr.rel target = $region3
  $region8: #{network_forward.22} parent=0 // loop_exit
    _

// kernel: network_forward.28
$region0: #{network_forward.28}
  #allocation0 [shape = 'u32[]', space=smem, size = 0x4, offset = 0x4, fixed_abs, tag = 'smem constant byte address 0x4 - core index']
  #allocation1 [shape = 'u32[144,128]{1,0:T(1,128)}', space=vmem, size = 0x12000, scoped, tag = 'internal scratch']
  %s0 = inlined_call_operand.vmem [shape: bf16[512,288], index: 0, kind: input, shape index: {}]
  %s1 = inlined_call_operand.vmem [shape: bf16[288,128], index: 1, kind: input, shape index: {}]
  %s2 = inlined_call_operand.vmem [shape: f32[512,128], index: 2, kind: output, shape index: {}]
  %s3 = sld [smem:[#allocation0]]
  $region41: #{network_forward.28} parent=0
    _
  %s5 = ssub.s32 1, %s3
  %s6 = scalar_select 0, %s5, %s3
  loop: start=0, step=1, limit=4
  $region2: #{network_forward.28} parent=0 // loop_pre_header
    _
  $region3: #{network_forward.28} parent=0 // loop_header
    %s8 = sphi 0, %s12
    %p9 = scmp.ge.s32.totalorder %s8, 4
    %s18 = sphi 0, %s20
    %s21 = sphi 0, %s18
    %s22 = sphi 0, %s21
    %s38 = sphi 0, %s22
    %s42 = sphi 0, %s42
    %s44 = sphi 0, %s42
    %s45 = sphi 0, %s44
    %s59 = sphi 0, %s45
    %s65 = sphi 0, %s67
    %s68 = sphi 0, %s65
    %s69 = sphi 0, %s68
    %s85 = sphi 0, %s69
  $region4: #{network_forward.28} parent=0 // loop_header_branch
    %11 = sbr.rel (%p9) target = $region8
  $region5: #{network_forward.28} parent=0 // loop_body
    %s13 = ssub.s32 %s8, 1
    %s14 = ssub.s32 %s8, 2
    %s15 = sadd.s32 %s8, 1
    %s16 = ssub.s32 %s8, %s15
    %p17 = scmp.eq.s32.totalorder %s16, 0
    %s19 = sadd.s32 %s18, 1
    %s20 = scalar_select %p17, %s18, %s19
    %p23 = pneg %p17
    %p24 = scmp.eq.s32.totalorder %s8, 1
    %p25 = por %p23, %p24
    %p26 = scmp.ne.s32.totalorder %s18, %s21
    %p27 = scmp.eq.s32.totalorder %s8, 0
    %p28 = por %p26, %p27
    %p29 = scmp.ne.s32.totalorder %s18, %s21
    %p30 = scmp.eq.s32.totalorder %s13, 1
    %p31 = por %p29, %p30
    %p32 = scmp.ne.s32.totalorder %s21, %s22
    %p33 = scmp.eq.s32.totalorder %s13, 0
    %p34 = por %p32, %p33
    %p35 = scmp.ne.s32.totalorder %s21, %s22
    %p36 = scmp.eq.s32.totalorder %s14, 1
    %p37 = por %p35, %p36
    %p39 = scmp.ne.s32.totalorder %s22, %s38
    %p40 = scmp.eq.s32.totalorder %s14, 0
    %p41 = por %p39, %p40
    %s43 = sadd.s32 %s42, 1
    %p46 = scmp.eq.s32.totalorder %s8, 1
    %p47 = scmp.ne.s32.totalorder %s42, %s44
    %p48 = scmp.eq.s32.totalorder %s8, 0
    %p49 = por %p47, %p48
    %p50 = scmp.ne.s32.totalorder %s42, %s44
    %p51 = scmp.eq.s32.totalorder %s13, 1
    %p52 = por %p50, %p51
    %p53 = scmp.ne.s32.totalorder %s44, %s45
    %p54 = scmp.eq.s32.totalorder %s13, 0
    %p55 = por %p53, %p54
    %p56 = scmp.ne.s32.totalorder %s44, %s45
    %p57 = scmp.eq.s32.totalorder %s14, 1
    %p58 = por %p56, %p57
    %p60 = scmp.ne.s32.totalorder %s45, %s59
    %p61 = scmp.eq.s32.totalorder %s14, 0
    %p62 = por %p60, %p61
    %s63 = ssub.s32 %s8, %s15
    %p64 = scmp.eq.s32.totalorder %s63, 0
    %s66 = sadd.s32 %s65, 1
    %s67 = scalar_select %p64, %s65, %s66
    %p70 = pneg %p64
    %p71 = scmp.eq.s32.totalorder %s8, 1
    %p72 = por %p70, %p71
    %p73 = scmp.ne.s32.totalorder %s65, %s68
    %p74 = scmp.eq.s32.totalorder %s8, 0
    %p75 = por %p73, %p74
    %p76 = scmp.ne.s32.totalorder %s65, %s68
    %p77 = scmp.eq.s32.totalorder %s13, 1
    %p78 = por %p76, %p77
    %p79 = scmp.ne.s32.totalorder %s68, %s69
    %p80 = scmp.eq.s32.totalorder %s13, 0
    %p81 = por %p79, %p80
    %p82 = scmp.ne.s32.totalorder %s68, %s69
    %p83 = scmp.eq.s32.totalorder %s14, 1
    %p84 = por %p82, %p83
    %p86 = scmp.ne.s32.totalorder %s69, %s85
    %p87 = scmp.eq.s32.totalorder %s14, 0
    %p88 = por %p86, %p87
    %p89 = scmp.le.s32.totalorder 1, %s8
    %p90 = scmp.lt.s32.totalorder %s8, 3
    %p91 = pnand %p89, %p90
    %p92 = pneg %p91
    // Predicated region
    $region9: #{network_forward.28} parent=5 // pred_check
      _
    $region10: #{network_forward.28} parent=5 // pred_check_branch
      %94 = sbr.rel (%p91) target = $region12
    $region11: #{network_forward.28} parent=5 // pred_region
      %s95 = ssub.s32 %s8, 1
      // Predicated region
      $region13: #{network_forward.28} parent=11 // pred_check
        %p96 = pneg %p55
      $region14: #{network_forward.28} parent=11 // pred_check_branch
        %98 = sbr.rel (%p96) target = $region16
      $region15: #{network_forward.28} parent=11 // pred_region
        _
      $region16: #{network_forward.28} parent=11 // pred_fallthru
        _
    $region12: #{network_forward.28} parent=5 // pred_fallthru
      _
    %p99 = scmp.lt.s32.totalorder %s8, 2
    // Predicated region
    $region17: #{network_forward.28} parent=5 // pred_check
      %p100 = pneg %p99
    $region18: #{network_forward.28} parent=5 // pred_check_branch
      %102 = sbr.rel (%p100) target = $region20
    $region19: #{network_forward.28} parent=5 // pred_region
      // Predicated region
      $region21: #{network_forward.28} parent=19 // pred_check
        %p103 = pneg %p28
      $region22: #{network_forward.28} parent=19 // pred_check_branch
        %105 = sbr.rel (%p103) target = $region24
      $region23: #{network_forward.28} parent=19 // pred_region
        %s106 = smul.u32 32, %s8
        %p107 = scmp.lt.s32.totalorder %s106, 63
        %s108 = scalar_select %p107, %s106, 63
        %s109 = smul.addr %s108, 3
        %s110 = smul.addr %s109, 4
        %s111 = scalar_lea.vmem %s0, %s110
        %s112 = smul.u32 32, %s8
      $region24: #{network_forward.28} parent=19 // pred_fallthru
        _
    $region20: #{network_forward.28} parent=5 // pred_fallthru
      _
    %p113 = scmp.le.s32.totalorder 1, %s8
    %p114 = scmp.lt.s32.totalorder %s8, 3
    %p115 = pnand %p113, %p114
    %p116 = pneg %p115
    // Predicated region
    $region25: #{network_forward.28} parent=5 // pred_check
      _
    $region26: #{network_forward.28} parent=5 // pred_check_branch
      %118 = sbr.rel (%p115) target = $region28
    $region27: #{network_forward.28} parent=5 // pred_region
      %s119 = ssub.s32 %s8, 1
      %s120 = smul.u32 32, %s13
      %p121 = scmp.lt.s32.totalorder %s120, 63
      %s122 = scalar_select %p121, %s120, 63
      %s123 = smul.addr %s122, 3
      %s124 = smul.addr %s123, 4
      %s125 = scalar_lea.vmem %s0, %s124
      %p126 = pneg %p34
      %p127 = pneg %p31
      %p128 = pneg %p55
      %p129 = pneg %p52
      %p130 = pneg %p81
      %p131 = pneg %p78
      %s132 = smul.u32 32, %s13
      %p133 = scmp.lt.s32.totalorder %s132, 63
      %s134 = scalar_select %p133, %s132, 63
      %s135 = smul.addr %s134, 8
      %s136 = scalar_lea.vmem %s2, %s135
      %s137 = smul.u32 32, %s13
      %p138 = scmp.lt.s32.totalorder %s137, 63
      %s139 = scalar_select %p138, %s137, 63
      %s140 = smul.addr %s139, 3
      %s141 = smul.addr %s140, 4
      %s142 = scalar_lea.vmem %s0, %s141
      %s143 = smul.u32 32, %s13
      %s144 = smul.u32 32, %s13
      %p145 = scmp.lt.s32.totalorder %s144, 63
      %s146 = scalar_select %p145, %s144, 63
      %s147 = smul.addr %s146, 8
      %s148 = scalar_lea.vmem %s2, %s147
      %s149 = smul.u32 32, %s13
      %v151 = vld [vmem:[%s142] sm:$0xff]
      %v152 = vld [vmem:[%s142 + $0x8] sm:$0xf]
      %v153 = vld [vmem:[%s142 + $0xc] sm:$0xff]
      %v154 = vld [vmem:[%s142 + $0x14] sm:$0xf]
      %v155 = vld [vmem:[%s142 + $0x18] sm:$0xff]
      %v156 = vld [vmem:[%s142 + $0x20] sm:$0xf]
      %v157 = vld [vmem:[%s142 + $0x24] sm:$0xff]
      %v158 = vld [vmem:[%s142 + $0x2c] sm:$0xf]
      %v159 = vld [vmem:[%s142 + $0x30] sm:$0xff]
      %v160 = vld [vmem:[%s142 + $0x38] sm:$0xf]
      %v161 = vld [vmem:[%s142 + $0x3c] sm:$0xff]
      %v162 = vld [vmem:[%s142 + $0x44] sm:$0xf]
      %v163 = vld [vmem:[%s142 + $0x48] sm:$0xff]
      %v164 = vld [vmem:[%s142 + $0x50] sm:$0xf]
      %v165 = vld [vmem:[%s142 + $0x54] sm:$0xff]
      %v166 = vld [vmem:[%s142 + $0x5c] sm:$0xf]
      %v167 = vld [vmem:[%s142 + $0x60] sm:$0xff]
      %v168 = vld [vmem:[%s142 + $0x68] sm:$0xf]
      %v169 = vld [vmem:[%s142 + $0x6c] sm:$0xff]
      %v170 = vld [vmem:[%s142 + $0x74] sm:$0xf]
      %v171 = vld [vmem:[%s142 + $0x78] sm:$0xff]
      %v172 = vld [vmem:[%s142 + $0x80] sm:$0xf]
      %v173 = vld [vmem:[%s142 + $0x84] sm:$0xff]
      %v174 = vld [vmem:[%s142 + $0x8c] sm:$0xf]
      %v175 = vld [vmem:[%s142 + $0x90] sm:$0xff]
      %v176 = vld [vmem:[%s142 + $0x98] sm:$0xf]
      %v177 = vld [vmem:[%s142 + $0x9c] sm:$0xff]
      %v178 = vld [vmem:[%s142 + $0xa4] sm:$0xf]
      %v179 = vld [vmem:[%s142 + $0xa8] sm:$0xff]
      %v180 = vld [vmem:[%s142 + $0xb0] sm:$0xf]
      %v181 = vld [vmem:[%s142 + $0xb4] sm:$0xff]
      %v182 = vld [vmem:[%s142 + $0xbc] sm:$0xf]
      %v183 = vld [vmem:[%s142 + $0xc0] sm:$0xff]
      %v184 = vld [vmem:[%s142 + $0xc8] sm:$0xf]
      %v185 = vld [vmem:[%s142 + $0xcc] sm:$0xff]
      %v186 = vld [vmem:[%s142 + $0xd4] sm:$0xf]
      %v187 = vld [vmem:[%s142 + $0xd8] sm:$0xff]
      %v188 = vld [vmem:[%s142 + $0xe0] sm:$0xf]
      %v189 = vld [vmem:[%s142 + $0xe4] sm:$0xff]
      %v190 = vld [vmem:[%s142 + $0xec] sm:$0xf]
      %v191 = vld [vmem:[%s142 + $0xf0] sm:$0xff]
      %v192 = vld [vmem:[%s142 + $0xf8] sm:$0xf]
      %v193 = vld [vmem:[%s142 + $0xfc] sm:$0xff]
      %v194 = vld [vmem:[%s142 + $0x104] sm:$0xf]
      %v195 = vld [vmem:[%s142 + $0x108] sm:$0xff]
      %v196 = vld [vmem:[%s142 + $0x110] sm:$0xf]
      %v197 = vld [vmem:[%s142 + $0x114] sm:$0xff]
      %v198 = vld [vmem:[%s142 + $0x11c] sm:$0xf]
      %v199 = vld [vmem:[%s142 + $0x120] sm:$0xff]
      %v200 = vld [vmem:[%s142 + $0x128] sm:$0xf]
      %v201 = vld [vmem:[%s142 + $0x12c] sm:$0xff]
      %v202 = vld [vmem:[%s142 + $0x134] sm:$0xf]
      %v203 = vld [vmem:[%s142 + $0x138] sm:$0xff]
      %v204 = vld [vmem:[%s142 + $0x140] sm:$0xf]
      %v205 = vld [vmem:[%s142 + $0x144] sm:$0xff]
      %v206 = vld [vmem:[%s142 + $0x14c] sm:$0xf]
      %v207 = vld [vmem:[%s142 + $0x150] sm:$0xff]
      %v208 = vld [vmem:[%s142 + $0x158] sm:$0xf]
      %v209 = vld [vmem:[%s142 + $0x15c] sm:$0xff]
      %v210 = vld [vmem:[%s142 + $0x164] sm:$0xf]
      %v211 = vld [vmem:[%s142 + $0x168] sm:$0xff]
      %v212 = vld [vmem:[%s142 + $0x170] sm:$0xf]
      %v213 = vld [vmem:[%s142 + $0x174] sm:$0xff]
      %v214 = vld [vmem:[%s142 + $0x17c] sm:$0xf]
      %v215 = vld [vmem:[%s1] sm:$0xf]
      %v216 = vld [vmem:[%s1 + $0x4] sm:$0xf]
      %v217 = vld [vmem:[%s1 + $0x8] sm:$0xf]
      %v218 = vld [vmem:[%s1 + $0xc] sm:$0xf]
      %v219 = vld [vmem:[%s1 + $0x10] sm:$0xf]
      %v220 = vld [vmem:[%s1 + $0x14] sm:$0xf]
      %v221 = vld [vmem:[%s1 + $0x18] sm:$0xf]
      %v222 = vld [vmem:[%s1 + $0x1c] sm:$0xf]
      %v223 = vld [vmem:[%s1 + $0x20] sm:$0xf]
      %v224 = vld [vmem:[%s1 + $0x24] sm:$0xf]
      %v225 = vld [vmem:[%s1 + $0x28] sm:$0xf]
      %v226 = vld [vmem:[%s1 + $0x2c] sm:$0xf]
      %v227 = vld [vmem:[%s1 + $0x30] sm:$0xf]
      %v228 = vld [vmem:[%s1 + $0x34] sm:$0xf]
      %v229 = vld [vmem:[%s1 + $0x38] sm:$0xf]
      %v230 = vld [vmem:[%s1 + $0x3c] sm:$0xf]
      %v231 = vld [vmem:[%s1 + $0x40] sm:$0xf]
      %v232 = vld [vmem:[%s1 + $0x44] sm:$0xf]
      %v233 = vld [vmem:[%s1 + $0x48] sm:$0xf]
      %v234 = vld [vmem:[%s1 + $0x4c] sm:$0xf]
      %v235 = vld [vmem:[%s1 + $0x50] sm:$0xf]
      %v236 = vld [vmem:[%s1 + $0x54] sm:$0xf]
      %v237 = vld [vmem:[%s1 + $0x58] sm:$0xf]
      %v238 = vld [vmem:[%s1 + $0x5c] sm:$0xf]
      %v239 = vld [vmem:[%s1 + $0x60] sm:$0xf]
      %v240 = vld [vmem:[%s1 + $0x64] sm:$0xf]
      %v241 = vld [vmem:[%s1 + $0x68] sm:$0xf]
      %v242 = vld [vmem:[%s1 + $0x6c] sm:$0xf]
      %v243 = vld [vmem:[%s1 + $0x70] sm:$0xf]
      %v244 = vld [vmem:[%s1 + $0x74] sm:$0xf]
      %v245 = vld [vmem:[%s1 + $0x78] sm:$0xf]
      %v246 = vld [vmem:[%s1 + $0x7c] sm:$0xf]
      %v247 = vld [vmem:[%s1 + $0x80] sm:$0xf]
      %v248 = vld [vmem:[%s1 + $0x84] sm:$0xf]
      %v249 = vld [vmem:[%s1 + $0x88] sm:$0xf]
      %v250 = vld [vmem:[%s1 + $0x8c] sm:$0xf]
      %v315 = vunpack.c.l.b16 %v151
      %v316 = vunpack.c.h.b16 %v151
      %v317 = vunpack.c.l.b16 %v152
      %v318 = vunpack.c.l.b16 %v153
      %v319 = vunpack.c.h.b16 %v153
      %v320 = vunpack.c.l.b16 %v154
      %v321 = vunpack.c.l.b16 %v155
      %v322 = vunpack.c.h.b16 %v155
      %v323 = vunpack.c.l.b16 %v156
      %v324 = vunpack.c.l.b16 %v157
      %v325 = vunpack.c.h.b16 %v157
      %v326 = vunpack.c.l.b16 %v158
      %v327 = vunpack.c.l.b16 %v159
      %v328 = vunpack.c.h.b16 %v159
      %v329 = vunpack.c.l.b16 %v160
      %v330 = vunpack.c.l.b16 %v161
      %v331 = vunpack.c.h.b16 %v161
      %v332 = vunpack.c.l.b16 %v162
      %v333 = vunpack.c.l.b16 %v163
      %v334 = vunpack.c.h.b16 %v163
      %v335 = vunpack.c.l.b16 %v164
      %v336 = vunpack.c.l.b16 %v165
      %v337 = vunpack.c.h.b16 %v165
      %v338 = vunpack.c.l.b16 %v166
      %v339 = vunpack.c.l.b16 %v167
      %v340 = vunpack.c.h.b16 %v167
      %v341 = vunpack.c.l.b16 %v168
      %v342 = vunpack.c.l.b16 %v169
      %v343 = vunpack.c.h.b16 %v169
      %v344 = vunpack.c.l.b16 %v170
      %v345 = vunpack.c.l.b16 %v171
      %v346 = vunpack.c.h.b16 %v171
      %v347 = vunpack.c.l.b16 %v172
      %v348 = vunpack.c.l.b16 %v173
      %v349 = vunpack.c.h.b16 %v173
      %v350 = vunpack.c.l.b16 %v174
      %v351 = vunpack.c.l.b16 %v175
      %v352 = vunpack.c.h.b16 %v175
      %v353 = vunpack.c.l.b16 %v176
      %v354 = vunpack.c.l.b16 %v177
      %v355 = vunpack.c.h.b16 %v177
      %v356 = vunpack.c.l.b16 %v178
      %v357 = vunpack.c.l.b16 %v179
      %v358 = vunpack.c.h.b16 %v179
      %v359 = vunpack.c.l.b16 %v180
      %v360 = vunpack.c.l.b16 %v181
      %v361 = vunpack.c.h.b16 %v181
      %v362 = vunpack.c.l.b16 %v182
      %v363 = vunpack.c.l.b16 %v183
      %v364 = vunpack.c.h.b16 %v183
      %v365 = vunpack.c.l.b16 %v184
      %v366 = vunpack.c.l.b16 %v185
      %v367 = vunpack.c.h.b16 %v185
      %v368 = vunpack.c.l.b16 %v186
      %v369 = vunpack.c.l.b16 %v187
      %v370 = vunpack.c.h.b16 %v187
      %v371 = vunpack.c.l.b16 %v188
      %v372 = vunpack.c.l.b16 %v189
      %v373 = vunpack.c.h.b16 %v189
      %v374 = vunpack.c.l.b16 %v190
      %v375 = vunpack.c.l.b16 %v191
      %v376 = vunpack.c.h.b16 %v191
      %v377 = vunpack.c.l.b16 %v192
      %v378 = vunpack.c.l.b16 %v193
      %v379 = vunpack.c.h.b16 %v193
      %v380 = vunpack.c.l.b16 %v194
      %v381 = vunpack.c.l.b16 %v195
      %v382 = vunpack.c.h.b16 %v195
      %v383 = vunpack.c.l.b16 %v196
      %v384 = vunpack.c.l.b16 %v197
      %v385 = vunpack.c.h.b16 %v197
      %v386 = vunpack.c.l.b16 %v198
      %v387 = vunpack.c.l.b16 %v199
      %v388 = vunpack.c.h.b16 %v199
      %v389 = vunpack.c.l.b16 %v200
      %v390 = vunpack.c.l.b16 %v201
      %v391 = vunpack.c.h.b16 %v201
      %v392 = vunpack.c.l.b16 %v202
      %v393 = vunpack.c.l.b16 %v203
      %v394 = vunpack.c.h.b16 %v203
      %v395 = vunpack.c.l.b16 %v204
      %v396 = vunpack.c.l.b16 %v205
      %v397 = vunpack.c.h.b16 %v205
      %v398 = vunpack.c.l.b16 %v206
      %v399 = vunpack.c.l.b16 %v207
      %v400 = vunpack.c.h.b16 %v207
      %v401 = vunpack.c.l.b16 %v208
      %v402 = vunpack.c.l.b16 %v209
      %v403 = vunpack.c.h.b16 %v209
      %v404 = vunpack.c.l.b16 %v210
      %v405 = vunpack.c.l.b16 %v211
      %v406 = vunpack.c.h.b16 %v211
      %v407 = vunpack.c.l.b16 %v212
      %v408 = vunpack.c.l.b16 %v213
      %v409 = vunpack.c.h.b16 %v213
      %v410 = vunpack.c.l.b16 %v214
      %v411 = vpack.c.b16 %v318, %v315
      %v412 = vpack.c.b16 %v319, %v316
      %v413 = vpack.c.b16 %v320, %v317
      %v414 = vpack.c.b16 %v324, %v321
      %v415 = vpack.c.b16 %v325, %v322
      %v416 = vpack.c.b16 %v326, %v323
      %v417 = vpack.c.b16 %v330, %v327
      %v418 = vpack.c.b16 %v331, %v328
      %v419 = vpack.c.b16 %v332, %v329
      %v420 = vpack.c.b16 %v336, %v333
      %v421 = vpack.c.b16 %v337, %v334
      %v422 = vpack.c.b16 %v338, %v335
      %v423 = vpack.c.b16 %v342, %v339
      %v424 = vpack.c.b16 %v343, %v340
      %v425 = vpack.c.b16 %v344, %v341
      %v426 = vpack.c.b16 %v348, %v345
      %v427 = vpack.c.b16 %v349, %v346
      %v428 = vpack.c.b16 %v350, %v347
      %v429 = vpack.c.b16 %v354, %v351
      %v430 = vpack.c.b16 %v355, %v352
      %v431 = vpack.c.b16 %v356, %v353
      %v432 = vpack.c.b16 %v360, %v357
      %v433 = vpack.c.b16 %v361, %v358
      %v434 = vpack.c.b16 %v362, %v359
      %v435 = vpack.c.b16 %v366, %v363
      %v436 = vpack.c.b16 %v367, %v364
      %v437 = vpack.c.b16 %v368, %v365
      %v438 = vpack.c.b16 %v372, %v369
      %v439 = vpack.c.b16 %v373, %v370
      %v440 = vpack.c.b16 %v374, %v371
      %v441 = vpack.c.b16 %v378, %v375
      %v442 = vpack.c.b16 %v379, %v376
      %v443 = vpack.c.b16 %v380, %v377
      %v444 = vpack.c.b16 %v384, %v381
      %v445 = vpack.c.b16 %v385, %v382
      %v446 = vpack.c.b16 %v386, %v383
      %v447 = vpack.c.b16 %v390, %v387
      %v448 = vpack.c.b16 %v391, %v388
      %v449 = vpack.c.b16 %v392, %v389
      %v450 = vpack.c.b16 %v396, %v393
      %v451 = vpack.c.b16 %v397, %v394
      %v452 = vpack.c.b16 %v398, %v395
      %v453 = vpack.c.b16 %v402, %v399
      %v454 = vpack.c.b16 %v403, %v400
      %v455 = vpack.c.b16 %v404, %v401
      %v456 = vpack.c.b16 %v408, %v405
      %v457 = vpack.c.b16 %v409, %v406
      %v458 = vpack.c.b16 %v410, %v407
      %v527 = vunpack.c.l.b16 %v215
      %v528 = vunpack.c.l.b16 %v216
      %v529 = vunpack.c.l.b16 %v217
      %v530 = vunpack.c.l.b16 %v218
      %v531 = vunpack.c.l.b16 %v219
      %v532 = vunpack.c.l.b16 %v220
      %v533 = vunpack.c.l.b16 %v221
      %v534 = vunpack.c.l.b16 %v222
      %v535 = vunpack.c.l.b16 %v223
      %v536 = vunpack.c.l.b16 %v224
      %v537 = vunpack.c.l.b16 %v225
      %v538 = vunpack.c.l.b16 %v226
      %v539 = vunpack.c.l.b16 %v227
      %v540 = vunpack.c.l.b16 %v228
      %v541 = vunpack.c.l.b16 %v229
      %v542 = vunpack.c.l.b16 %v230
      %v543 = vunpack.c.l.b16 %v231
      %v544 = vunpack.c.l.b16 %v232
      %v545 = vunpack.c.l.b16 %v233
      %v546 = vunpack.c.l.b16 %v234
      %v547 = vunpack.c.l.b16 %v235
      %v548 = vunpack.c.l.b16 %v236
      %v549 = vunpack.c.l.b16 %v237
      %v550 = vunpack.c.l.b16 %v238
      %v551 = vunpack.c.l.b16 %v239
      %v552 = vunpack.c.l.b16 %v240
      %v553 = vunpack.c.l.b16 %v241
      %v554 = vunpack.c.l.b16 %v242
      %v555 = vunpack.c.l.b16 %v243
      %v556 = vunpack.c.l.b16 %v244
      %v557 = vunpack.c.l.b16 %v245
      %v558 = vunpack.c.l.b16 %v246
      %v559 = vunpack.c.l.b16 %v247
      %v560 = vunpack.c.l.b16 %v248
      %v561 = vunpack.c.l.b16 %v249
      %v562 = vunpack.c.l.b16 %v250
      %v563 = vpack.c.b16 %v528, %v527
      %v564 = vpack.c.b16 %v530, %v529
      %v565 = vpack.c.b16 %v532, %v531
      %v566 = vpack.c.b16 %v534, %v533
      %v567 = vpack.c.b16 %v536, %v535
      %v568 = vpack.c.b16 %v538, %v537
      %v569 = vpack.c.b16 %v540, %v539
      %v570 = vpack.c.b16 %v542, %v541
      %v571 = vpack.c.b16 %v544, %v543
      %v572 = vpack.c.b16 %v546, %v545
      %v573 = vpack.c.b16 %v548, %v547
      %v574 = vpack.c.b16 %v550, %v549
      %v575 = vpack.c.b16 %v552, %v551
      %v576 = vpack.c.b16 %v554, %v553
      %v577 = vpack.c.b16 %v556, %v555
      %v578 = vpack.c.b16 %v558, %v557
      %v579 = vpack.c.b16 %v560, %v559
      %v580 = vpack.c.b16 %v562, %v561
      %vm599 = vcmask 261120
      %v601 = vsel %vm599, %v413, 0
      %v604 = vsel %vm599, %v416, 0
      %v607 = vsel %vm599, %v419, 0
      %v610 = vsel %vm599, %v422, 0
      %v613 = vsel %vm599, %v425, 0
      %v616 = vsel %vm599, %v428, 0
      %v619 = vsel %vm599, %v431, 0
      %v622 = vsel %vm599, %v434, 0
      %v625 = vsel %vm599, %v437, 0
      %v628 = vsel %vm599, %v440, 0
      %v631 = vsel %vm599, %v443, 0
      %v634 = vsel %vm599, %v446, 0
      %v637 = vsel %vm599, %v449, 0
      %v640 = vsel %vm599, %v452, 0
      %v643 = vsel %vm599, %v455, 0
      %v646 = vsel %vm599, %v458, 0
      %648 = vmatprep.subr.bf16.mxu0 0
      %649 = vmatpush1.bf16.msra.mxu0 %v563
      %650 = vmatprep.subr.bf16.mxu0 0
      %651 = vmatpush1.bf16.msra.mxu0 %v564
      %652 = vmatprep.subr.bf16.mxu0 0
      %653 = vmatpush1.bf16.msra.mxu0 %v565
      %654 = vmatprep.subr.bf16.mxu0 0
      %655 = vmatpush1.bf16.msra.mxu0 %v566
      %656 = vmatprep.subr.bf16.mxu0 0
      %657 = vmatpush1.bf16.msra.mxu0 %v567
      %658 = vmatprep.subr.bf16.mxu0 0
      %659 = vmatpush1.bf16.msra.mxu0 %v568
      %660 = vmatprep.subr.bf16.mxu0 0
      %661 = vmatpush1.bf16.msra.mxu0 %v569
      %662 = vmatprep.subr.bf16.mxu0 0
      %663 = vmatpush1.bf16.msra.mxu0 %v570
      %664 = vmatprep.subr.bf16.mxu0 0
      %665 = vmatpush1.bf16.msra.mxu0 %v571
      %666 = vmatprep.subr.bf16.mxu0 0
      %667 = vmatpush1.bf16.msra.mxu0 %v572
      %668 = vmatprep.subr.bf16.mxu0 0
      %669 = vmatpush1.bf16.msra.mxu0 %v573
      %670 = vmatprep.subr.bf16.mxu0 0
      %671 = vmatpush1.bf16.msra.mxu0 %v574
      %672 = vmatprep.subr.bf16.mxu0 0
      %673 = vmatpush1.bf16.msra.mxu0 %v575
      %674 = vmatprep.subr.bf16.mxu0 0
      %675 = vmatpush1.bf16.msra.mxu0 %v576
      %676 = vmatprep.subr.bf16.mxu0 0
      %677 = vmatpush1.bf16.msra.mxu0 %v577
      %678 = vmatprep.subr.bf16.mxu0 0
      %679 = vmatpush1.bf16.msra.mxu0 %v578
      %680 = vmatprep.mubr.bf16.mxu0 %v412
      %681 = vmatmul.mubr.bf16.gmra.mrb[0].mxu0 %v411
      %v682 = vpop.f32.mrb[0].mxu0
      %v683 = vadd.f32 0.0, %v682
      %v684 = vpop.f32.mrb[0].mxu0
      %v685 = vpop.f32.mrb[0].mxu0
      %v686 = vadd.f32 0.0, %v685
      %v687 = vpop.f32.mrb[0].mxu0
      %688 = vmatprep.mubr.bf16.mxu0 %v415
      %689 = vmatmul.mubr.bf16.gmra.mrb[0].mxu0 %v414
      %v690 = vpop.f32.mrb[0].mxu0
      %v691 = vadd.f32 0.0, %v690
      %v692 = vpop.f32.mrb[0].mxu0
      %v693 = vpop.f32.mrb[0].mxu0
      %v694 = vadd.f32 0.0, %v693
      %v695 = vpop.f32.mrb[0].mxu0
      %696 = vmatprep.mubr.bf16.mxu0 %v418
      %697 = vmatmul.mubr.bf16.gmra.mrb[0].mxu0 %v417
      %v698 = vpop.f32.mrb[0].mxu0
      %v699 = vadd.f32 0.0, %v698
      %v700 = vpop.f32.mrb[0].mxu0
      %v701 = vpop.f32.mrb[0].mxu0
      %v702 = vadd.f32 0.0, %v701
      %v703 = vpop.f32.mrb[0].mxu0
      %704 = vmatprep.mubr.bf16.mxu0 %v421
      %705 = vmatmul.mubr.bf16.gmra.mrb[0].mxu0 %v420
      %v706 = vpop.f32.mrb[0].mxu0
      %v707 = vadd.f32 0.0, %v706
      %v708 = vpop.f32.mrb[0].mxu0
      %v709 = vpop.f32.mrb[0].mxu0
      %v710 = vadd.f32 0.0, %v709
      %v711 = vpop.f32.mrb[0].mxu0
      %712 = vmatprep.mubr.bf16.mxu0 %v424
      %713 = vmatmul.mubr.bf16.gmra.mrb[0].mxu0 %v423
      %v714 = vpop.f32.mrb[0].mxu0
      %v715 = vadd.f32 0.0, %v714
      %v716 = vpop.f32.mrb[0].mxu0
      %v717 = vpop.f32.mrb[0].mxu0
      %v718 = vadd.f32 0.0, %v717
      %v719 = vpop.f32.mrb[0].mxu0
      %720 = vmatprep.mubr.bf16.mxu0 %v427
      %721 = vmatmul.mubr.bf16.gmra.mrb[0].mxu0 %v426
      %v722 = vpop.f32.mrb[0].mxu0
      %v723 = vadd.f32 0.0, %v722
      %v724 = vpop.f32.mrb[0].mxu0
      %v725 = vpop.f32.mrb[0].mxu0
      %v726 = vadd.f32 0.0, %v725
      %v727 = vpop.f32.mrb[0].mxu0
      %728 = vmatprep.mubr.bf16.mxu0 %v430
      %729 = vmatmul.mubr.bf16.gmra.mrb[0].mxu0 %v429
      %v730 = vpop.f32.mrb[0].mxu0
      %v731 = vadd.f32 0.0, %v730
      %v732 = vpop.f32.mrb[0].mxu0
      %v733 = vpop.f32.mrb[0].mxu0
      %v734 = vadd.f32 0.0, %v733
      %v735 = vpop.f32.mrb[0].mxu0
      %736 = vmatprep.mubr.bf16.mxu0 %v433
      %737 = vmatmul.mubr.bf16.gmra.mrb[0].mxu0 %v432
      %v738 = vpop.f32.mrb[0].mxu0
      %v739 = vadd.f32 0.0, %v738
      %v740 = vpop.f32.mrb[0].mxu0
      %v741 = vpop.f32.mrb[0].mxu0
      %v742 = vadd.f32 0.0, %v741
      %v743 = vpop.f32.mrb[0].mxu0
      %744 = vmatprep.mubr.bf16.mxu0 %v436
      %745 = vmatmul.mubr.bf16.gmra.mrb[0].mxu0 %v435
      %v746 = vpop.f32.mrb[0].mxu0
      %v747 = vadd.f32 0.0, %v746
      %v748 = vpop.f32.mrb[0].mxu0
      %v749 = vpop.f32.mrb[0].mxu0
      %v750 = vadd.f32 0.0, %v749
      %v751 = vpop.f32.mrb[0].mxu0
      %752 = vmatprep.mubr.bf16.mxu0 %v439
      %753 = vmatmul.mubr.bf16.gmra.mrb[0].mxu0 %v438
      %v754 = vpop.f32.mrb[0].mxu0
      %v755 = vadd.f32 0.0, %v754
      %v756 = vpop.f32.mrb[0].mxu0
      %v757 = vpop.f32.mrb[0].mxu0
      %v758 = vadd.f32 0.0, %v757
      %v759 = vpop.f32.mrb[0].mxu0
      %760 = vmatprep.mubr.bf16.mxu0 %v442
      %761 = vmatmul.mubr.bf16.gmra.mrb[0].mxu0 %v441
      %v762 = vpop.f32.mrb[0].mxu0
      %v763 = vadd.f32 0.0, %v762
      %v764 = vpop.f32.mrb[0].mxu0
      %v765 = vpop.f32.mrb[0].mxu0
      %v766 = vadd.f32 0.0, %v765
      %v767 = vpop.f32.mrb[0].mxu0
      %768 = vmatprep.mubr.bf16.mxu0 %v445
      %769 = vmatmul.mubr.bf16.gmra.mrb[0].mxu0 %v444
      %v770 = vpop.f32.mrb[0].mxu0
      %v771 = vadd.f32 0.0, %v770
      %v772 = vpop.f32.mrb[0].mxu0
      %v773 = vpop.f32.mrb[0].mxu0
      %v774 = vadd.f32 0.0, %v773
      %v775 = vpop.f32.mrb[0].mxu0
      %776 = vmatprep.mubr.bf16.mxu0 %v448
      %777 = vmatmul.mubr.bf16.gmra.mrb[0].mxu0 %v447
      %v778 = vpop.f32.mrb[0].mxu0
      %v779 = vadd.f32 0.0, %v778
      %v780 = vpop.f32.mrb[0].mxu0
      %v781 = vpop.f32.mrb[0].mxu0
      %v782 = vadd.f32 0.0, %v781
      %v783 = vpop.f32.mrb[0].mxu0
      %784 = vmatprep.mubr.bf16.mxu0 %v451
      %785 = vmatmul.mubr.bf16.gmra.mrb[0].mxu0 %v450
      %v786 = vpop.f32.mrb[0].mxu0
      %v787 = vadd.f32 0.0, %v786
      %v788 = vpop.f32.mrb[0].mxu0
      %v789 = vpop.f32.mrb[0].mxu0
      %v790 = vadd.f32 0.0, %v789
      %v791 = vpop.f32.mrb[0].mxu0
      %792 = vmatprep.mubr.bf16.mxu0 %v454
      %793 = vmatmul.mubr.bf16.gmra.mrb[0].mxu0 %v453
      %v794 = vpop.f32.mrb[0].mxu0
      %v795 = vadd.f32 0.0, %v794
      %v796 = vpop.f32.mrb[0].mxu0
      %v797 = vpop.f32.mrb[0].mxu0
      %v798 = vadd.f32 0.0, %v797
      %v799 = vpop.f32.mrb[0].mxu0
      %800 = vmatprep.mubr.bf16.mxu0 %v457
      %801 = vmatmul.mubr.bf16.gmra.mrb[0].mxu0 %v456
      %v802 = vpop.f32.mrb[0].mxu0
      %v803 = vadd.f32 0.0, %v802
      %v804 = vpop.f32.mrb[0].mxu0
      %v805 = vpop.f32.mrb[0].mxu0
      %v806 = vadd.f32 0.0, %v805
      %v807 = vpop.f32.mrb[0].mxu0
      %808 = vdwg.mxu0
      %809 = vmatprep.subr.bf16.mxu0 0
      %810 = vmatpush1.bf16.msra.mxu0 %v579
      %811 = vmatprep.subr.bf16.mxu0 0
      %812 = vmatpush1.bf16.msra.mxu0 %v580
      %813 = vmatprep.subr.bf16.mxu0 0
      %814 = vmatpush1.bf16.msra.mxu0 0
      %815 = vmatprep.subr.bf16.mxu0 0
      %816 = vmatpush1.bf16.msra.mxu0 0
      %817 = vmatprep.subr.bf16.mxu0 0
      %818 = vmatpush1.bf16.msra.mxu0 0
      %819 = vmatprep.subr.bf16.mxu0 0
      %820 = vmatpush1.bf16.msra.mxu0 0
      %821 = vmatprep.subr.bf16.mxu0 0
      %822 = vmatpush1.bf16.msra.mxu0 0
      %823 = vmatprep.subr.bf16.mxu0 0
      %824 = vmatpush1.bf16.msra.mxu0 0
      %825 = vmatprep.subr.bf16.mxu0 0
      %826 = vmatpush1.bf16.msra.mxu0 0
      %827 = vmatprep.subr.bf16.mxu0 0
      %828 = vmatpush1.bf16.msra.mxu0 0
      %829 = vmatprep.subr.bf16.mxu0 0
      %830 = vmatpush1.bf16.msra.mxu0 0
      %831 = vmatprep.subr.bf16.mxu0 0
      %832 = vmatpush1.bf16.msra.mxu0 0
      %833 = vmatprep.subr.bf16.mxu0 0
      %834 = vmatpush1.bf16.msra.mxu0 0
      %835 = vmatprep.subr.bf16.mxu0 0
      %836 = vmatpush1.bf16.msra.mxu0 0
      %837 = vmatprep.subr.bf16.mxu0 0
      %838 = vmatpush1.bf16.msra.mxu0 0
      %839 = vmatprep.subr.bf16.mxu0 0
      %840 = vmatpush1.bf16.msra.mxu0 0
      %841 = vmatprep.mubr.bf16.mxu0 0
      %842 = vmatmul.mubr.bf16.gmra.mrb[0].mxu0 %v601
      %v843 = vpop.f32.mrb[0].mxu0
      %v844 = vadd.f32 %v683, %v843
      %v845 = vpop.f32.mrb[0].mxu0
      %v846 = vpop.f32.mrb[0].mxu0
      %v847 = vadd.f32 %v686, %v846
      %v848 = vpop.f32.mrb[0].mxu0
      %849 = vmatprep.mubr.bf16.mxu0 0
      %850 = vmatmul.mubr.bf16.gmra.mrb[0].mxu0 %v604
      %v851 = vpop.f32.mrb[0].mxu0
      %v852 = vadd.f32 %v691, %v851
      %v853 = vpop.f32.mrb[0].mxu0
      %v854 = vpop.f32.mrb[0].mxu0
      %v855 = vadd.f32 %v694, %v854
      %v856 = vpop.f32.mrb[0].mxu0
      %857 = vmatprep.mubr.bf16.mxu0 0
      %858 = vmatmul.mubr.bf16.gmra.mrb[0].mxu0 %v607
      %v859 = vpop.f32.mrb[0].mxu0
      %v860 = vadd.f32 %v699, %v859
      %v861 = vpop.f32.mrb[0].mxu0
      %v862 = vpop.f32.mrb[0].mxu0
      %v863 = vadd.f32 %v702, %v862
      %v864 = vpop.f32.mrb[0].mxu0
      %865 = vmatprep.mubr.bf16.mxu0 0
      %866 = vmatmul.mubr.bf16.gmra.mrb[0].mxu0 %v610
      %v867 = vpop.f32.mrb[0].mxu0
      %v868 = vadd.f32 %v707, %v867
      %v869 = vpop.f32.mrb[0].mxu0
      %v870 = vpop.f32.mrb[0].mxu0
      %v871 = vadd.f32 %v710, %v870
      %v872 = vpop.f32.mrb[0].mxu0
      %873 = vmatprep.mubr.bf16.mxu0 0
      %874 = vmatmul.mubr.bf16.gmra.mrb[0].mxu0 %v613
      %v875 = vpop.f32.mrb[0].mxu0
      %v876 = vadd.f32 %v715, %v875
      %v877 = vpop.f32.mrb[0].mxu0
      %v878 = vpop.f32.mrb[0].mxu0
      %v879 = vadd.f32 %v718, %v878
      %v880 = vpop.f32.mrb[0].mxu0
      %881 = vmatprep.mubr.bf16.mxu0 0
      %882 = vmatmul.mubr.bf16.gmra.mrb[0].mxu0 %v616
      %v883 = vpop.f32.mrb[0].mxu0
      %v884 = vadd.f32 %v723, %v883
      %v885 = vpop.f32.mrb[0].mxu0
      %v886 = vpop.f32.mrb[0].mxu0
      %v887 = vadd.f32 %v726, %v886
      %v888 = vpop.f32.mrb[0].mxu0
      %889 = vmatprep.mubr.bf16.mxu0 0
      %890 = vmatmul.mubr.bf16.gmra.mrb[0].mxu0 %v619
      %v891 = vpop.f32.mrb[0].mxu0
      %v892 = vadd.f32 %v731, %v891
      %v893 = vpop.f32.mrb[0].mxu0
      %v894 = vpop.f32.mrb[0].mxu0
      %v895 = vadd.f32 %v734, %v894
      %v896 = vpop.f32.mrb[0].mxu0
      %897 = vmatprep.mubr.bf16.mxu0 0
      %898 = vmatmul.mubr.bf16.gmra.mrb[0].mxu0 %v622
      %v899 = vpop.f32.mrb[0].mxu0
      %v900 = vadd.f32 %v739, %v899
      %v901 = vpop.f32.mrb[0].mxu0
      %v902 = vpop.f32.mrb[0].mxu0
      %v903 = vadd.f32 %v742, %v902
      %v904 = vpop.f32.mrb[0].mxu0
      %905 = vmatprep.mubr.bf16.mxu0 0
      %906 = vmatmul.mubr.bf16.gmra.mrb[0].mxu0 %v625
      %v907 = vpop.f32.mrb[0].mxu0
      %v908 = vadd.f32 %v747, %v907
      %v909 = vpop.f32.mrb[0].mxu0
      %v910 = vpop.f32.mrb[0].mxu0
      %v911 = vadd.f32 %v750, %v910
      %v912 = vpop.f32.mrb[0].mxu0
      %913 = vmatprep.mubr.bf16.mxu0 0
      %914 = vmatmul.mubr.bf16.gmra.mrb[0].mxu0 %v628
      %v915 = vpop.f32.mrb[0].mxu0
      %v916 = vadd.f32 %v755, %v915
      %v917 = vpop.f32.mrb[0].mxu0
      %v918 = vpop.f32.mrb[0].mxu0
      %v919 = vadd.f32 %v758, %v918
      %v920 = vpop.f32.mrb[0].mxu0
      %921 = vmatprep.mubr.bf16.mxu0 0
      %922 = vmatmul.mubr.bf16.gmra.mrb[0].mxu0 %v631
      %v923 = vpop.f32.mrb[0].mxu0
      %v924 = vadd.f32 %v763, %v923
      %v925 = vpop.f32.mrb[0].mxu0
      %v926 = vpop.f32.mrb[0].mxu0
      %v927 = vadd.f32 %v766, %v926
      %v928 = vpop.f32.mrb[0].mxu0
      %929 = vmatprep.mubr.bf16.mxu0 0
      %930 = vmatmul.mubr.bf16.gmra.mrb[0].mxu0 %v634
      %v931 = vpop.f32.mrb[0].mxu0
      %v932 = vadd.f32 %v771, %v931
      %v933 = vpop.f32.mrb[0].mxu0
      %v934 = vpop.f32.mrb[0].mxu0
      %v935 = vadd.f32 %v774, %v934
      %v936 = vpop.f32.mrb[0].mxu0
      %937 = vmatprep.mubr.bf16.mxu0 0
      %938 = vmatmul.mubr.bf16.gmra.mrb[0].mxu0 %v637
      %v939 = vpop.f32.mrb[0].mxu0
      %v940 = vadd.f32 %v779, %v939
      %v941 = vpop.f32.mrb[0].mxu0
      %v942 = vpop.f32.mrb[0].mxu0
      %v943 = vadd.f32 %v782, %v942
      %v944 = vpop.f32.mrb[0].mxu0
      %945 = vmatprep.mubr.bf16.mxu0 0
      %946 = vmatmul.mubr.bf16.gmra.mrb[0].mxu0 %v640
      %v947 = vpop.f32.mrb[0].mxu0
      %v948 = vadd.f32 %v787, %v947
      %v949 = vpop.f32.mrb[0].mxu0
      %v950 = vpop.f32.mrb[0].mxu0
      %v951 = vadd.f32 %v790, %v950
      %v952 = vpop.f32.mrb[0].mxu0
      %953 = vmatprep.mubr.bf16.mxu0 0
      %954 = vmatmul.mubr.bf16.gmra.mrb[0].mxu0 %v643
      %v955 = vpop.f32.mrb[0].mxu0
      %v956 = vadd.f32 %v795, %v955
      %v957 = vpop.f32.mrb[0].mxu0
      %v958 = vpop.f32.mrb[0].mxu0
      %v959 = vadd.f32 %v798, %v958
      %v960 = vpop.f32.mrb[0].mxu0
      %961 = vmatprep.mubr.bf16.mxu0 0
      %962 = vmatmul.mubr.bf16.gmra.mrb[0].mxu0 %v646
      %v963 = vpop.f32.mrb[0].mxu0
      %v964 = vadd.f32 %v803, %v963
      %v965 = vpop.f32.mrb[0].mxu0
      %v966 = vpop.f32.mrb[0].mxu0
      %v967 = vadd.f32 %v806, %v966
      %v968 = vpop.f32.mrb[0].mxu0
      %969 = vdwg.mxu0
      %970 = vst [vmem:[%s148] sm:$0xff] %v844
      %971 = vst [vmem:[%s148 + $0x8] sm:$0xff] %v847
      %972 = vst [vmem:[%s148 + $0x10] sm:$0xff] %v852
      %973 = vst [vmem:[%s148 + $0x18] sm:$0xff] %v855
      %974 = vst [vmem:[%s148 + $0x20] sm:$0xff] %v860
      %975 = vst [vmem:[%s148 + $0x28] sm:$0xff] %v863
      %976 = vst [vmem:[%s148 + $0x30] sm:$0xff] %v868
      %977 = vst [vmem:[%s148 + $0x38] sm:$0xff] %v871
      %978 = vst [vmem:[%s148 + $0x40] sm:$0xff] %v876
      %979 = vst [vmem:[%s148 + $0x48] sm:$0xff] %v879
      %980 = vst [vmem:[%s148 + $0x50] sm:$0xff] %v884
      %981 = vst [vmem:[%s148 + $0x58] sm:$0xff] %v887
      %982 = vst [vmem:[%s148 + $0x60] sm:$0xff] %v892
      %983 = vst [vmem:[%s148 + $0x68] sm:$0xff] %v895
      %984 = vst [vmem:[%s148 + $0x70] sm:$0xff] %v900
      %985 = vst [vmem:[%s148 + $0x78] sm:$0xff] %v903
      %986 = vst [vmem:[%s148 + $0x80] sm:$0xff] %v908
      %987 = vst [vmem:[%s148 + $0x88] sm:$0xff] %v911
      %988 = vst [vmem:[%s148 + $0x90] sm:$0xff] %v916
      %989 = vst [vmem:[%s148 + $0x98] sm:$0xff] %v919
      %990 = vst [vmem:[%s148 + $0xa0] sm:$0xff] %v924
      %991 = vst [vmem:[%s148 + $0xa8] sm:$0xff] %v927
      %992 = vst [vmem:[%s148 + $0xb0] sm:$0xff] %v932
      %993 = vst [vmem:[%s148 + $0xb8] sm:$0xff] %v935
      %994 = vst [vmem:[%s148 + $0xc0] sm:$0xff] %v940
      %995 = vst [vmem:[%s148 + $0xc8] sm:$0xff] %v943
      %996 = vst [vmem:[%s148 + $0xd0] sm:$0xff] %v948
      %997 = vst [vmem:[%s148 + $0xd8] sm:$0xff] %v951
      %998 = vst [vmem:[%s148 + $0xe0] sm:$0xff] %v956
      %999 = vst [vmem:[%s148 + $0xe8] sm:$0xff] %v959
      %1000 = vst [vmem:[%s148 + $0xf0] sm:$0xff] %v964
      %1001 = vst [vmem:[%s148 + $0xf8] sm:$0xff] %v967
      %s1002 = smul.u32 32, %s13
      %p1003 = scmp.lt.s32.totalorder %s1002, 63
      %s1004 = scalar_select %p1003, %s1002, 63
      %s1005 = smul.addr %s1004, 8
      %s1006 = scalar_lea.vmem %s2, %s1005
      // Predicated region
      $region29: #{network_forward.28} parent=27 // pred_check
        %p1007 = pneg %p78
      $region30: #{network_forward.28} parent=27 // pred_check_branch
        %1009 = sbr.rel (%p1007) target = $region32
      $region31: #{network_forward.28} parent=27 // pred_region
        %s1010 = smul.u32 32, %s13
      $region32: #{network_forward.28} parent=27 // pred_fallthru
        _
    $region28: #{network_forward.28} parent=5 // pred_fallthru
      _
    %p1011 = scmp.le.s32.totalorder 2, %s8
    // Predicated region
    $region33: #{network_forward.28} parent=5 // pred_check
      %p1012 = pneg %p1011
    $region34: #{network_forward.28} parent=5 // pred_check_branch
      %1014 = sbr.rel (%p1012) target = $region36
    $region35: #{network_forward.28} parent=5 // pred_region
      %s1015 = ssub.s32 %s8, 2
      // Predicated region
      $region37: #{network_forward.28} parent=35 // pred_check
        %p1016 = pneg %p84
      $region38: #{network_forward.28} parent=35 // pred_check_branch
        %1018 = sbr.rel (%p1016) target = $region40
      $region39: #{network_forward.28} parent=35 // pred_region
        %s1019 = smul.u32 32, %s14
        %p1020 = scmp.lt.s32.totalorder %s1019, 63
        %s1021 = scalar_select %p1020, %s1019, 63
        %s1022 = smul.addr %s1021, 8
        %s1023 = scalar_lea.vmem %s2, %s1022
      $region40: #{network_forward.28} parent=35 // pred_fallthru
        _
    $region36: #{network_forward.28} parent=5 // pred_fallthru
      _
  $region6: #{network_forward.28} parent=0 // loop_footer
    %s12 = sadd.s32 1, %s8
  $region7: #{network_forward.28} parent=0 // loop_footer_branch
    %7 = sbr.rel target = $region3
  $region8: #{network_forward.28} parent=0 // loop_exit
    _

// kernel: network_forward.29
$region0: #{network_forward.29}
  #allocation0 [shape = 'u32[]', space=smem, size = 0x4, offset = 0x4, fixed_abs, tag = 'smem constant byte address 0x4 - core index']
  #allocation1 [shape = 'u32[144,128]{1,0:T(1,128)}', space=vmem, size = 0x12000, scoped, tag = 'internal scratch']
  %s0 = inlined_call_operand.vmem [shape: bf16[2048,288], index: 0, kind: input, shape index: {}]
  %s1 = inlined_call_operand.vmem [shape: bf16[288,128], index: 1, kind: input, shape index: {}]
  %s2 = inlined_call_operand.vmem [shape: f32[2048,128], index: 2, kind: output, shape index: {}]
  %s3 = sld [smem:[#allocation0]]
  $region41: #{network_forward.29} parent=0
    _
  %s5 = ssub.s32 1, %s3
  %s6 = scalar_select 0, %s5, %s3
  loop: start=0, step=1, limit=10
  $region2: #{network_forward.29} parent=0 // loop_pre_header
    _
  $region3: #{network_forward.29} parent=0 // loop_header
    %s8 = sphi 0, %s12
    %p9 = scmp.ge.s32.totalorder %s8, 10
    %s18 = sphi 0, %s20
    %s21 = sphi 0, %s18
    %s22 = sphi 0, %s21
    %s38 = sphi 0, %s22
    %s42 = sphi 0, %s42
    %s44 = sphi 0, %s42
    %s45 = sphi 0, %s44
    %s59 = sphi 0, %s45
    %s65 = sphi 0, %s67
    %s68 = sphi 0, %s65
    %s69 = sphi 0, %s68
    %s85 = sphi 0, %s69
  $region4: #{network_forward.29} parent=0 // loop_header_branch
    %11 = sbr.rel (%p9) target = $region8
  $region5: #{network_forward.29} parent=0 // loop_body
    %s13 = ssub.s32 %s8, 1
    %s14 = ssub.s32 %s8, 2
    %s15 = sadd.s32 %s8, 1
    %s16 = ssub.s32 %s8, %s15
    %p17 = scmp.eq.s32.totalorder %s16, 0
    %s19 = sadd.s32 %s18, 1
    %s20 = scalar_select %p17, %s18, %s19
    %p23 = pneg %p17
    %p24 = scmp.eq.s32.totalorder %s8, 7
    %p25 = por %p23, %p24
    %p26 = scmp.ne.s32.totalorder %s18, %s21
    %p27 = scmp.eq.s32.totalorder %s8, 0
    %p28 = por %p26, %p27
    %p29 = scmp.ne.s32.totalorder %s18, %s21
    %p30 = scmp.eq.s32.totalorder %s13, 7
    %p31 = por %p29, %p30
    %p32 = scmp.ne.s32.totalorder %s21, %s22
    %p33 = scmp.eq.s32.totalorder %s13, 0
    %p34 = por %p32, %p33
    %p35 = scmp.ne.s32.totalorder %s21, %s22
    %p36 = scmp.eq.s32.totalorder %s14, 7
    %p37 = por %p35, %p36
    %p39 = scmp.ne.s32.totalorder %s22, %s38
    %p40 = scmp.eq.s32.totalorder %s14, 0
    %p41 = por %p39, %p40
    %s43 = sadd.s32 %s42, 1
    %p46 = scmp.eq.s32.totalorder %s8, 7
    %p47 = scmp.ne.s32.totalorder %s42, %s44
    %p48 = scmp.eq.s32.totalorder %s8, 0
    %p49 = por %p47, %p48
    %p50 = scmp.ne.s32.totalorder %s42, %s44
    %p51 = scmp.eq.s32.totalorder %s13, 7
    %p52 = por %p50, %p51
    %p53 = scmp.ne.s32.totalorder %s44, %s45
    %p54 = scmp.eq.s32.totalorder %s13, 0
    %p55 = por %p53, %p54
    %p56 = scmp.ne.s32.totalorder %s44, %s45
    %p57 = scmp.eq.s32.totalorder %s14, 7
    %p58 = por %p56, %p57
    %p60 = scmp.ne.s32.totalorder %s45, %s59
    %p61 = scmp.eq.s32.totalorder %s14, 0
    %p62 = por %p60, %p61
    %s63 = ssub.s32 %s8, %s15
    %p64 = scmp.eq.s32.totalorder %s63, 0
    %s66 = sadd.s32 %s65, 1
    %s67 = scalar_select %p64, %s65, %s66
    %p70 = pneg %p64
    %p71 = scmp.eq.s32.totalorder %s8, 7
    %p72 = por %p70, %p71
    %p73 = scmp.ne.s32.totalorder %s65, %s68
    %p74 = scmp.eq.s32.totalorder %s8, 0
    %p75 = por %p73, %p74
    %p76 = scmp.ne.s32.totalorder %s65, %s68
    %p77 = scmp.eq.s32.totalorder %s13, 7
    %p78 = por %p76, %p77
    %p79 = scmp.ne.s32.totalorder %s68, %s69
    %p80 = scmp.eq.s32.totalorder %s13, 0
    %p81 = por %p79, %p80
    %p82 = scmp.ne.s32.totalorder %s68, %s69
    %p83 = scmp.eq.s32.totalorder %s14, 7
    %p84 = por %p82, %p83
    %p86 = scmp.ne.s32.totalorder %s69, %s85
    %p87 = scmp.eq.s32.totalorder %s14, 0
    %p88 = por %p86, %p87
    %p89 = scmp.le.s32.totalorder 1, %s8
    %p90 = scmp.lt.s32.totalorder %s8, 9
    %p91 = pnand %p89, %p90
    %p92 = pneg %p91
    // Predicated region
    $region9: #{network_forward.29} parent=5 // pred_check
      _
    $region10: #{network_forward.29} parent=5 // pred_check_branch
      %94 = sbr.rel (%p91) target = $region12
    $region11: #{network_forward.29} parent=5 // pred_region
      %s95 = ssub.s32 %s8, 1
      // Predicated region
      $region13: #{network_forward.29} parent=11 // pred_check
        %p96 = pneg %p55
      $region14: #{network_forward.29} parent=11 // pred_check_branch
        %98 = sbr.rel (%p96) target = $region16
      $region15: #{network_forward.29} parent=11 // pred_region
        _
      $region16: #{network_forward.29} parent=11 // pred_fallthru
        _
    $region12: #{network_forward.29} parent=5 // pred_fallthru
      _
    %p99 = scmp.lt.s32.totalorder %s8, 8
    // Predicated region
    $region17: #{network_forward.29} parent=5 // pred_check
      %p100 = pneg %p99
    $region18: #{network_forward.29} parent=5 // pred_check_branch
      %102 = sbr.rel (%p100) target = $region20
    $region19: #{network_forward.29} parent=5 // pred_region
      // Predicated region
      $region21: #{network_forward.29} parent=19 // pred_check
        %p103 = pneg %p28
      $region22: #{network_forward.29} parent=19 // pred_check_branch
        %105 = sbr.rel (%p103) target = $region24
      $region23: #{network_forward.29} parent=19 // pred_region
        %s106 = smul.u32 32, %s8
        %p107 = scmp.lt.s32.totalorder %s106, 255
        %s108 = scalar_select %p107, %s106, 255
        %s109 = smul.addr %s108, 3
        %s110 = smul.addr %s109, 4
        %s111 = scalar_lea.vmem %s0, %s110
        %s112 = smul.u32 32, %s8
      $region24: #{network_forward.29} parent=19 // pred_fallthru
        _
    $region20: #{network_forward.29} parent=5 // pred_fallthru
      _
    %p113 = scmp.le.s32.totalorder 1, %s8
    %p114 = scmp.lt.s32.totalorder %s8, 9
    %p115 = pnand %p113, %p114
    %p116 = pneg %p115
    // Predicated region
    $region25: #{network_forward.29} parent=5 // pred_check
      _
    $region26: #{network_forward.29} parent=5 // pred_check_branch
      %118 = sbr.rel (%p115) target = $region28
    $region27: #{network_forward.29} parent=5 // pred_region
      %s119 = ssub.s32 %s8, 1
      %s120 = smul.u32 32, %s13
      %p121 = scmp.lt.s32.totalorder %s120, 255
      %s122 = scalar_select %p121, %s120, 255
      %s123 = smul.addr %s122, 3
      %s124 = smul.addr %s123, 4
      %s125 = scalar_lea.vmem %s0, %s124
      %p126 = pneg %p34
      %p127 = pneg %p31
      %p128 = pneg %p55
      %p129 = pneg %p52
      %p130 = pneg %p81
      %p131 = pneg %p78
      %s132 = smul.u32 32, %s13
      %p133 = scmp.lt.s32.totalorder %s132, 255
      %s134 = scalar_select %p133, %s132, 255
      %s135 = smul.addr %s134, 8
      %s136 = scalar_lea.vmem %s2, %s135
      %s137 = smul.u32 32, %s13
      %p138 = scmp.lt.s32.totalorder %s137, 255
      %s139 = scalar_select %p138, %s137, 255
      %s140 = smul.addr %s139, 3
      %s141 = smul.addr %s140, 4
      %s142 = scalar_lea.vmem %s0, %s141
      %s143 = smul.u32 32, %s13
      %s144 = smul.u32 32, %s13
      %p145 = scmp.lt.s32.totalorder %s144, 255
      %s146 = scalar_select %p145, %s144, 255
      %s147 = smul.addr %s146, 8
      %s148 = scalar_lea.vmem %s2, %s147
      %s149 = smul.u32 32, %s13
      %v151 = vld [vmem:[%s142] sm:$0xff]
      %v152 = vld [vmem:[%s142 + $0x8] sm:$0xf]
      %v153 = vld [vmem:[%s142 + $0xc] sm:$0xff]
      %v154 = vld [vmem:[%s142 + $0x14] sm:$0xf]
      %v155 = vld [vmem:[%s142 + $0x18] sm:$0xff]
      %v156 = vld [vmem:[%s142 + $0x20] sm:$0xf]
      %v157 = vld [vmem:[%s142 + $0x24] sm:$0xff]
      %v158 = vld [vmem:[%s142 + $0x2c] sm:$0xf]
      %v159 = vld [vmem:[%s142 + $0x30] sm:$0xff]
      %v160 = vld [vmem:[%s142 + $0x38] sm:$0xf]
      %v161 = vld [vmem:[%s142 + $0x3c] sm:$0xff]
      %v162 = vld [vmem:[%s142 + $0x44] sm:$0xf]
      %v163 = vld [vmem:[%s142 + $0x48] sm:$0xff]
      %v164 = vld [vmem:[%s142 + $0x50] sm:$0xf]
      %v165 = vld [vmem:[%s142 + $0x54] sm:$0xff]
      %v166 = vld [vmem:[%s142 + $0x5c] sm:$0xf]
      %v167 = vld [vmem:[%s142 + $0x60] sm:$0xff]
      %v168 = vld [vmem:[%s142 + $0x68] sm:$0xf]
      %v169 = vld [vmem:[%s142 + $0x6c] sm:$0xff]
      %v170 = vld [vmem:[%s142 + $0x74] sm:$0xf]
      %v171 = vld [vmem:[%s142 + $0x78] sm:$0xff]
      %v172 = vld [vmem:[%s142 + $0x80] sm:$0xf]
      %v173 = vld [vmem:[%s142 + $0x84] sm:$0xff]
      %v174 = vld [vmem:[%s142 + $0x8c] sm:$0xf]
      %v175 = vld [vmem:[%s142 + $0x90] sm:$0xff]
      %v176 = vld [vmem:[%s142 + $0x98] sm:$0xf]
      %v177 = vld [vmem:[%s142 + $0x9c] sm:$0xff]
      %v178 = vld [vmem:[%s142 + $0xa4] sm:$0xf]
      %v179 = vld [vmem:[%s142 + $0xa8] sm:$0xff]
      %v180 = vld [vmem:[%s142 + $0xb0] sm:$0xf]
      %v181 = vld [vmem:[%s142 + $0xb4] sm:$0xff]
      %v182 = vld [vmem:[%s142 + $0xbc] sm:$0xf]
      %v183 = vld [vmem:[%s142 + $0xc0] sm:$0xff]
      %v184 = vld [vmem:[%s142 + $0xc8] sm:$0xf]
      %v185 = vld [vmem:[%s142 + $0xcc] sm:$0xff]
      %v186 = vld [vmem:[%s142 + $0xd4] sm:$0xf]
      %v187 = vld [vmem:[%s142 + $0xd8] sm:$0xff]
      %v188 = vld [vmem:[%s142 + $0xe0] sm:$0xf]
      %v189 = vld [vmem:[%s142 + $0xe4] sm:$0xff]
      %v190 = vld [vmem:[%s142 + $0xec] sm:$0xf]
      %v191 = vld [vmem:[%s142 + $0xf0] sm:$0xff]
      %v192 = vld [vmem:[%s142 + $0xf8] sm:$0xf]
      %v193 = vld [vmem:[%s142 + $0xfc] sm:$0xff]
      %v194 = vld [vmem:[%s142 + $0x104] sm:$0xf]
      %v195 = vld [vmem:[%s142 + $0x108] sm:$0xff]
      %v196 = vld [vmem:[%s142 + $0x110] sm:$0xf]
      %v197 = vld [vmem:[%s142 + $0x114] sm:$0xff]
      %v198 = vld [vmem:[%s142 + $0x11c] sm:$0xf]
      %v199 = vld [vmem:[%s142 + $0x120] sm:$0xff]
      %v200 = vld [vmem:[%s142 + $0x128] sm:$0xf]
      %v201 = vld [vmem:[%s142 + $0x12c] sm:$0xff]
      %v202 = vld [vmem:[%s142 + $0x134] sm:$0xf]
      %v203 = vld [vmem:[%s142 + $0x138] sm:$0xff]
      %v204 = vld [vmem:[%s142 + $0x140] sm:$0xf]
      %v205 = vld [vmem:[%s142 + $0x144] sm:$0xff]
      %v206 = vld [vmem:[%s142 + $0x14c] sm:$0xf]
      %v207 = vld [vmem:[%s142 + $0x150] sm:$0xff]
      %v208 = vld [vmem:[%s142 + $0x158] sm:$0xf]
      %v209 = vld [vmem:[%s142 + $0x15c] sm:$0xff]
      %v210 = vld [vmem:[%s142 + $0x164] sm:$0xf]
      %v211 = vld [vmem:[%s142 + $0x168] sm:$0xff]
      %v212 = vld [vmem:[%s142 + $0x170] sm:$0xf]
      %v213 = vld [vmem:[%s142 + $0x174] sm:$0xff]
      %v214 = vld [vmem:[%s142 + $0x17c] sm:$0xf]
      %v215 = vld [vmem:[%s1] sm:$0xf]
      %v216 = vld [vmem:[%s1 + $0x4] sm:$0xf]
      %v217 = vld [vmem:[%s1 + $0x8] sm:$0xf]
      %v218 = vld [vmem:[%s1 + $0xc] sm:$0xf]
      %v219 = vld [vmem:[%s1 + $0x10] sm:$0xf]
      %v220 = vld [vmem:[%s1 + $0x14] sm:$0xf]
      %v221 = vld [vmem:[%s1 + $0x18] sm:$0xf]
      %v222 = vld [vmem:[%s1 + $0x1c] sm:$0xf]
      %v223 = vld [vmem:[%s1 + $0x20] sm:$0xf]
      %v224 = vld [vmem:[%s1 + $0x24] sm:$0xf]
      %v225 = vld [vmem:[%s1 + $0x28] sm:$0xf]
      %v226 = vld [vmem:[%s1 + $0x2c] sm:$0xf]
      %v227 = vld [vmem:[%s1 + $0x30] sm:$0xf]
      %v228 = vld [vmem:[%s1 + $0x34] sm:$0xf]
      %v229 = vld [vmem:[%s1 + $0x38] sm:$0xf]
      %v230 = vld [vmem:[%s1 + $0x3c] sm:$0xf]
      %v231 = vld [vmem:[%s1 + $0x40] sm:$0xf]
      %v232 = vld [vmem:[%s1 + $0x44] sm:$0xf]
      %v233 = vld [vmem:[%s1 + $0x48] sm:$0xf]
      %v234 = vld [vmem:[%s1 + $0x4c] sm:$0xf]
      %v235 = vld [vmem:[%s1 + $0x50] sm:$0xf]
      %v236 = vld [vmem:[%s1 + $0x54] sm:$0xf]
      %v237 = vld [vmem:[%s1 + $0x58] sm:$0xf]
      %v238 = vld [vmem:[%s1 + $0x5c] sm:$0xf]
      %v239 = vld [vmem:[%s1 + $0x60] sm:$0xf]
      %v240 = vld [vmem:[%s1 + $0x64] sm:$0xf]
      %v241 = vld [vmem:[%s1 + $0x68] sm:$0xf]
      %v242 = vld [vmem:[%s1 + $0x6c] sm:$0xf]
      %v243 = vld [vmem:[%s1 + $0x70] sm:$0xf]
      %v244 = vld [vmem:[%s1 + $0x74] sm:$0xf]
      %v245 = vld [vmem:[%s1 + $0x78] sm:$0xf]
      %v246 = vld [vmem:[%s1 + $0x7c] sm:$0xf]
      %v247 = vld [vmem:[%s1 + $0x80] sm:$0xf]
      %v248 = vld [vmem:[%s1 + $0x84] sm:$0xf]
      %v249 = vld [vmem:[%s1 + $0x88] sm:$0xf]
      %v250 = vld [vmem:[%s1 + $0x8c] sm:$0xf]
      %v315 = vunpack.c.l.b16 %v151
      %v316 = vunpack.c.h.b16 %v151
      %v317 = vunpack.c.l.b16 %v152
      %v318 = vunpack.c.l.b16 %v153
      %v319 = vunpack.c.h.b16 %v153
      %v320 = vunpack.c.l.b16 %v154
      %v321 = vunpack.c.l.b16 %v155
      %v322 = vunpack.c.h.b16 %v155
      %v323 = vunpack.c.l.b16 %v156
      %v324 = vunpack.c.l.b16 %v157
      %v325 = vunpack.c.h.b16 %v157
      %v326 = vunpack.c.l.b16 %v158
      %v327 = vunpack.c.l.b16 %v159
      %v328 = vunpack.c.h.b16 %v159
      %v329 = vunpack.c.l.b16 %v160
      %v330 = vunpack.c.l.b16 %v161
      %v331 = vunpack.c.h.b16 %v161
      %v332 = vunpack.c.l.b16 %v162
      %v333 = vunpack.c.l.b16 %v163
      %v334 = vunpack.c.h.b16 %v163
      %v335 = vunpack.c.l.b16 %v164
      %v336 = vunpack.c.l.b16 %v165
      %v337 = vunpack.c.h.b16 %v165
      %v338 = vunpack.c.l.b16 %v166
      %v339 = vunpack.c.l.b16 %v167
      %v340 = vunpack.c.h.b16 %v167
      %v341 = vunpack.c.l.b16 %v168
      %v342 = vunpack.c.l.b16 %v169
      %v343 = vunpack.c.h.b16 %v169
      %v344 = vunpack.c.l.b16 %v170
      %v345 = vunpack.c.l.b16 %v171
      %v346 = vunpack.c.h.b16 %v171
      %v347 = vunpack.c.l.b16 %v172
      %v348 = vunpack.c.l.b16 %v173
      %v349 = vunpack.c.h.b16 %v173
      %v350 = vunpack.c.l.b16 %v174
      %v351 = vunpack.c.l.b16 %v175
      %v352 = vunpack.c.h.b16 %v175
      %v353 = vunpack.c.l.b16 %v176
      %v354 = vunpack.c.l.b16 %v177
      %v355 = vunpack.c.h.b16 %v177
      %v356 = vunpack.c.l.b16 %v178
      %v357 = vunpack.c.l.b16 %v179
      %v358 = vunpack.c.h.b16 %v179
      %v359 = vunpack.c.l.b16 %v180
      %v360 = vunpack.c.l.b16 %v181
      %v361 = vunpack.c.h.b16 %v181
      %v362 = vunpack.c.l.b16 %v182
      %v363 = vunpack.c.l.b16 %v183
      %v364 = vunpack.c.h.b16 %v183
      %v365 = vunpack.c.l.b16 %v184
      %v366 = vunpack.c.l.b16 %v185
      %v367 = vunpack.c.h.b16 %v185
      %v368 = vunpack.c.l.b16 %v186
      %v369 = vunpack.c.l.b16 %v187
      %v370 = vunpack.c.h.b16 %v187
      %v371 = vunpack.c.l.b16 %v188
      %v372 = vunpack.c.l.b16 %v189
      %v373 = vunpack.c.h.b16 %v189
      %v374 = vunpack.c.l.b16 %v190
      %v375 = vunpack.c.l.b16 %v191
      %v376 = vunpack.c.h.b16 %v191
      %v377 = vunpack.c.l.b16 %v192
      %v378 = vunpack.c.l.b16 %v193
      %v379 = vunpack.c.h.b16 %v193
      %v380 = vunpack.c.l.b16 %v194
      %v381 = vunpack.c.l.b16 %v195
      %v382 = vunpack.c.h.b16 %v195
      %v383 = vunpack.c.l.b16 %v196
      %v384 = vunpack.c.l.b16 %v197
      %v385 = vunpack.c.h.b16 %v197
      %v386 = vunpack.c.l.b16 %v198
      %v387 = vunpack.c.l.b16 %v199
      %v388 = vunpack.c.h.b16 %v199
      %v389 = vunpack.c.l.b16 %v200
      %v390 = vunpack.c.l.b16 %v201
      %v391 = vunpack.c.h.b16 %v201
      %v392 = vunpack.c.l.b16 %v202
      %v393 = vunpack.c.l.b16 %v203
      %v394 = vunpack.c.h.b16 %v203
      %v395 = vunpack.c.l.b16 %v204
      %v396 = vunpack.c.l.b16 %v205
      %v397 = vunpack.c.h.b16 %v205
      %v398 = vunpack.c.l.b16 %v206
      %v399 = vunpack.c.l.b16 %v207
      %v400 = vunpack.c.h.b16 %v207
      %v401 = vunpack.c.l.b16 %v208
      %v402 = vunpack.c.l.b16 %v209
      %v403 = vunpack.c.h.b16 %v209
      %v404 = vunpack.c.l.b16 %v210
      %v405 = vunpack.c.l.b16 %v211
      %v406 = vunpack.c.h.b16 %v211
      %v407 = vunpack.c.l.b16 %v212
      %v408 = vunpack.c.l.b16 %v213
      %v409 = vunpack.c.h.b16 %v213
      %v410 = vunpack.c.l.b16 %v214
      %v411 = vpack.c.b16 %v318, %v315
      %v412 = vpack.c.b16 %v319, %v316
      %v413 = vpack.c.b16 %v320, %v317
      %v414 = vpack.c.b16 %v324, %v321
      %v415 = vpack.c.b16 %v325, %v322
      %v416 = vpack.c.b16 %v326, %v323
      %v417 = vpack.c.b16 %v330, %v327
      %v418 = vpack.c.b16 %v331, %v328
      %v419 = vpack.c.b16 %v332, %v329
      %v420 = vpack.c.b16 %v336, %v333
      %v421 = vpack.c.b16 %v337, %v334
      %v422 = vpack.c.b16 %v338, %v335
      %v423 = vpack.c.b16 %v342, %v339
      %v424 = vpack.c.b16 %v343, %v340
      %v425 = vpack.c.b16 %v344, %v341
      %v426 = vpack.c.b16 %v348, %v345
      %v427 = vpack.c.b16 %v349, %v346
      %v428 = vpack.c.b16 %v350, %v347
      %v429 = vpack.c.b16 %v354, %v351
      %v430 = vpack.c.b16 %v355, %v352
      %v431 = vpack.c.b16 %v356, %v353
      %v432 = vpack.c.b16 %v360, %v357
      %v433 = vpack.c.b16 %v361, %v358
      %v434 = vpack.c.b16 %v362, %v359
      %v435 = vpack.c.b16 %v366, %v363
      %v436 = vpack.c.b16 %v367, %v364
      %v437 = vpack.c.b16 %v368, %v365
      %v438 = vpack.c.b16 %v372, %v369
      %v439 = vpack.c.b16 %v373, %v370
      %v440 = vpack.c.b16 %v374, %v371
      %v441 = vpack.c.b16 %v378, %v375
      %v442 = vpack.c.b16 %v379, %v376
      %v443 = vpack.c.b16 %v380, %v377
      %v444 = vpack.c.b16 %v384, %v381
      %v445 = vpack.c.b16 %v385, %v382
      %v446 = vpack.c.b16 %v386, %v383
      %v447 = vpack.c.b16 %v390, %v387
      %v448 = vpack.c.b16 %v391, %v388
      %v449 = vpack.c.b16 %v392, %v389
      %v450 = vpack.c.b16 %v396, %v393
      %v451 = vpack.c.b16 %v397, %v394
      %v452 = vpack.c.b16 %v398, %v395
      %v453 = vpack.c.b16 %v402, %v399
      %v454 = vpack.c.b16 %v403, %v400
      %v455 = vpack.c.b16 %v404, %v401
      %v456 = vpack.c.b16 %v408, %v405
      %v457 = vpack.c.b16 %v409, %v406
      %v458 = vpack.c.b16 %v410, %v407
      %v527 = vunpack.c.l.b16 %v215
      %v528 = vunpack.c.l.b16 %v216
      %v529 = vunpack.c.l.b16 %v217
      %v530 = vunpack.c.l.b16 %v218
      %v531 = vunpack.c.l.b16 %v219
      %v532 = vunpack.c.l.b16 %v220
      %v533 = vunpack.c.l.b16 %v221
      %v534 = vunpack.c.l.b16 %v222
      %v535 = vunpack.c.l.b16 %v223
      %v536 = vunpack.c.l.b16 %v224
      %v537 = vunpack.c.l.b16 %v225
      %v538 = vunpack.c.l.b16 %v226
      %v539 = vunpack.c.l.b16 %v227
      %v540 = vunpack.c.l.b16 %v228
      %v541 = vunpack.c.l.b16 %v229
      %v542 = vunpack.c.l.b16 %v230
      %v543 = vunpack.c.l.b16 %v231
      %v544 = vunpack.c.l.b16 %v232
      %v545 = vunpack.c.l.b16 %v233
      %v546 = vunpack.c.l.b16 %v234
      %v547 = vunpack.c.l.b16 %v235
      %v548 = vunpack.c.l.b16 %v236
      %v549 = vunpack.c.l.b16 %v237
      %v550 = vunpack.c.l.b16 %v238
      %v551 = vunpack.c.l.b16 %v239
      %v552 = vunpack.c.l.b16 %v240
      %v553 = vunpack.c.l.b16 %v241
      %v554 = vunpack.c.l.b16 %v242
      %v555 = vunpack.c.l.b16 %v243
      %v556 = vunpack.c.l.b16 %v244
      %v557 = vunpack.c.l.b16 %v245
      %v558 = vunpack.c.l.b16 %v246
      %v559 = vunpack.c.l.b16 %v247
      %v560 = vunpack.c.l.b16 %v248
      %v561 = vunpack.c.l.b16 %v249
      %v562 = vunpack.c.l.b16 %v250
      %v563 = vpack.c.b16 %v528, %v527
      %v564 = vpack.c.b16 %v530, %v529
      %v565 = vpack.c.b16 %v532, %v531
      %v566 = vpack.c.b16 %v534, %v533
      %v567 = vpack.c.b16 %v536, %v535
      %v568 = vpack.c.b16 %v538, %v537
      %v569 = vpack.c.b16 %v540, %v539
      %v570 = vpack.c.b16 %v542, %v541
      %v571 = vpack.c.b16 %v544, %v543
      %v572 = vpack.c.b16 %v546, %v545
      %v573 = vpack.c.b16 %v548, %v547
      %v574 = vpack.c.b16 %v550, %v549
      %v575 = vpack.c.b16 %v552, %v551
      %v576 = vpack.c.b16 %v554, %v553
      %v577 = vpack.c.b16 %v556, %v555
      %v578 = vpack.c.b16 %v558, %v557
      %v579 = vpack.c.b16 %v560, %v559
      %v580 = vpack.c.b16 %v562, %v561
      %vm599 = vcmask 261120
      %v601 = vsel %vm599, %v413, 0
      %v604 = vsel %vm599, %v416, 0
      %v607 = vsel %vm599, %v419, 0
      %v610 = vsel %vm599, %v422, 0
      %v613 = vsel %vm599, %v425, 0
      %v616 = vsel %vm599, %v428, 0
      %v619 = vsel %vm599, %v431, 0
      %v622 = vsel %vm599, %v434, 0
      %v625 = vsel %vm599, %v437, 0
      %v628 = vsel %vm599, %v440, 0
      %v631 = vsel %vm599, %v443, 0
      %v634 = vsel %vm599, %v446, 0
      %v637 = vsel %vm599, %v449, 0
      %v640 = vsel %vm599, %v452, 0
      %v643 = vsel %vm599, %v455, 0
      %v646 = vsel %vm599, %v458, 0
      %648 = vmatprep.subr.bf16.mxu0 0
      %649 = vmatpush1.bf16.msra.mxu0 %v563
      %650 = vmatprep.subr.bf16.mxu0 0
      %651 = vmatpush1.bf16.msra.mxu0 %v564
      %652 = vmatprep.subr.bf16.mxu0 0
      %653 = vmatpush1.bf16.msra.mxu0 %v565
      %654 = vmatprep.subr.bf16.mxu0 0
      %655 = vmatpush1.bf16.msra.mxu0 %v566
      %656 = vmatprep.subr.bf16.mxu0 0
      %657 = vmatpush1.bf16.msra.mxu0 %v567
      %658 = vmatprep.subr.bf16.mxu0 0
      %659 = vmatpush1.bf16.msra.mxu0 %v568
      %660 = vmatprep.subr.bf16.mxu0 0
      %661 = vmatpush1.bf16.msra.mxu0 %v569
      %662 = vmatprep.subr.bf16.mxu0 0
      %663 = vmatpush1.bf16.msra.mxu0 %v570
      %664 = vmatprep.subr.bf16.mxu0 0
      %665 = vmatpush1.bf16.msra.mxu0 %v571
      %666 = vmatprep.subr.bf16.mxu0 0
      %667 = vmatpush1.bf16.msra.mxu0 %v572
      %668 = vmatprep.subr.bf16.mxu0 0
      %669 = vmatpush1.bf16.msra.mxu0 %v573
      %670 = vmatprep.subr.bf16.mxu0 0
      %671 = vmatpush1.bf16.msra.mxu0 %v574
      %672 = vmatprep.subr.bf16.mxu0 0
      %673 = vmatpush1.bf16.msra.mxu0 %v575
      %674 = vmatprep.subr.bf16.mxu0 0
      %675 = vmatpush1.bf16.msra.mxu0 %v576
      %676 = vmatprep.subr.bf16.mxu0 0
      %677 = vmatpush1.bf16.msra.mxu0 %v577
      %678 = vmatprep.subr.bf16.mxu0 0
      %679 = vmatpush1.bf16.msra.mxu0 %v578
      %680 = vmatprep.mubr.bf16.mxu0 %v412
      %681 = vmatmul.mubr.bf16.gmra.mrb[0].mxu0 %v411
      %v682 = vpop.f32.mrb[0].mxu0
      %v683 = vadd.f32 0.0, %v682
      %v684 = vpop.f32.mrb[0].mxu0
      %v685 = vpop.f32.mrb[0].mxu0
      %v686 = vadd.f32 0.0, %v685
      %v687 = vpop.f32.mrb[0].mxu0
      %688 = vmatprep.mubr.bf16.mxu0 %v415
      %689 = vmatmul.mubr.bf16.gmra.mrb[0].mxu0 %v414
      %v690 = vpop.f32.mrb[0].mxu0
      %v691 = vadd.f32 0.0, %v690
      %v692 = vpop.f32.mrb[0].mxu0
      %v693 = vpop.f32.mrb[0].mxu0
      %v694 = vadd.f32 0.0, %v693
      %v695 = vpop.f32.mrb[0].mxu0
      %696 = vmatprep.mubr.bf16.mxu0 %v418
      %697 = vmatmul.mubr.bf16.gmra.mrb[0].mxu0 %v417
      %v698 = vpop.f32.mrb[0].mxu0
      %v699 = vadd.f32 0.0, %v698
      %v700 = vpop.f32.mrb[0].mxu0
      %v701 = vpop.f32.mrb[0].mxu0
      %v702 = vadd.f32 0.0, %v701
      %v703 = vpop.f32.mrb[0].mxu0
      %704 = vmatprep.mubr.bf16.mxu0 %v421
      %705 = vmatmul.mubr.bf16.gmra.mrb[0].mxu0 %v420
      %v706 = vpop.f32.mrb[0].mxu0
      %v707 = vadd.f32 0.0, %v706
      %v708 = vpop.f32.mrb[0].mxu0
      %v709 = vpop.f32.mrb[0].mxu0
      %v710 = vadd.f32 0.0, %v709
      %v711 = vpop.f32.mrb[0].mxu0
      %712 = vmatprep.mubr.bf16.mxu0 %v424
      %713 = vmatmul.mubr.bf16.gmra.mrb[0].mxu0 %v423
      %v714 = vpop.f32.mrb[0].mxu0
      %v715 = vadd.f32 0.0, %v714
      %v716 = vpop.f32.mrb[0].mxu0
      %v717 = vpop.f32.mrb[0].mxu0
      %v718 = vadd.f32 0.0, %v717
      %v719 = vpop.f32.mrb[0].mxu0
      %720 = vmatprep.mubr.bf16.mxu0 %v427
      %721 = vmatmul.mubr.bf16.gmra.mrb[0].mxu0 %v426
      %v722 = vpop.f32.mrb[0].mxu0
      %v723 = vadd.f32 0.0, %v722
      %v724 = vpop.f32.mrb[0].mxu0
      %v725 = vpop.f32.mrb[0].mxu0
      %v726 = vadd.f32 0.0, %v725
      %v727 = vpop.f32.mrb[0].mxu0
      %728 = vmatprep.mubr.bf16.mxu0 %v430
      %729 = vmatmul.mubr.bf16.gmra.mrb[0].mxu0 %v429
      %v730 = vpop.f32.mrb[0].mxu0
      %v731 = vadd.f32 0.0, %v730
      %v732 = vpop.f32.mrb[0].mxu0
      %v733 = vpop.f32.mrb[0].mxu0
      %v734 = vadd.f32 0.0, %v733
      %v735 = vpop.f32.mrb[0].mxu0
      %736 = vmatprep.mubr.bf16.mxu0 %v433
      %737 = vmatmul.mubr.bf16.gmra.mrb[0].mxu0 %v432
      %v738 = vpop.f32.mrb[0].mxu0
      %v739 = vadd.f32 0.0, %v738
      %v740 = vpop.f32.mrb[0].mxu0
      %v741 = vpop.f32.mrb[0].mxu0
      %v742 = vadd.f32 0.0, %v741
      %v743 = vpop.f32.mrb[0].mxu0
      %744 = vmatprep.mubr.bf16.mxu0 %v436
      %745 = vmatmul.mubr.bf16.gmra.mrb[0].mxu0 %v435
      %v746 = vpop.f32.mrb[0].mxu0
      %v747 = vadd.f32 0.0, %v746
      %v748 = vpop.f32.mrb[0].mxu0
      %v749 = vpop.f32.mrb[0].mxu0
      %v750 = vadd.f32 0.0, %v749
      %v751 = vpop.f32.mrb[0].mxu0
      %752 = vmatprep.mubr.bf16.mxu0 %v439
      %753 = vmatmul.mubr.bf16.gmra.mrb[0].mxu0 %v438
      %v754 = vpop.f32.mrb[0].mxu0
      %v755 = vadd.f32 0.0, %v754
      %v756 = vpop.f32.mrb[0].mxu0
      %v757 = vpop.f32.mrb[0].mxu0
      %v758 = vadd.f32 0.0, %v757
      %v759 = vpop.f32.mrb[0].mxu0
      %760 = vmatprep.mubr.bf16.mxu0 %v442
      %761 = vmatmul.mubr.bf16.gmra.mrb[0].mxu0 %v441
      %v762 = vpop.f32.mrb[0].mxu0
      %v763 = vadd.f32 0.0, %v762
      %v764 = vpop.f32.mrb[0].mxu0
      %v765 = vpop.f32.mrb[0].mxu0
      %v766 = vadd.f32 0.0, %v765
      %v767 = vpop.f32.mrb[0].mxu0
      %768 = vmatprep.mubr.bf16.mxu0 %v445
      %769 = vmatmul.mubr.bf16.gmra.mrb[0].mxu0 %v444
      %v770 = vpop.f32.mrb[0].mxu0
      %v771 = vadd.f32 0.0, %v770
      %v772 = vpop.f32.mrb[0].mxu0
      %v773 = vpop.f32.mrb[0].mxu0
      %v774 = vadd.f32 0.0, %v773
      %v775 = vpop.f32.mrb[0].mxu0
      %776 = vmatprep.mubr.bf16.mxu0 %v448
      %777 = vmatmul.mubr.bf16.gmra.mrb[0].mxu0 %v447
      %v778 = vpop.f32.mrb[0].mxu0
      %v779 = vadd.f32 0.0, %v778
      %v780 = vpop.f32.mrb[0].mxu0
      %v781 = vpop.f32.mrb[0].mxu0
      %v782 = vadd.f32 0.0, %v781
      %v783 = vpop.f32.mrb[0].mxu0
      %784 = vmatprep.mubr.bf16.mxu0 %v451
      %785 = vmatmul.mubr.bf16.gmra.mrb[0].mxu0 %v450
      %v786 = vpop.f32.mrb[0].mxu0
      %v787 = vadd.f32 0.0, %v786
      %v788 = vpop.f32.mrb[0].mxu0
      %v789 = vpop.f32.mrb[0].mxu0
      %v790 = vadd.f32 0.0, %v789
      %v791 = vpop.f32.mrb[0].mxu0
      %792 = vmatprep.mubr.bf16.mxu0 %v454
      %793 = vmatmul.mubr.bf16.gmra.mrb[0].mxu0 %v453
      %v794 = vpop.f32.mrb[0].mxu0
      %v795 = vadd.f32 0.0, %v794
      %v796 = vpop.f32.mrb[0].mxu0
      %v797 = vpop.f32.mrb[0].mxu0
      %v798 = vadd.f32 0.0, %v797
      %v799 = vpop.f32.mrb[0].mxu0
      %800 = vmatprep.mubr.bf16.mxu0 %v457
      %801 = vmatmul.mubr.bf16.gmra.mrb[0].mxu0 %v456
      %v802 = vpop.f32.mrb[0].mxu0
      %v803 = vadd.f32 0.0, %v802
      %v804 = vpop.f32.mrb[0].mxu0
      %v805 = vpop.f32.mrb[0].mxu0
      %v806 = vadd.f32 0.0, %v805
      %v807 = vpop.f32.mrb[0].mxu0
      %808 = vdwg.mxu0
      %809 = vmatprep.subr.bf16.mxu0 0
      %810 = vmatpush1.bf16.msra.mxu0 %v579
      %811 = vmatprep.subr.bf16.mxu0 0
      %812 = vmatpush1.bf16.msra.mxu0 %v580
      %813 = vmatprep.subr.bf16.mxu0 0
      %814 = vmatpush1.bf16.msra.mxu0 0
      %815 = vmatprep.subr.bf16.mxu0 0
      %816 = vmatpush1.bf16.msra.mxu0 0
      %817 = vmatprep.subr.bf16.mxu0 0
      %818 = vmatpush1.bf16.msra.mxu0 0
      %819 = vmatprep.subr.bf16.mxu0 0
      %820 = vmatpush1.bf16.msra.mxu0 0
      %821 = vmatprep.subr.bf16.mxu0 0
      %822 = vmatpush1.bf16.msra.mxu0 0
      %823 = vmatprep.subr.bf16.mxu0 0
      %824 = vmatpush1.bf16.msra.mxu0 0
      %825 = vmatprep.subr.bf16.mxu0 0
      %826 = vmatpush1.bf16.msra.mxu0 0
      %827 = vmatprep.subr.bf16.mxu0 0
      %828 = vmatpush1.bf16.msra.mxu0 0
      %829 = vmatprep.subr.bf16.mxu0 0
      %830 = vmatpush1.bf16.msra.mxu0 0
      %831 = vmatprep.subr.bf16.mxu0 0
      %832 = vmatpush1.bf16.msra.mxu0 0
      %833 = vmatprep.subr.bf16.mxu0 0
      %834 = vmatpush1.bf16.msra.mxu0 0
      %835 = vmatprep.subr.bf16.mxu0 0
      %836 = vmatpush1.bf16.msra.mxu0 0
      %837 = vmatprep.subr.bf16.mxu0 0
      %838 = vmatpush1.bf16.msra.mxu0 0
      %839 = vmatprep.subr.bf16.mxu0 0
      %840 = vmatpush1.bf16.msra.mxu0 0
      %841 = vmatprep.mubr.bf16.mxu0 0
      %842 = vmatmul.mubr.bf16.gmra.mrb[0].mxu0 %v601
      %v843 = vpop.f32.mrb[0].mxu0
      %v844 = vadd.f32 %v683, %v843
      %v845 = vpop.f32.mrb[0].mxu0
      %v846 = vpop.f32.mrb[0].mxu0
      %v847 = vadd.f32 %v686, %v846
      %v848 = vpop.f32.mrb[0].mxu0
      %849 = vmatprep.mubr.bf16.mxu0 0
      %850 = vmatmul.mubr.bf16.gmra.mrb[0].mxu0 %v604
      %v851 = vpop.f32.mrb[0].mxu0
      %v852 = vadd.f32 %v691, %v851
      %v853 = vpop.f32.mrb[0].mxu0
      %v854 = vpop.f32.mrb[0].mxu0
      %v855 = vadd.f32 %v694, %v854
      %v856 = vpop.f32.mrb[0].mxu0
      %857 = vmatprep.mubr.bf16.mxu0 0
      %858 = vmatmul.mubr.bf16.gmra.mrb[0].mxu0 %v607
      %v859 = vpop.f32.mrb[0].mxu0
      %v860 = vadd.f32 %v699, %v859
      %v861 = vpop.f32.mrb[0].mxu0
      %v862 = vpop.f32.mrb[0].mxu0
      %v863 = vadd.f32 %v702, %v862
      %v864 = vpop.f32.mrb[0].mxu0
      %865 = vmatprep.mubr.bf16.mxu0 0
      %866 = vmatmul.mubr.bf16.gmra.mrb[0].mxu0 %v610
      %v867 = vpop.f32.mrb[0].mxu0
      %v868 = vadd.f32 %v707, %v867
      %v869 = vpop.f32.mrb[0].mxu0
      %v870 = vpop.f32.mrb[0].mxu0
      %v871 = vadd.f32 %v710, %v870
      %v872 = vpop.f32.mrb[0].mxu0
      %873 = vmatprep.mubr.bf16.mxu0 0
      %874 = vmatmul.mubr.bf16.gmra.mrb[0].mxu0 %v613
      %v875 = vpop.f32.mrb[0].mxu0
      %v876 = vadd.f32 %v715, %v875
      %v877 = vpop.f32.mrb[0].mxu0
      %v878 = vpop.f32.mrb[0].mxu0
      %v879 = vadd.f32 %v718, %v878
      %v880 = vpop.f32.mrb[0].mxu0
      %881 = vmatprep.mubr.bf16.mxu0 0
      %882 = vmatmul.mubr.bf16.gmra.mrb[0].mxu0 %v616
      %v883 = vpop.f32.mrb[0].mxu0
      %v884 = vadd.f32 %v723, %v883
      %v885 = vpop.f32.mrb[0].mxu0
      %v886 = vpop.f32.mrb[0].mxu0
      %v887 = vadd.f32 %v726, %v886
      %v888 = vpop.f32.mrb[0].mxu0
      %889 = vmatprep.mubr.bf16.mxu0 0
      %890 = vmatmul.mubr.bf16.gmra.mrb[0].mxu0 %v619
      %v891 = vpop.f32.mrb[0].mxu0
      %v892 = vadd.f32 %v731, %v891
      %v893 = vpop.f32.mrb[0].mxu0
      %v894 = vpop.f32.mrb[0].mxu0
      %v895 = vadd.f32 %v734, %v894
      %v896 = vpop.f32.mrb[0].mxu0
      %897 = vmatprep.mubr.bf16.mxu0 0
      %898 = vmatmul.mubr.bf16.gmra.mrb[0].mxu0 %v622
      %v899 = vpop.f32.mrb[0].mxu0
      %v900 = vadd.f32 %v739, %v899
      %v901 = vpop.f32.mrb[0].mxu0
      %v902 = vpop.f32.mrb[0].mxu0
      %v903 = vadd.f32 %v742, %v902
      %v904 = vpop.f32.mrb[0].mxu0
      %905 = vmatprep.mubr.bf16.mxu0 0
      %906 = vmatmul.mubr.bf16.gmra.mrb[0].mxu0 %v625
      %v907 = vpop.f32.mrb[0].mxu0
      %v908 = vadd.f32 %v747, %v907
      %v909 = vpop.f32.mrb[0].mxu0
      %v910 = vpop.f32.mrb[0].mxu0
      %v911 = vadd.f32 %v750, %v910
      %v912 = vpop.f32.mrb[0].mxu0
      %913 = vmatprep.mubr.bf16.mxu0 0
      %914 = vmatmul.mubr.bf16.gmra.mrb[0].mxu0 %v628
      %v915 = vpop.f32.mrb[0].mxu0
      %v916 = vadd.f32 %v755, %v915
      %v917 = vpop.f32.mrb[0].mxu0
      %v918 = vpop.f32.mrb[0].mxu0
      %v919 = vadd.f32 %v758, %v918
      %v920 = vpop.f32.mrb[0].mxu0
      %921 = vmatprep.mubr.bf16.mxu0 0
      %922 = vmatmul.mubr.bf16.gmra.mrb[0].mxu0 %v631
      %v923 = vpop.f32.mrb[0].mxu0
      %v924 = vadd.f32 %v763, %v923
      %v925 = vpop.f32.mrb[0].mxu0
      %v926 = vpop.f32.mrb[0].mxu0
      %v927 = vadd.f32 %v766, %v926
      %v928 = vpop.f32.mrb[0].mxu0
      %929 = vmatprep.mubr.bf16.mxu0 0
      %930 = vmatmul.mubr.bf16.gmra.mrb[0].mxu0 %v634
      %v931 = vpop.f32.mrb[0].mxu0
      %v932 = vadd.f32 %v771, %v931
      %v933 = vpop.f32.mrb[0].mxu0
      %v934 = vpop.f32.mrb[0].mxu0
      %v935 = vadd.f32 %v774, %v934
      %v936 = vpop.f32.mrb[0].mxu0
      %937 = vmatprep.mubr.bf16.mxu0 0
      %938 = vmatmul.mubr.bf16.gmra.mrb[0].mxu0 %v637
      %v939 = vpop.f32.mrb[0].mxu0
      %v940 = vadd.f32 %v779, %v939
      %v941 = vpop.f32.mrb[0].mxu0
      %v942 = vpop.f32.mrb[0].mxu0
      %v943 = vadd.f32 %v782, %v942
      %v944 = vpop.f32.mrb[0].mxu0
      %945 = vmatprep.mubr.bf16.mxu0 0
      %946 = vmatmul.mubr.bf16.gmra.mrb[0].mxu0 %v640
      %v947 = vpop.f32.mrb[0].mxu0
      %v948 = vadd.f32 %v787, %v947
      %v949 = vpop.f32.mrb[0].mxu0
      %v950 = vpop.f32.mrb[0].mxu0
      %v951 = vadd.f32 %v790, %v950
      %v952 = vpop.f32.mrb[0].mxu0
      %953 = vmatprep.mubr.bf16.mxu0 0
      %954 = vmatmul.mubr.bf16.gmra.mrb[0].mxu0 %v643
      %v955 = vpop.f32.mrb[0].mxu0
      %v956 = vadd.f32 %v795, %v955
      %v957 = vpop.f32.mrb[0].mxu0
      %v958 = vpop.f32.mrb[0].mxu0
      %v959 = vadd.f32 %v798, %v958
      %v960 = vpop.f32.mrb[0].mxu0
      %961 = vmatprep.mubr.bf16.mxu0 0
      %962 = vmatmul.mubr.bf16.gmra.mrb[0].mxu0 %v646
      %v963 = vpop.f32.mrb[0].mxu0
      %v964 = vadd.f32 %v803, %v963
      %v965 = vpop.f32.mrb[0].mxu0
      %v966 = vpop.f32.mrb[0].mxu0
      %v967 = vadd.f32 %v806, %v966
      %v968 = vpop.f32.mrb[0].mxu0
      %969 = vdwg.mxu0
      %970 = vst [vmem:[%s148] sm:$0xff] %v844
      %971 = vst [vmem:[%s148 + $0x8] sm:$0xff] %v847
      %972 = vst [vmem:[%s148 + $0x10] sm:$0xff] %v852
      %973 = vst [vmem:[%s148 + $0x18] sm:$0xff] %v855
      %974 = vst [vmem:[%s148 + $0x20] sm:$0xff] %v860
      %975 = vst [vmem:[%s148 + $0x28] sm:$0xff] %v863
      %976 = vst [vmem:[%s148 + $0x30] sm:$0xff] %v868
      %977 = vst [vmem:[%s148 + $0x38] sm:$0xff] %v871
      %978 = vst [vmem:[%s148 + $0x40] sm:$0xff] %v876
      %979 = vst [vmem:[%s148 + $0x48] sm:$0xff] %v879
      %980 = vst [vmem:[%s148 + $0x50] sm:$0xff] %v884
      %981 = vst [vmem:[%s148 + $0x58] sm:$0xff] %v887
      %982 = vst [vmem:[%s148 + $0x60] sm:$0xff] %v892
      %983 = vst [vmem:[%s148 + $0x68] sm:$0xff] %v895
      %984 = vst [vmem:[%s148 + $0x70] sm:$0xff] %v900
      %985 = vst [vmem:[%s148 + $0x78] sm:$0xff] %v903
      %986 = vst [vmem:[%s148 + $0x80] sm:$0xff] %v908
      %987 = vst [vmem:[%s148 + $0x88] sm:$0xff] %v911
      %988 = vst [vmem:[%s148 + $0x90] sm:$0xff] %v916
      %989 = vst [vmem:[%s148 + $0x98] sm:$0xff] %v919
      %990 = vst [vmem:[%s148 + $0xa0] sm:$0xff] %v924
      %991 = vst [vmem:[%s148 + $0xa8] sm:$0xff] %v927
      %992 = vst [vmem:[%s148 + $0xb0] sm:$0xff] %v932
      %993 = vst [vmem:[%s148 + $0xb8] sm:$0xff] %v935
      %994 = vst [vmem:[%s148 + $0xc0] sm:$0xff] %v940
      %995 = vst [vmem:[%s148 + $0xc8] sm:$0xff] %v943
      %996 = vst [vmem:[%s148 + $0xd0] sm:$0xff] %v948
      %997 = vst [vmem:[%s148 + $0xd8] sm:$0xff] %v951
      %998 = vst [vmem:[%s148 + $0xe0] sm:$0xff] %v956
      %999 = vst [vmem:[%s148 + $0xe8] sm:$0xff] %v959
      %1000 = vst [vmem:[%s148 + $0xf0] sm:$0xff] %v964
      %1001 = vst [vmem:[%s148 + $0xf8] sm:$0xff] %v967
      %s1002 = smul.u32 32, %s13
      %p1003 = scmp.lt.s32.totalorder %s1002, 255
      %s1004 = scalar_select %p1003, %s1002, 255
      %s1005 = smul.addr %s1004, 8
      %s1006 = scalar_lea.vmem %s2, %s1005
      // Predicated region
      $region29: #{network_forward.29} parent=27 // pred_check
        %p1007 = pneg %p78
      $region30: #{network_forward.29} parent=27 // pred_check_branch
        %1009 = sbr.rel (%p1007) target = $region32
      $region31: #{network_forward.29} parent=27 // pred_region
        %s1010 = smul.u32 32, %s13
      $region32: #{network_forward.29} parent=27 // pred_fallthru
        _
    $region28: #{network_forward.29} parent=5 // pred_fallthru
      _
    %p1011 = scmp.le.s32.totalorder 2, %s8
    // Predicated region
    $region33: #{network_forward.29} parent=5 // pred_check
      %p1012 = pneg %p1011
    $region34: #{network_forward.29} parent=5 // pred_check_branch
      %1014 = sbr.rel (%p1012) target = $region36
    $region35: #{network_forward.29} parent=5 // pred_region
      %s1015 = ssub.s32 %s8, 2
      // Predicated region
      $region37: #{network_forward.29} parent=35 // pred_check
        %p1016 = pneg %p84
      $region38: #{network_forward.29} parent=35 // pred_check_branch
        %1018 = sbr.rel (%p1016) target = $region40
      $region39: #{network_forward.29} parent=35 // pred_region
        %s1019 = smul.u32 32, %s14
        %p1020 = scmp.lt.s32.totalorder %s1019, 255
        %s1021 = scalar_select %p1020, %s1019, 255
        %s1022 = smul.addr %s1021, 8
        %s1023 = scalar_lea.vmem %s2, %s1022
      $region40: #{network_forward.29} parent=35 // pred_fallthru
        _
    $region36: #{network_forward.29} parent=5 // pred_fallthru
      _
  $region6: #{network_forward.29} parent=0 // loop_footer
    %s12 = sadd.s32 1, %s8
  $region7: #{network_forward.29} parent=0 // loop_footer_branch
    %7 = sbr.rel target = $region3
  $region8: #{network_forward.29} parent=0 // loop_exit
    _

</llo_original>
